<compile_context>
chip_gen: v7x
topology: tpu7x:2x2x1
jax: 0.10.0
libtpu: 0.0.40
codegen_flags: <defaults>
</compile_context>

<pallas_src>
import functools

import jax
import jax.numpy as jnp
from jax.experimental import pallas as pl
from jax.experimental.pallas import tpu as pltpu

LANE = 128          # TPU lane width; tag dim is padded up to this
NEG = -1e9          # finite "minus infinity" for padded CRF entries
VMEM_LIMIT = 32 * 1024 * 1024


def _pick_row_tile(M, tmax):
    """Largest row tile <= tmax that divides M (multiple of 8); else tmax."""
    if M <= tmax:
        return M
    t = (tmax // 8) * 8
    while t >= 8:
        if M % t == 0:
            return t
        t -= 8
    return tmax


# ----------------------------------------------------------------------------
# Dense projections
# ----------------------------------------------------------------------------
def _linear_kernel(x_ref, w_ref, b_ref, o_ref, *, activation):
    # bf16 MXU operands, f32 accumulation; bias add / activation in f32 on VPU/EUP.
    y = jnp.dot(x_ref[...].astype(jnp.bfloat16), w_ref[...],
                preferred_element_type=jnp.float32)
    y = y + b_ref[...]
    if activation is not None:
        y = activation(y)
    o_ref[...] = y


def linear(x, w_bf16, b, activation=None, tm=512, tn_max=1024):
    """y = activation(x @ w + b).  x:(M,K) f32, w:(K,N) bf16, b:(1,N) f32."""
    # TODO(synk): re-derive tm per chip (v7x's 64 MiB VMEM may prefer 256).
    M, K = x.shape
    N = w_bf16.shape[1]
    tm = _pick_row_tile(M, tm)
    gm = pl.cdiv(M, tm)
    Mp = gm * tm
    if Mp != M:
        x = jnp.pad(x, ((0, Mp - M), (0, 0)))
    tn = tn_max if (N > tn_max and N % tn_max == 0) else N
    gn = N // tn
    out = pl.pallas_call(
        functools.partial(_linear_kernel, activation=activation),
        out_shape=jax.ShapeDtypeStruct((Mp, N), jnp.float32),
        grid=(gm, gn),
        in_specs=[
            pl.BlockSpec((tm, K), lambda i, j: (i, 0)),
            pl.BlockSpec((K, tn), lambda i, j: (0, j)),
            pl.BlockSpec((1, tn), lambda i, j: (0, j)),
        ],
        out_specs=pl.BlockSpec((tm, tn), lambda i, j: (i, j)),
        compiler_params=pltpu.CompilerParams(
            dimension_semantics=("parallel", "parallel"),
            vmem_limit_bytes=VMEM_LIMIT),
        cost_estimate=pl.CostEstimate(
            flops=2 * Mp * K * N,
            transcendentals=Mp * N if activation is not None else 0,
            bytes_accessed=4 * Mp * K + 2 * K * N + 4 * Mp * N),
    )(x, w_bf16, b)
    return out[:M] if Mp != M else out


# ----------------------------------------------------------------------------
# Bidirectional LSTM (both directions interleaved in one kernel / one loop)
# ----------------------------------------------------------------------------
def _bilstm_kernel(xg_ref, whh_ref, hf_ref, hb_ref):
    """xg:(S,B,8H) precomputed input gates [fwd | bwd]; whh:(2,H,4H) bf16."""
    S, B, F2 = xg_ref.shape
    F = F2 // 2                      # 4H
    H = F // 4

    def cell(pre, h, c, whh):
        gates = pre + jnp.dot(h.astype(jnp.bfloat16), whh,
                              preferred_element_type=jnp.float32)
        # PyTorch gate order: i, f, g, o (H=128 -> lane-aligned slices)
        i = jax.nn.sigmoid(gates[:, 0 * H:1 * H])
        f = jax.nn.sigmoid(gates[:, 1 * H:2 * H])
        g = jnp.tanh(gates[:, 2 * H:3 * H])
        o = jax.nn.sigmoid(gates[:, 3 * H:4 * H])
        c = f * c + i * g
        h = o * jnp.tanh(c)
        return h, c

    def step(s, carry):
        hf, cf, hb, cb = carry
        tf = s
        tb = S - 1 - s
        xf = xg_ref[tf]              # (B, 8H)
        xb = xg_ref[tb]              # (B, 8H)
        # two independent dependency chains -> compiler interleaves MXU/EUP work
        hf, cf = cell(xf[:, :F], hf, cf, whh_ref[0])
        hb, cb = cell(xb[:, F:], hb, cb, whh_ref[1])
        hf_ref[tf] = hf
        hb_ref[tb] = hb
        return hf, cf, hb, cb

    z = jnp.zeros((B, H), jnp.float32)
    jax.lax.fori_loop(0, S, step, (z, z, z, z))


def bilstm(xg_sbF, whhT2_bf16):
    """xg:(S,B,8H) f32;  whhT2:(2,H,4H) bf16  ->  (h_fwd, h_bwd) each (S,B,H)."""
    S, B, F2 = xg_sbF.shape
    H = F2 // 8
    return pl.pallas_call(
        _bilstm_kernel,
        out_shape=(jax.ShapeDtypeStruct((S, B, H), jnp.float32),
                   jax.ShapeDtypeStruct((S, B, H), jnp.float32)),
        grid=(1,),
        in_specs=[
            pl.BlockSpec((S, B, F2), lambda i: (0, 0, 0)),
            pl.BlockSpec((2, H, 4 * H), lambda i: (0, 0, 0)),
        ],
        out_specs=(pl.BlockSpec((S, B, H), lambda i: (0, 0, 0)),
                   pl.BlockSpec((S, B, H), lambda i: (0, 0, 0))),
        compiler_params=pltpu.CompilerParams(
            dimension_semantics=("arbitrary",),
            vmem_limit_bytes=VMEM_LIMIT),
    )(xg_sbF, whhT2_bf16)


# ----------------------------------------------------------------------------
# Classifier: emissions = h_fwd @ W_top + h_bwd @ W_bot + b  (lane-padded tags)
# ----------------------------------------------------------------------------
def _cls_kernel(hf_ref, hb_ref, w_ref, b_ref, o_ref):
    o_ref[...] = (
        jnp.dot(hf_ref[...].astype(jnp.bfloat16), w_ref[0],
                preferred_element_type=jnp.float32)
        + jnp.dot(hb_ref[...].astype(jnp.bfloat16), w_ref[1],
                  preferred_element_type=jnp.float32)
        + b_ref[...])


def classifier(hf, hb, w2_bf16, b, tm=512):
    """hf,hb:(M,H) f32; w2:(2,H,Tp) bf16; b:(1,Tp) f32 -> (M,Tp) f32."""
    M, H = hf.shape
    Tp = w2_bf16.shape[-1]
    tm = _pick_row_tile(M, tm)
    g = pl.cdiv(M, tm)
    Mp = g * tm
    if Mp != M:
        hf = jnp.pad(hf, ((0, Mp - M), (0, 0)))
        hb = jnp.pad(hb, ((0, Mp - M), (0, 0)))
    out = pl.pallas_call(
        _cls_kernel,
        out_shape=jax.ShapeDtypeStruct((Mp, Tp), jnp.float32),
        grid=(g,),
        in_specs=[
            pl.BlockSpec((tm, H), lambda i: (i, 0)),
            pl.BlockSpec((tm, H), lambda i: (i, 0)),
            pl.BlockSpec((2, H, Tp), lambda i: (0, 0, 0)),
            pl.BlockSpec((1, Tp), lambda i: (0, 0)),
        ],
        out_specs=pl.BlockSpec((tm, Tp), lambda i: (i, 0)),
        compiler_params=pltpu.CompilerParams(
            dimension_semantics=("parallel",),
            vmem_limit_bytes=VMEM_LIMIT),
        cost_estimate=pl.CostEstimate(
            flops=4 * Mp * H * Tp, transcendentals=0,
            bytes_accessed=8 * Mp * H + 4 * H * Tp + 4 * Mp * Tp),
    )(hf, hb, w2_bf16, b)
    return out[:M] if Mp != M else out


# ----------------------------------------------------------------------------
# CRF token_mean negative log-likelihood
# ----------------------------------------------------------------------------
def _crf_kernel(em_ref, tag_ref, mask_ref, trans_ref, exptrans_ref,
                start_ref, end_ref, llh_ref, ntok_ref):
    """Per batch-tile partial (llh, ntok).

    Assumes mask[:, 0] == 1 and right-contiguous masks for real rows
    (torchcrf precondition).  All-zero-mask rows (batch padding) are
    excluded via the `valid` weight.  Padded tag lanes carry NEG scores.
    """
    S, B, Tp = em_ref.shape
    trans = trans_ref[...]                                # (Tp, Tp)  log-space
    exp_trans = exptrans_ref[...]                         # (Tp, Tp)  exp(trans)
    start = start_ref[...]                                # (1, Tp)
    end = end_ref[...]                                    # (1, Tp)
    mask = mask_ref[...]                                  # (S, B, 1)

    # One-hot of all tags: iota computed ONCE (hoisted out of the time loop).
    ids = jax.lax.broadcasted_iota(jnp.int32, (S, B, Tp), 2)
    oh = (ids == tag_ref[...]).astype(jnp.float32)        # (S, B, Tp)

    # ---- numerator (gold-path score): fully vectorized, no time recurrence --
    em_all = em_ref[...]                                  # (S, B, Tp)
    em_sum = jnp.sum(jnp.sum(em_all * oh, axis=2, keepdims=True) * mask,
                     axis=0)                              # (B, 1)

    prev = oh[:-1].reshape(((S - 1) * B, Tp))
    curr = oh[1:].reshape(((S - 1) * B, Tp))
    tsc = jnp.sum(jnp.dot(prev, trans, preferred_element_type=jnp.float32)
                  * curr, axis=1, keepdims=True).reshape((S - 1, B, 1))
    trans_sum = jnp.sum(tsc * mask[1:], axis=0)           # (B, 1)

    start_score = jnp.sum(start * oh[0], axis=1, keepdims=True)   # (B, 1)

    # last-tag one-hot without a loop:  sum_t (mask_t - mask_{t+1}) * oh_t
    last_oh = (jnp.sum(mask * oh, axis=0)
               - jnp.sum(mask[1:] * oh[:-1], axis=0))     # (B, Tp)
    end_score = jnp.sum(last_oh * end, axis=1, keepdims=True)     # (B, 1)

    numerator = start_score + em_sum + trans_sum + end_score       # (B, 1)

    # ---- denominator: forward algorithm, max-shift + exp(trans) matmul ------
    alpha0 = start + em_ref[0]                            # (B, Tp)

    def body(t, alpha):
        m = jnp.max(alpha, axis=1, keepdims=True)         # (B, 1)
        p = jnp.exp(alpha - m)                            # (B, Tp)   B*Tp exps
        s = jnp.dot(p, exp_trans,
                    preferred_element_type=jnp.float32)   # (B, Tp)   MXU
        nxt = em_ref[t] + m + jnp.log(s)
        nxt = jnp.maximum(nxt, NEG)                       # padded lanes: -inf -> NEG
        msk = mask_ref[t]                                 # (B, 1)
        return jnp.where(msk > 0, nxt, alpha)

    alpha = jax.lax.fori_loop(1, S, body, alpha0)

    final = alpha + end
    mf = jnp.max(final, axis=1, keepdims=True)
    denom = jnp.log(jnp.sum(jnp.exp(final - mf), axis=1,
                            keepdims=True)) + mf          # (B, 1)

    valid = mask[0]                                       # (B, 1)
    llh = jnp.sum(valid * (numerator - denom), axis=(0, 1), keepdims=True)
    llh_ref[...] = llh[None]                              # (1, 1, 1)
    ntok_ref[...] = jnp.sum(mask, axis=(0, 1, 2), keepdims=True)


def crf_token_mean_loss(em_sbt, tags_sb1, mask_sb1, trans, exp_trans,
                        start, end, bt=8):
    S, B, Tp = em_sbt.shape
    bt = min(bt, B)
    G = pl.cdiv(B, bt)
    Bp = G * bt
    if Bp != B:
        pad = Bp - B
        em_sbt = jnp.pad(em_sbt, ((0, 0), (0, pad), (0, 0)))
        tags_sb1 = jnp.pad(tags_sb1, ((0, 0), (0, pad), (0, 0)))
        mask_sb1 = jnp.pad(mask_sb1, ((0, 0), (0, pad), (0, 0)))
    llh, ntok = pl.pallas_call(
        _crf_kernel,
        out_shape=(jax.ShapeDtypeStruct((G, 1, 1), jnp.float32),
                   jax.ShapeDtypeStruct((G, 1, 1), jnp.float32)),
        grid=(G,),
        in_specs=[
            pl.BlockSpec((S, bt, Tp), lambda g: (0, g, 0)),
            pl.BlockSpec((S, bt, 1), lambda g: (0, g, 0)),
            pl.BlockSpec((S, bt, 1), lambda g: (0, g, 0)),
            pl.BlockSpec((Tp, Tp), lambda g: (0, 0)),
            pl.BlockSpec((Tp, Tp), lambda g: (0, 0)),
            pl.BlockSpec((1, Tp), lambda g: (0, 0)),
            pl.BlockSpec((1, Tp), lambda g: (0, 0)),
        ],
        out_specs=(pl.BlockSpec((1, 1, 1), lambda g: (g, 0, 0)),
                   pl.BlockSpec((1, 1, 1), lambda g: (g, 0, 0))),
        compiler_params=pltpu.CompilerParams(
            dimension_semantics=("parallel",),
            vmem_limit_bytes=VMEM_LIMIT),
    )(em_sbt, tags_sb1, mask_sb1, trans, exp_trans, start, end)
    return -jnp.sum(llh) / jnp.sum(ntok)


# ----------------------------------------------------------------------------
# One-time parameter preparation (padding / packing / bf16 casts, done ONCE)
# ----------------------------------------------------------------------------
def prepare_params(params):
    T = params["crf_trans"].shape[0]
    Tp = pl.cdiv(T, LANE) * LANE
    H = params["lstm_WhhT"].shape[1]

    cls_W = params["cls_WT"]                               # (2H, T)
    cls_Wp = jnp.zeros((2, H, Tp), jnp.float32)
    cls_Wp = cls_Wp.at[0, :, :T].set(cls_W[:H])
    cls_Wp = cls_Wp.at[1, :, :T].set(cls_W[H:])
    cls_bp = jnp.zeros((1, Tp), jnp.float32).at[:, :T].set(params["cls_b"])

    trans_p = jnp.full((Tp, Tp), NEG, jnp.float32).at[:T, :T].set(
        params["crf_trans"])
    start_p = jnp.full((1, Tp), NEG, jnp.float32).at[:, :T].set(
        params["crf_start"])
    end_p = jnp.zeros((1, Tp), jnp.float32).at[:, :T].set(params["crf_end"])

    return {
        "emb_tok": params["emb_tok"],
        "emb_pos": params["emb_pos"],
        "bert_W": params["bert_W"].astype(jnp.bfloat16),
        "bert_b": params["bert_b"],
        "lstm_WihT": params["lstm_WihT"].astype(jnp.bfloat16),
        "lstm_b": params["lstm_b"],
        "lstm_WhhT": params["lstm_WhhT"].astype(jnp.bfloat16),
        "cls_Wp": cls_Wp.astype(jnp.bfloat16),
        "cls_bp": cls_bp,
        "crf_trans": trans_p,
        "crf_exp_trans": jnp.exp(trans_p),                 # exp(NEG) == 0.0
        "crf_start": start_p,
        "crf_end": end_p,
    }


# ----------------------------------------------------------------------------
# BERTCRF forward (returns scalar loss, like the PyTorch module)
# ----------------------------------------------------------------------------
def bertcrf_forward(prep, input_ids, input_tags, mask):
    B, S = input_ids.shape
    D = prep["emb_tok"].shape[1]
    H = D
    Tp = prep["cls_Wp"].shape[-1]

    # ---- "bert": synthetic encoder; everything time-major (S, B, ...).
    # TODO(synk): replace with the real pretrained BERT encoder stack.
    ids_t = input_ids.T                                              # (S, B)
    emb = prep["emb_tok"][ids_t] + prep["emb_pos"][:, None, :]       # (S,B,D)
    x = linear(emb.reshape(S * B, D), prep["bert_W"], prep["bert_b"],
               activation=jnp.tanh)                                  # (S*B, D)

    # dropout1 / dropout2: p=0.0 -> identity

    # ---- bidirectional LSTM: ONE fused input-gate matmul, one pallas_call
    xg = linear(x, prep["lstm_WihT"], prep["lstm_b"])                # (S*B,8H)
    hf, hb = bilstm(xg.reshape(S, B, 8 * H), prep["lstm_WhhT"])      # (S,B,H) x2

    # ---- classifier -> lane-dense emissions (tags padded to Tp=128 lanes)
    em = classifier(hf.reshape(S * B, H), hb.reshape(S * B, H),
                    prep["cls_Wp"], prep["cls_bp"])                  # (S*B,Tp)
    em_sbt = em.reshape(S, B, Tp)

    tags_sb1 = input_tags.T[..., None].astype(jnp.int32)             # (S,B,1)
    mask_sb1 = mask.T[..., None].astype(jnp.float32)                 # (S,B,1)
    return crf_token_mean_loss(em_sbt, tags_sb1, mask_sb1,
                               prep["crf_trans"], prep["crf_exp_trans"],
                               prep["crf_start"], prep["crf_end"])


# ----------------------------------------------------------------------------
# Pure-JAX f32 reference (for self-check of the Pallas kernels)
# ----------------------------------------------------------------------------
def bertcrf_reference(params, input_ids, input_tags, mask):
    B, S = input_ids.shape
    D = params["bert_W"].shape[0]
    H = D
    T = params["crf_trans"].shape[0]
    emb = params["emb_tok"][input_ids] + params["emb_pos"][None, :, :]
    x = jnp.tanh(emb.reshape(B * S, D) @ params["bert_W"]
                 + params["bert_b"]).reshape(B, S, D)

    WihT_f = params["lstm_WihT"][:, :4 * H]
    WihT_b = params["lstm_WihT"][:, 4 * H:]
    b_f = params["lstm_b"][:, :4 * H]
    b_b = params["lstm_b"][:, 4 * H:]
    WhhT_f = params["lstm_WhhT"][0]
    WhhT_b = params["lstm_WhhT"][1]

    def run_lstm(xs, WihT, WhhT, b):
        h = jnp.zeros((B, H), jnp.float32)
        c = jnp.zeros((B, H), jnp.float32)
        outs = []
        for t in range(S):
            g = xs[:, t] @ WihT + b + h @ WhhT
            i = jax.nn.sigmoid(g[:, :H])
            f = jax.nn.sigmoid(g[:, H:2 * H])
            gg = jnp.tanh(g[:, 2 * H:3 * H])
            o = jax.nn.sigmoid(g[:, 3 * H:])
            c = f * c + i * gg
            h = o * jnp.tanh(c)
            outs.append(h)
        return jnp.stack(outs, axis=1)  # (B,S,H)

    hf = run_lstm(x, WihT_f, WhhT_f, b_f)
    hb = run_lstm(x[:, ::-1], WihT_b, WhhT_b, b_b)[:, ::-1]
    h = jnp.concatenate([hf, hb], axis=-1)
    em = (h.reshape(B * S, 2 * H) @ params["cls_WT"]
          + params["cls_b"]).reshape(B, S, T)

    start = params["crf_start"][0]
    end = params["crf_end"][0]
    trans = params["crf_trans"]
    maskf = mask.astype(jnp.float32)
    tags = input_tags
    bar = jnp.arange(B)
    num = start[tags[:, 0]] + em[bar, 0, tags[:, 0]]
    for t in range(1, S):
        num = num + (trans[tags[:, t - 1], tags[:, t]]
                     + em[bar, t, tags[:, t]]) * maskf[:, t]
    seq_ends = mask.astype(jnp.int32).sum(axis=1) - 1
    num = num + end[tags[bar, seq_ends]]

    alpha = start[None, :] + em[:, 0]
    for t in range(1, S):
        cand = alpha[:, :, None] + trans[None] + em[:, t][:, None, :]
        nxt = jax.nn.logsumexp(cand, axis=1)
        alpha = jnp.where(maskf[:, t:t + 1] > 0, nxt, alpha)
    denom = jax.nn.logsumexp(alpha + end[None, :], axis=1)
    llh = jnp.sum(num - denom)
    return -llh / maskf.sum()


if __name__ == "__main__":
    # Lane/sublane-dense small config: H = D = 128 (lane width), B = 8 (sublanes)
    B, S, D, T, VOCAB = 8, 8, 128, 5, 100

    key = jax.random.PRNGKey(0)
    keys = jax.random.split(key, 14)

    def rnd(k, shape, scale=0.1):
        return scale * jax.random.normal(k, shape, jnp.float32)

    # deterministic synthetic parameters (shapes follow BERTCRF.__init__ with
    # d_model=D, num_tags=T, use_lstm=True; LSTM input-gate weights stored
    # fused/pre-transposed for x @ W: columns [0:4H]=forward, [4H:8H]=backward)
    params = {
        "emb_tok": rnd(keys[0], (VOCAB, D), 0.5),
        "emb_pos": rnd(keys[1], (S, D), 0.5),
        "bert_W": rnd(keys[2], (D, D), 0.1),
        "bert_b": rnd(keys[3], (1, D), 0.1),
        "lstm_WihT": rnd(keys[4], (D, 8 * D), 0.1),     # [Wih_f^T | Wih_b^T]
        "lstm_WhhT": rnd(keys[5], (2, D, 4 * D), 0.1),  # stacked Whh^T (f, b)
        "lstm_b": rnd(keys[6], (1, 8 * D), 0.1),        # [b_f | b_b]
        "cls_WT": rnd(keys[10], (2 * D, T), 0.1),       # Linear(2D, T)
        "cls_b": rnd(keys[11], (1, T), 0.1),
        "crf_start": rnd(keys[12], (1, T), 0.5),
        "crf_end": rnd(keys[13], (1, T), 0.5),
        "crf_trans": rnd(jax.random.fold_in(key, 99), (T, T), 0.5),
    }

    dkey = jax.random.PRNGKey(1)
    k_ids, k_tags = jax.random.split(dkey)
    input_ids = jax.random.randint(k_ids, (B, S), 0, VOCAB, dtype=jnp.int32)
    input_tags = jax.random.randint(k_tags, (B, S), 0, T, dtype=jnp.int32)
    lengths = jnp.array([S, S, S - 3, S, S - 2, S, S - 1, S], dtype=jnp.int32)
    mask = jnp.arange(S)[None, :] < lengths[:, None]   # (B,S) bool, mask[:,0]=True

    prep = prepare_params(params)   # one-time padding/packing/bf16 casts

    loss = jax.jit(bertcrf_forward)(prep, input_ids, input_tags, mask)
    loss = jax.block_until_ready(loss)

    with jax.default_matmul_precision("highest"):   # high-precision f32 reference
        ref = bertcrf_reference(params, input_ids, input_tags, mask)

    assert jnp.isfinite(loss), "loss is not finite"
    # bf16 MXU operands in the Pallas path -> loosened tolerance vs. f32 reference
    assert jnp.allclose(loss, ref, rtol=5e-2, atol=5e-2), (loss, ref)
    print("KERNEL_OK")
</pallas_src>

<mosaic_0001>
module attributes {stable_mosaic.version = 11 : i64} {
  func.func @_linear_kernel(%arg0: i32, %arg1: i32, %arg2: memref<64x128xf32, #tpu.memory_space<vmem>>, %arg3: memref<128x1024xbf16, #tpu.memory_space<vmem>>, %arg4: memref<1x1024xf32, #tpu.memory_space<vmem>>, %arg5: memref<64x1024xf32, #tpu.memory_space<vmem>>) attributes {dimension_semantics = [#tpu.dimension_semantics<parallel>, #tpu.dimension_semantics<parallel>], iteration_bounds = array<i64: 1, 1>, scalar_prefetch = 0 : i64, scratch_operands = 0 : i64, tpu.core_type = #tpu.core_type<tc>, window_params = [{transform_indices = @transform_0, window_bounds = array<i64: 64, 128>}, {transform_indices = @transform_1, window_bounds = array<i64: 128, 1024>}, {transform_indices = @transform_2, window_bounds = array<i64: 1, 1024>}, {transform_indices = @transform_3, window_bounds = array<i64: 64, 1024>}]} {
    %c0 = arith.constant 0 : index
    %c0_0 = arith.constant 0 : index
    %0 = vector.load %arg2[%c0, %c0_0] : memref<64x128xf32, #tpu.memory_space<vmem>>, vector<64x128xf32>
    %1 = arith.truncf %0 : vector<64x128xf32> to vector<64x128xbf16>
    %c0_1 = arith.constant 0 : index
    %c0_2 = arith.constant 0 : index
    %2 = vector.load %arg3[%c0_1, %c0_2] : memref<128x1024xbf16, #tpu.memory_space<vmem>>, vector<128x1024xbf16>
    %cst = arith.constant dense<0.000000e+00> : vector<64x1024xf32>
    %3 = tpu.matmul %1, %2, %cst {dimension_numbers = #tpu.dot_dimension_numbers<[1], [0], [0], [1], [0, 0, 1, 1], [], []>} : vector<64x128xbf16>, vector<128x1024xbf16>, vector<64x1024xf32> -> vector<64x1024xf32>
    %c0_3 = arith.constant 0 : index
    %c0_4 = arith.constant 0 : index
    %4 = vector.load %arg4[%c0_3, %c0_4] : memref<1x1024xf32, #tpu.memory_space<vmem>>, vector<1x1024xf32>
    %5 = vector.broadcast %4 : vector<1x1024xf32> to vector<64x1024xf32>
    %6 = arith.addf %3, %5 : vector<64x1024xf32>
    %c0_5 = arith.constant 0 : index
    %c0_6 = arith.constant 0 : index
    %7 = vector.load %arg5[%c0_5, %c0_6] : memref<64x1024xf32, #tpu.memory_space<vmem>>, vector<64x1024xf32>
    tpu.vector_store %arg5[%c0_5, %c0_6], %6 {strides = array<i32>} : memref<64x1024xf32, #tpu.memory_space<vmem>>, vector<64x1024xf32>,
    return
  }
  func.func @transform_0(%arg0: i32, %arg1: i32) -> (i32, i32) {
    %c0_i32 = arith.constant 0 : i32
    %c0_i32_0 = arith.constant 0 : i32
    return %arg0, %c0_i32 : i32, i32
  }
  func.func @transform_1(%arg0: i32, %arg1: i32) -> (i32, i32) {
    %c0_i32 = arith.constant 0 : i32
    %c0_i32_0 = arith.constant 0 : i32
    return %c0_i32, %arg1 : i32, i32
  }
  func.func @transform_2(%arg0: i32, %arg1: i32) -> (i32, i32) {
    %c0_i32 = arith.constant 0 : i32
    %c0_i32_0 = arith.constant 0 : i32
    return %c0_i32, %arg1 : i32, i32
  }
  func.func @transform_3(%arg0: i32, %arg1: i32) -> (i32, i32) {
    %c0_i32 = arith.constant 0 : i32
    return %arg0, %arg1 : i32, i32
  }
}

module attributes {stable_mosaic.version = 11 : i64} {
  func.func @_linear_kernel(%arg0: i32, %arg1: i32, %arg2: memref<64x128xf32, #tpu.memory_space<vmem>>, %arg3: memref<128x128xbf16, #tpu.memory_space<vmem>>, %arg4: memref<1x128xf32, #tpu.memory_space<vmem>>, %arg5: memref<64x128xf32, #tpu.memory_space<vmem>>) attributes {dimension_semantics = [#tpu.dimension_semantics<parallel>, #tpu.dimension_semantics<parallel>], iteration_bounds = array<i64: 1, 1>, scalar_prefetch = 0 : i64, scratch_operands = 0 : i64, tpu.core_type = #tpu.core_type<tc>, window_params = [{transform_indices = @transform_0, window_bounds = array<i64: 64, 128>}, {transform_indices = @transform_1, window_bounds = array<i64: 128, 128>}, {transform_indices = @transform_2, window_bounds = array<i64: 1, 128>}, {transform_indices = @transform_3, window_bounds = array<i64: 64, 128>}]} {
    %c0 = arith.constant 0 : index
    %c0_0 = arith.constant 0 : index
    %0 = vector.load %arg2[%c0, %c0_0] : memref<64x128xf32, #tpu.memory_space<vmem>>, vector<64x128xf32>
    %1 = arith.truncf %0 : vector<64x128xf32> to vector<64x128xbf16>
    %c0_1 = arith.constant 0 : index
    %c0_2 = arith.constant 0 : index
    %2 = vector.load %arg3[%c0_1, %c0_2] : memref<128x128xbf16, #tpu.memory_space<vmem>>, vector<128x128xbf16>
    %cst = arith.constant dense<0.000000e+00> : vector<64x128xf32>
    %3 = tpu.matmul %1, %2, %cst {dimension_numbers = #tpu.dot_dimension_numbers<[1], [0], [0], [1], [0, 0, 1, 1], [], []>} : vector<64x128xbf16>, vector<128x128xbf16>, vector<64x128xf32> -> vector<64x128xf32>
    %c0_3 = arith.constant 0 : index
    %c0_4 = arith.constant 0 : index
    %4 = vector.load %arg4[%c0_3, %c0_4] : memref<1x128xf32, #tpu.memory_space<vmem>>, vector<1x128xf32>
    %5 = vector.broadcast %4 : vector<1x128xf32> to vector<64x128xf32>
    %6 = arith.addf %3, %5 : vector<64x128xf32>
    %7 = math.tanh %6 : vector<64x128xf32>
    %c0_5 = arith.constant 0 : index
    %c0_6 = arith.constant 0 : index
    %8 = vector.load %arg5[%c0_5, %c0_6] : memref<64x128xf32, #tpu.memory_space<vmem>>, vector<64x128xf32>
    tpu.vector_store %arg5[%c0_5, %c0_6], %7 {strides = array<i32>} : memref<64x128xf32, #tpu.memory_space<vmem>>, vector<64x128xf32>,
    return
  }
  func.func @transform_0(%arg0: i32, %arg1: i32) -> (i32, i32) {
    %c0_i32 = arith.constant 0 : i32
    %c0_i32_0 = arith.constant 0 : i32
    return %arg0, %c0_i32 : i32, i32
  }
  func.func @transform_1(%arg0: i32, %arg1: i32) -> (i32, i32) {
    %c0_i32 = arith.constant 0 : i32
    %c0_i32_0 = arith.constant 0 : i32
    return %c0_i32, %arg1 : i32, i32
  }
  func.func @transform_2(%arg0: i32, %arg1: i32) -> (i32, i32) {
    %c0_i32 = arith.constant 0 : i32
    %c0_i32_0 = arith.constant 0 : i32
    return %c0_i32, %arg1 : i32, i32
  }
  func.func @transform_3(%arg0: i32, %arg1: i32) -> (i32, i32) {
    %c0_i32 = arith.constant 0 : i32
    return %arg0, %arg1 : i32, i32
  }
}

module attributes {stable_mosaic.version = 11 : i64} {
  func.func @_bilstm_kernel(%arg0: i32, %arg1: memref<8x8x1024xf32, #tpu.memory_space<vmem>>, %arg2: memref<2x128x512xbf16, #tpu.memory_space<vmem>>, %arg3: memref<8x8x128xf32, #tpu.memory_space<vmem>>, %arg4: memref<8x8x128xf32, #tpu.memory_space<vmem>>) attributes {dimension_semantics = [#tpu.dimension_semantics<arbitrary>], iteration_bounds = array<i64: 1>, scalar_prefetch = 0 : i64, scratch_operands = 0 : i64, tpu.core_type = #tpu.core_type<tc>, window_params = [{pipeline_mode = #tpu.pipeline_mode<synchronous>, transform_indices = @transform_0, window_bounds = array<i64: 8, 8, 1024>}, {pipeline_mode = #tpu.pipeline_mode<synchronous>, transform_indices = @transform_1, window_bounds = array<i64: 2, 128, 512>}, {pipeline_mode = #tpu.pipeline_mode<synchronous>, transform_indices = @transform_2, window_bounds = array<i64: 8, 8, 128>}, {pipeline_mode = #tpu.pipeline_mode<synchronous>, transform_indices = @transform_3, window_bounds = array<i64: 8, 8, 128>}]} {
    %cst = arith.constant 0.000000e+00 : f32
    %0 = vector.broadcast %cst : f32 to vector<8x128xf32>
    %c0_i32 = arith.constant 0 : i32
    %c8_i32 = arith.constant 8 : i32
    %1 = arith.addi %c0_i32, %c8_i32 : i32
    %c1_i32 = arith.constant 1 : i32
    %2:4 = scf.for %arg5 = %c0_i32 to %1 step %c1_i32 iter_args(%arg6 = %0, %arg7 = %0, %arg8 = %0, %arg9 = %0) -> (vector<8x128xf32>, vector<8x128xf32>, vector<8x128xf32>, vector<8x128xf32>)  : i32 {
      %c7_i32 = arith.constant 7 : i32
      %3 = arith.subi %c7_i32, %arg5 : i32
      %4 = arith.index_cast %arg5 : i32 to index
      %c0 = arith.constant 0 : index
      %c0_1 = arith.constant 0 : index
      %5 = vector.load %arg1[%4, %c0, %c0_1] : memref<8x8x1024xf32, #tpu.memory_space<vmem>>, vector<1x8x1024xf32>
      %6 = vector.shape_cast %5 : vector<1x8x1024xf32> to vector<8x1024xf32>
      %7 = arith.index_cast %3 : i32 to index
      %c0_2 = arith.constant 0 : index
      %c0_3 = arith.constant 0 : index
      %8 = vector.load %arg1[%7, %c0_2, %c0_3] : memref<8x8x1024xf32, #tpu.memory_space<vmem>>, vector<1x8x1024xf32>
      %9 = vector.shape_cast %8 : vector<1x8x1024xf32> to vector<8x1024xf32>
      %10 = vector.extract_strided_slice %6 {offsets = [0, 0], sizes = [8, 512], strides = [1, 1]} : vector<8x1024xf32> to vector<8x512xf32>
      %c0_4 = arith.constant 0 : index
      %c0_5 = arith.constant 0 : index
      %c0_6 = arith.constant 0 : index
      %11 = vector.load %arg2[%c0_4, %c0_5, %c0_6] : memref<2x128x512xbf16, #tpu.memory_space<vmem>>, vector<1x128x512xbf16>
      %12 = vector.shape_cast %11 : vector<1x128x512xbf16> to vector<128x512xbf16>
      %13 = arith.truncf %arg6 : vector<8x128xf32> to vector<8x128xbf16>
      %cst_7 = arith.constant dense<0.000000e+00> : vector<8x512xf32>
      %14 = tpu.matmul %13, %12, %cst_7 {dimension_numbers = #tpu.dot_dimension_numbers<[1], [0], [0], [1], [0, 0, 1, 1], [], []>} : vector<8x128xbf16>, vector<128x512xbf16>, vector<8x512xf32> -> vector<8x512xf32>
      %15 = arith.addf %10, %14 : vector<8x512xf32>
      %16 = vector.extract_strided_slice %15 {offsets = [0, 0], sizes = [8, 128], strides = [1, 1]} : vector<8x512xf32> to vector<8x128xf32>
      %17 = arith.negf %16 : vector<8x128xf32>
      %18 = math.exp %17 : vector<8x128xf32>
      %cst_8 = arith.constant 1.000000e+00 : f32
      %19 = vector.broadcast %cst_8 : f32 to vector<8x128xf32>
      %20 = arith.addf %19, %18 : vector<8x128xf32>
      %21 = arith.divf %19, %20 : vector<8x128xf32>
      %22 = vector.extract_strided_slice %15 {offsets = [0, 128], sizes = [8, 128], strides = [1, 1]} : vector<8x512xf32> to vector<8x128xf32>
      %23 = arith.negf %22 : vector<8x128xf32>
      %24 = math.exp %23 : vector<8x128xf32>
      %cst_9 = arith.constant 1.000000e+00 : f32
      %25 = vector.broadcast %cst_9 : f32 to vector<8x128xf32>
      %26 = arith.addf %25, %24 : vector<8x128xf32>
      %27 = arith.divf %25, %26 : vector<8x128xf32>
      %28 = vector.extract_strided_slice %15 {offsets = [0, 256], sizes = [8, 128], strides = [1, 1]} : vector<8x512xf32> to vector<8x128xf32>
      %29 = math.tanh %28 : vector<8x128xf32>
      %30 = vector.extract_strided_slice %15 {offsets = [0, 384], sizes = [8, 128], strides = [1, 1]} : vector<8x512xf32> to vector<8x128xf32>
      %31 = arith.negf %30 : vector<8x128xf32>
      %32 = math.exp %31 : vector<8x128xf32>
      %cst_10 = arith.constant 1.000000e+00 : f32
      %33 = vector.broadcast %cst_10 : f32 to vector<8x128xf32>
      %34 = arith.addf %33, %32 : vector<8x128xf32>
      %35 = arith.divf %33, %34 : vector<8x128xf32>
      %36 = arith.mulf %27, %arg7 : vector<8x128xf32>
      %37 = arith.mulf %21, %29 : vector<8x128xf32>
      %38 = arith.addf %36, %37 : vector<8x128xf32>
      %39 = math.tanh %38 : vector<8x128xf32>
      %40 = arith.mulf %35, %39 : vector<8x128xf32>
      %41 = vector.extract_strided_slice %9 {offsets = [0, 512], sizes = [8, 512], strides = [1, 1]} : vector<8x1024xf32> to vector<8x512xf32>
      %c1 = arith.constant 1 : index
      %c0_11 = arith.constant 0 : index
      %c0_12 = arith.constant 0 : index
      %42 = vector.load %arg2[%c1, %c0_11, %c0_12] : memref<2x128x512xbf16, #tpu.memory_space<vmem>>, vector<1x128x512xbf16>
      %43 = vector.shape_cast %42 : vector<1x128x512xbf16> to vector<128x512xbf16>
      %44 = arith.truncf %arg8 : vector<8x128xf32> to vector<8x128xbf16>
      %cst_13 = arith.constant dense<0.000000e+00> : vector<8x512xf32>
      %45 = tpu.matmul %44, %43, %cst_13 {dimension_numbers = #tpu.dot_dimension_numbers<[1], [0], [0], [1], [0, 0, 1, 1], [], []>} : vector<8x128xbf16>, vector<128x512xbf16>, vector<8x512xf32> -> vector<8x512xf32>
      %46 = arith.addf %41, %45 : vector<8x512xf32>
      %47 = vector.extract_strided_slice %46 {offsets = [0, 0], sizes = [8, 128], strides = [1, 1]} : vector<8x512xf32> to vector<8x128xf32>
      %48 = arith.negf %47 : vector<8x128xf32>
      %49 = math.exp %48 : vector<8x128xf32>
      %cst_14 = arith.constant 1.000000e+00 : f32
      %50 = vector.broadcast %cst_14 : f32 to vector<8x128xf32>
      %51 = arith.addf %50, %49 : vector<8x128xf32>
      %52 = arith.divf %50, %51 : vector<8x128xf32>
      %53 = vector.extract_strided_slice %46 {offsets = [0, 128], sizes = [8, 128], strides = [1, 1]} : vector<8x512xf32> to vector<8x128xf32>
      %54 = arith.negf %53 : vector<8x128xf32>
      %55 = math.exp %54 : vector<8x128xf32>
      %cst_15 = arith.constant 1.000000e+00 : f32
      %56 = vector.broadcast %cst_15 : f32 to vector<8x128xf32>
      %57 = arith.addf %56, %55 : vector<8x128xf32>
      %58 = arith.divf %56, %57 : vector<8x128xf32>
      %59 = vector.extract_strided_slice %46 {offsets = [0, 256], sizes = [8, 128], strides = [1, 1]} : vector<8x512xf32> to vector<8x128xf32>
      %60 = math.tanh %59 : vector<8x128xf32>
      %61 = vector.extract_strided_slice %46 {offsets = [0, 384], sizes = [8, 128], strides = [1, 1]} : vector<8x512xf32> to vector<8x128xf32>
      %62 = arith.negf %61 : vector<8x128xf32>
      %63 = math.exp %62 : vector<8x128xf32>
      %cst_16 = arith.constant 1.000000e+00 : f32
      %64 = vector.broadcast %cst_16 : f32 to vector<8x128xf32>
      %65 = arith.addf %64, %63 : vector<8x128xf32>
      %66 = arith.divf %64, %65 : vector<8x128xf32>
      %67 = arith.mulf %58, %arg9 : vector<8x128xf32>
      %68 = arith.mulf %52, %60 : vector<8x128xf32>
      %69 = arith.addf %67, %68 : vector<8x128xf32>
      %70 = math.tanh %69 : vector<8x128xf32>
      %71 = arith.mulf %66, %70 : vector<8x128xf32>
      %72 = arith.index_cast %arg5 : i32 to index
      %c0_17 = arith.constant 0 : index
      %c0_18 = arith.constant 0 : index
      %73 = vector.load %arg3[%72, %c0_17, %c0_18] : memref<8x8x128xf32, #tpu.memory_space<vmem>>, vector<1x8x128xf32>
      %74 = vector.shape_cast %73 : vector<1x8x128xf32> to vector<8x128xf32>
      %75 = vector.shape_cast %40 : vector<8x128xf32> to vector<1x8x128xf32>
      tpu.vector_store %arg3[%72, %c0_17, %c0_18], %75 {strides = array<i32>} : memref<8x8x128xf32, #tpu.memory_space<vmem>>, vector<1x8x128xf32>,
      %76 = arith.index_cast %3 : i32 to index
      %c0_19 = arith.constant 0 : index
      %c0_20 = arith.constant 0 : index
      %77 = vector.load %arg4[%76, %c0_19, %c0_20] : memref<8x8x128xf32, #tpu.memory_space<vmem>>, vector<1x8x128xf32>
      %78 = vector.shape_cast %77 : vector<1x8x128xf32> to vector<8x128xf32>
      %79 = vector.shape_cast %71 : vector<8x128xf32> to vector<1x8x128xf32>
      tpu.vector_store %arg4[%76, %c0_19, %c0_20], %79 {strides = array<i32>} : memref<8x8x128xf32, #tpu.memory_space<vmem>>, vector<1x8x128xf32>,
      scf.yield %40, %38, %71, %69 : vector<8x128xf32>, vector<8x128xf32>, vector<8x128xf32>, vector<8x128xf32>
    }
    %c8_i32_0 = arith.constant 8 : i32
    return
  }
  func.func @transform_0(%arg0: i32) -> (i32, i32, i32) {
    %c0_i32 = arith.constant 0 : i32
    %c0_i32_0 = arith.constant 0 : i32
    %c0_i32_1 = arith.constant 0 : i32
    %c0_i32_2 = arith.constant 0 : i32
    return %c0_i32, %c0_i32_0, %c0_i32_1 : i32, i32, i32
  }
  func.func @transform_1(%arg0: i32) -> (i32, i32, i32) {
    %c0_i32 = arith.constant 0 : i32
    %c0_i32_0 = arith.constant 0 : i32
    %c0_i32_1 = arith.constant 0 : i32
    %c0_i32_2 = arith.constant 0 : i32
    return %c0_i32, %c0_i32_0, %c0_i32_1 : i32, i32, i32
  }
  func.func @transform_2(%arg0: i32) -> (i32, i32, i32) {
    %c0_i32 = arith.constant 0 : i32
    %c0_i32_0 = arith.constant 0 : i32
    %c0_i32_1 = arith.constant 0 : i32
    %c0_i32_2 = arith.constant 0 : i32
    return %c0_i32, %c0_i32_0, %c0_i32_1 : i32, i32, i32
  }
  func.func @transform_3(%arg0: i32) -> (i32, i32, i32) {
    %c0_i32 = arith.constant 0 : i32
    %c0_i32_0 = arith.constant 0 : i32
    %c0_i32_1 = arith.constant 0 : i32
    %c0_i32_2 = arith.constant 0 : i32
    return %c0_i32, %c0_i32_0, %c0_i32_1 : i32, i32, i32
  }
}

module attributes {stable_mosaic.version = 11 : i64} {
  func.func @_cls_kernel(%arg0: i32, %arg1: memref<64x128xf32, #tpu.memory_space<vmem>>, %arg2: memref<64x128xf32, #tpu.memory_space<vmem>>, %arg3: memref<2x128x128xbf16, #tpu.memory_space<vmem>>, %arg4: memref<1x128xf32, #tpu.memory_space<vmem>>, %arg5: memref<64x128xf32, #tpu.memory_space<vmem>>) attributes {dimension_semantics = [#tpu.dimension_semantics<parallel>], iteration_bounds = array<i64: 1>, scalar_prefetch = 0 : i64, scratch_operands = 0 : i64, tpu.core_type = #tpu.core_type<tc>, window_params = [{transform_indices = @transform_0, window_bounds = array<i64: 64, 128>}, {transform_indices = @transform_1, window_bounds = array<i64: 64, 128>}, {pipeline_mode = #tpu.pipeline_mode<synchronous>, transform_indices = @transform_2, window_bounds = array<i64: 2, 128, 128>}, {pipeline_mode = #tpu.pipeline_mode<synchronous>, transform_indices = @transform_3, window_bounds = array<i64: 1, 128>}, {transform_indices = @transform_4, window_bounds = array<i64: 64, 128>}]} {
    %c0 = arith.constant 0 : index
    %c0_0 = arith.constant 0 : index
    %0 = vector.load %arg1[%c0, %c0_0] : memref<64x128xf32, #tpu.memory_space<vmem>>, vector<64x128xf32>
    %1 = arith.truncf %0 : vector<64x128xf32> to vector<64x128xbf16>
    %c0_1 = arith.constant 0 : index
    %c0_2 = arith.constant 0 : index
    %c0_3 = arith.constant 0 : index
    %2 = vector.load %arg3[%c0_1, %c0_2, %c0_3] : memref<2x128x128xbf16, #tpu.memory_space<vmem>>, vector<1x128x128xbf16>
    %3 = vector.shape_cast %2 : vector<1x128x128xbf16> to vector<128x128xbf16>
    %cst = arith.constant dense<0.000000e+00> : vector<64x128xf32>
    %4 = tpu.matmul %1, %3, %cst {dimension_numbers = #tpu.dot_dimension_numbers<[1], [0], [0], [1], [0, 0, 1, 1], [], []>} : vector<64x128xbf16>, vector<128x128xbf16>, vector<64x128xf32> -> vector<64x128xf32>
    %c0_4 = arith.constant 0 : index
    %c0_5 = arith.constant 0 : index
    %5 = vector.load %arg2[%c0_4, %c0_5] : memref<64x128xf32, #tpu.memory_space<vmem>>, vector<64x128xf32>
    %6 = arith.truncf %5 : vector<64x128xf32> to vector<64x128xbf16>
    %c1 = arith.constant 1 : index
    %c0_6 = arith.constant 0 : index
    %c0_7 = arith.constant 0 : index
    %7 = vector.load %arg3[%c1, %c0_6, %c0_7] : memref<2x128x128xbf16, #tpu.memory_space<vmem>>, vector<1x128x128xbf16>
    %8 = vector.shape_cast %7 : vector<1x128x128xbf16> to vector<128x128xbf16>
    %cst_8 = arith.constant dense<0.000000e+00> : vector<64x128xf32>
    %9 = tpu.matmul %6, %8, %cst_8 {dimension_numbers = #tpu.dot_dimension_numbers<[1], [0], [0], [1], [0, 0, 1, 1], [], []>} : vector<64x128xbf16>, vector<128x128xbf16>, vector<64x128xf32> -> vector<64x128xf32>
    %10 = arith.addf %4, %9 : vector<64x128xf32>
    %c0_9 = arith.constant 0 : index
    %c0_10 = arith.constant 0 : index
    %11 = vector.load %arg4[%c0_9, %c0_10] : memref<1x128xf32, #tpu.memory_space<vmem>>, vector<1x128xf32>
    %12 = vector.broadcast %11 : vector<1x128xf32> to vector<64x128xf32>
    %13 = arith.addf %10, %12 : vector<64x128xf32>
    %c0_11 = arith.constant 0 : index
    %c0_12 = arith.constant 0 : index
    %14 = vector.load %arg5[%c0_11, %c0_12] : memref<64x128xf32, #tpu.memory_space<vmem>>, vector<64x128xf32>
    tpu.vector_store %arg5[%c0_11, %c0_12], %13 {strides = array<i32>} : memref<64x128xf32, #tpu.memory_space<vmem>>, vector<64x128xf32>,
    return
  }
  func.func @transform_0(%arg0: i32) -> (i32, i32) {
    %c0_i32 = arith.constant 0 : i32
    %c0_i32_0 = arith.constant 0 : i32
    return %arg0, %c0_i32 : i32, i32
  }
  func.func @transform_1(%arg0: i32) -> (i32, i32) {
    %c0_i32 = arith.constant 0 : i32
    %c0_i32_0 = arith.constant 0 : i32
    return %arg0, %c0_i32 : i32, i32
  }
  func.func @transform_2(%arg0: i32) -> (i32, i32, i32) {
    %c0_i32 = arith.constant 0 : i32
    %c0_i32_0 = arith.constant 0 : i32
    %c0_i32_1 = arith.constant 0 : i32
    %c0_i32_2 = arith.constant 0 : i32
    return %c0_i32, %c0_i32_0, %c0_i32_1 : i32, i32, i32
  }
  func.func @transform_3(%arg0: i32) -> (i32, i32) {
    %c0_i32 = arith.constant 0 : i32
    %c0_i32_0 = arith.constant 0 : i32
    %c0_i32_1 = arith.constant 0 : i32
    return %c0_i32, %c0_i32_0 : i32, i32
  }
  func.func @transform_4(%arg0: i32) -> (i32, i32) {
    %c0_i32 = arith.constant 0 : i32
    %c0_i32_0 = arith.constant 0 : i32
    return %arg0, %c0_i32 : i32, i32
  }
}

module attributes {stable_mosaic.version = 11 : i64} {
  func.func @_crf_kernel(%arg0: i32, %arg1: memref<8x8x128xf32, #tpu.memory_space<vmem>>, %arg2: memref<8x8x1xi32, #tpu.memory_space<vmem>>, %arg3: memref<8x8x1xf32, #tpu.memory_space<vmem>>, %arg4: memref<128x128xf32, #tpu.memory_space<vmem>>, %arg5: memref<128x128xf32, #tpu.memory_space<vmem>>, %arg6: memref<1x128xf32, #tpu.memory_space<vmem>>, %arg7: memref<1x128xf32, #tpu.memory_space<vmem>>, %arg8: memref<1x1x1xf32, #tpu.memory_space<vmem>>, %arg9: memref<1x1x1xf32, #tpu.memory_space<vmem>>) attributes {dimension_semantics = [#tpu.dimension_semantics<parallel>], iteration_bounds = array<i64: 1>, scalar_prefetch = 0 : i64, scratch_operands = 0 : i64, tpu.core_type = #tpu.core_type<tc>, window_params = [{transform_indices = @transform_0, window_bounds = array<i64: 8, 8, 128>}, {transform_indices = @transform_1, window_bounds = array<i64: 8, 8, 1>}, {transform_indices = @transform_2, window_bounds = array<i64: 8, 8, 1>}, {pipeline_mode = #tpu.pipeline_mode<synchronous>, transform_indices = @transform_3, window_bounds = array<i64: 128, 128>}, {pipeline_mode = #tpu.pipeline_mode<synchronous>, transform_indices = @transform_4, window_bounds = array<i64: 128, 128>}, {pipeline_mode = #tpu.pipeline_mode<synchronous>, transform_indices = @transform_5, window_bounds = array<i64: 1, 128>}, {pipeline_mode = #tpu.pipeline_mode<synchronous>, transform_indices = @transform_6, window_bounds = array<i64: 1, 128>}, {transform_indices = @transform_7, window_bounds = array<i64: 1, 1, 1>}, {transform_indices = @transform_8, window_bounds = array<i64: 1, 1, 1>}]} {
    %c0 = arith.constant 0 : index
    %c0_0 = arith.constant 0 : index
    %0 = vector.load %arg4[%c0, %c0_0] : memref<128x128xf32, #tpu.memory_space<vmem>>, vector<128x128xf32>
    %c0_1 = arith.constant 0 : index
    %c0_2 = arith.constant 0 : index
    %1 = vector.load %arg5[%c0_1, %c0_2] : memref<128x128xf32, #tpu.memory_space<vmem>>, vector<128x128xf32>
    %c0_3 = arith.constant 0 : index
    %c0_4 = arith.constant 0 : index
    %2 = vector.load %arg6[%c0_3, %c0_4] : memref<1x128xf32, #tpu.memory_space<vmem>>, vector<1x128xf32>
    %c0_5 = arith.constant 0 : index
    %c0_6 = arith.constant 0 : index
    %3 = vector.load %arg7[%c0_5, %c0_6] : memref<1x128xf32, #tpu.memory_space<vmem>>, vector<1x128xf32>
    %c0_7 = arith.constant 0 : index
    %c0_8 = arith.constant 0 : index
    %c0_9 = arith.constant 0 : index
    %4 = vector.load %arg3[%c0_7, %c0_8, %c0_9] : memref<8x8x1xf32, #tpu.memory_space<vmem>>, vector<8x8x1xf32>
    %5 = tpu.iota {dimensions = array<i32: 2>} : vector<8x8x128xi32>
    %c0_10 = arith.constant 0 : index
    %c0_11 = arith.constant 0 : index
    %c0_12 = arith.constant 0 : index
    %6 = vector.load %arg2[%c0_10, %c0_11, %c0_12] : memref<8x8x1xi32, #tpu.memory_space<vmem>>, vector<8x8x1xi32>
    %7 = vector.broadcast %6 : vector<8x8x1xi32> to vector<8x8x128xi32>
    %8 = arith.cmpi eq, %5, %7 : vector<8x8x128xi32>
    %9 = arith.extui %8 : vector<8x8x128xi1> to vector<8x8x128xi32>
    %10 = arith.sitofp %9 : vector<8x8x128xi32> to vector<8x8x128xf32>
    %c0_13 = arith.constant 0 : index
    %c0_14 = arith.constant 0 : index
    %c0_15 = arith.constant 0 : index
    %11 = vector.load %arg1[%c0_13, %c0_14, %c0_15] : memref<8x8x128xf32, #tpu.memory_space<vmem>>, vector<8x8x128xf32>
    %12 = arith.mulf %11, %10 : vector<8x8x128xf32>
    %cst = arith.constant dense<0.000000e+00> : vector<8x8xf32>
    %13 = vector.multi_reduction <add>, %12, %cst [2] : vector<8x8x128xf32> to vector<8x8xf32>
    %14 = vector.shape_cast %13 : vector<8x8xf32> to vector<8x8x1xf32>
    %15 = arith.mulf %14, %4 : vector<8x8x1xf32>
    %cst_16 = arith.constant dense<0.000000e+00> : vector<8x1xf32>
    %16 = vector.multi_reduction <add>, %15, %cst_16 [0] : vector<8x8x1xf32> to vector<8x1xf32>
    %17 = vector.extract_strided_slice %10 {offsets = [0, 0, 0], sizes = [7, 8, 128], strides = [1, 1, 1]} : vector<8x8x128xf32> to vector<7x8x128xf32>
    %18 = vector.shape_cast %17 : vector<7x8x128xf32> to vector<56x128xf32>
    %19 = vector.extract_strided_slice %10 {offsets = [1, 0, 0], sizes = [7, 8, 128], strides = [1, 1, 1]} : vector<8x8x128xf32> to vector<7x8x128xf32>
    %20 = vector.shape_cast %19 : vector<7x8x128xf32> to vector<56x128xf32>
    %cst_17 = arith.constant dense<0.000000e+00> : vector<56x128xf32>
    %21 = tpu.matmul %18, %0, %cst_17 {dimension_numbers = #tpu.dot_dimension_numbers<[1], [0], [0], [1], [0, 0, 1, 1], [], []>} : vector<56x128xf32>, vector<128x128xf32>, vector<56x128xf32> -> vector<56x128xf32>
    %22 = arith.mulf %21, %20 : vector<56x128xf32>
    %cst_18 = arith.constant dense<0.000000e+00> : vector<56xf32>
    %23 = vector.multi_reduction <add>, %22, %cst_18 [1] : vector<56x128xf32> to vector<56xf32>
    %24 = vector.shape_cast %23 : vector<56xf32> to vector<56x1xf32>
    %25 = vector.shape_cast %24 : vector<56x1xf32> to vector<7x8x1xf32>
    %26 = vector.extract_strided_slice %4 {offsets = [1, 0, 0], sizes = [7, 8, 1], strides = [1, 1, 1]} : vector<8x8x1xf32> to vector<7x8x1xf32>
    %27 = arith.mulf %25, %26 : vector<7x8x1xf32>
    %cst_19 = arith.constant dense<0.000000e+00> : vector<8x1xf32>
    %28 = vector.multi_reduction <add>, %27, %cst_19 [0] : vector<7x8x1xf32> to vector<8x1xf32>
    %29 = vector.extract_strided_slice %10 {offsets = [0, 0, 0], sizes = [1, 8, 128], strides = [1, 1, 1]} : vector<8x8x128xf32> to vector<1x8x128xf32>
    %30 = vector.shape_cast %29 : vector<1x8x128xf32> to vector<8x128xf32>
    %31 = vector.broadcast %2 : vector<1x128xf32> to vector<8x128xf32>
    %32 = arith.mulf %31, %30 : vector<8x128xf32>
    %cst_20 = arith.constant dense<0.000000e+00> : vector<8xf32>
    %33 = vector.multi_reduction <add>, %32, %cst_20 [1] : vector<8x128xf32> to vector<8xf32>
    %34 = vector.shape_cast %33 : vector<8xf32> to vector<8x1xf32>
    %35 = vector.broadcast %4 : vector<8x8x1xf32> to vector<8x8x128xf32>
    %36 = arith.mulf %35, %10 : vector<8x8x128xf32>
    %cst_21 = arith.constant dense<0.000000e+00> : vector<8x128xf32>
    %37 = vector.multi_reduction <add>, %36, %cst_21 [0] : vector<8x8x128xf32> to vector<8x128xf32>
    %38 = vector.extract_strided_slice %4 {offsets = [1, 0, 0], sizes = [7, 8, 1], strides = [1, 1, 1]} : vector<8x8x1xf32> to vector<7x8x1xf32>
    %39 = vector.extract_strided_slice %10 {offsets = [0, 0, 0], sizes = [7, 8, 128], strides = [1, 1, 1]} : vector<8x8x128xf32> to vector<7x8x128xf32>
    %40 = vector.broadcast %38 : vector<7x8x1xf32> to vector<7x8x128xf32>
    %41 = arith.mulf %40, %39 : vector<7x8x128xf32>
    %cst_22 = arith.constant dense<0.000000e+00> : vector<8x128xf32>
    %42 = vector.multi_reduction <add>, %41, %cst_22 [0] : vector<7x8x128xf32> to vector<8x128xf32>
    %43 = arith.subf %37, %42 : vector<8x128xf32>
    %44 = vector.broadcast %3 : vector<1x128xf32> to vector<8x128xf32>
    %45 = arith.mulf %43, %44 : vector<8x128xf32>
    %cst_23 = arith.constant dense<0.000000e+00> : vector<8xf32>
    %46 = vector.multi_reduction <add>, %45, %cst_23 [1] : vector<8x128xf32> to vector<8xf32>
    %47 = vector.shape_cast %46 : vector<8xf32> to vector<8x1xf32>
    %48 = arith.addf %34, %16 : vector<8x1xf32>
    %49 = arith.addf %48, %28 : vector<8x1xf32>
    %50 = arith.addf %49, %47 : vector<8x1xf32>
    %c0_24 = arith.constant 0 : index
    %c0_25 = arith.constant 0 : index
    %c0_26 = arith.constant 0 : index
    %51 = vector.load %arg1[%c0_24, %c0_25, %c0_26] : memref<8x8x128xf32, #tpu.memory_space<vmem>>, vector<1x8x128xf32>
    %52 = vector.shape_cast %51 : vector<1x8x128xf32> to vector<8x128xf32>
    %53 = vector.broadcast %2 : vector<1x128xf32> to vector<8x128xf32>
    %54 = arith.addf %53, %52 : vector<8x128xf32>
    %c1_i32 = arith.constant 1 : i32
    %c7_i32 = arith.constant 7 : i32
    %55 = arith.addi %c1_i32, %c7_i32 : i32
    %c1_i32_27 = arith.constant 1 : i32
    %56 = scf.for %arg10 = %c1_i32 to %55 step %c1_i32_27 iter_args(%arg11 = %54) -> (vector<8x128xf32>)  : i32 {
      %cst_39 = arith.constant dense<0xFF800000> : vector<8xf32>
      %85 = vector.multi_reduction <maximumf>, %arg11, %cst_39 [1] : vector<8x128xf32> to vector<8xf32>
      %86 = vector.shape_cast %85 : vector<8xf32> to vector<8x1xf32>
      %87 = vector.broadcast %86 : vector<8x1xf32> to vector<8x128xf32>
      %88 = arith.subf %arg11, %87 : vector<8x128xf32>
      %89 = math.exp %88 : vector<8x128xf32>
      %cst_40 = arith.constant dense<0.000000e+00> : vector<8x128xf32>
      %90 = tpu.matmul %89, %1, %cst_40 {dimension_numbers = #tpu.dot_dimension_numbers<[1], [0], [0], [1], [0, 0, 1, 1], [], []>} : vector<8x128xf32>, vector<128x128xf32>, vector<8x128xf32> -> vector<8x128xf32>
      %91 = arith.index_cast %arg10 : i32 to index
      %c0_41 = arith.constant 0 : index
      %c0_42 = arith.constant 0 : index
      %92 = vector.load %arg1[%91, %c0_41, %c0_42] : memref<8x8x128xf32, #tpu.memory_space<vmem>>, vector<1x8x128xf32>
      %93 = vector.shape_cast %92 : vector<1x8x128xf32> to vector<8x128xf32>
      %94 = vector.broadcast %86 : vector<8x1xf32> to vector<8x128xf32>
      %95 = arith.addf %93, %94 : vector<8x128xf32>
      %96 = math.log %90 : vector<8x128xf32>
      %97 = arith.addf %95, %96 : vector<8x128xf32>
      %cst_43 = arith.constant -1.000000e+09 : f32
      %98 = vector.broadcast %cst_43 : f32 to vector<8x128xf32>
      %99 = arith.maximumf %97, %98 : vector<8x128xf32>
      %100 = arith.index_cast %arg10 : i32 to index
      %c0_44 = arith.constant 0 : index
      %c0_45 = arith.constant 0 : index
      %101 = vector.load %arg3[%100, %c0_44, %c0_45] : memref<8x8x1xf32, #tpu.memory_space<vmem>>, vector<1x8x1xf32>
      %102 = vector.shape_cast %101 : vector<1x8x1xf32> to vector<8x1xf32>
      %cst_46 = arith.constant 0.000000e+00 : f32
      %103 = vector.broadcast %cst_46 : f32 to vector<8x1xf32>
      %104 = arith.cmpf ogt, %102, %103 : vector<8x1xf32>
      %105 = vector.shape_cast %104 : vector<8x1xi1> to vector<8x1xi1>
      %106 = vector.broadcast %105 : vector<8x1xi1> to vector<8x128xi1>
      %107 = arith.select %106, %99, %arg11 : vector<8x128xi1>, vector<8x128xf32>
      scf.yield %107 : vector<8x128xf32>
    }
    %c7_i32_28 = arith.constant 7 : i32
    %57 = vector.broadcast %3 : vector<1x128xf32> to vector<8x128xf32>
    %58 = arith.addf %56, %57 : vector<8x128xf32>
    %cst_29 = arith.constant dense<0xFF800000> : vector<8xf32>
    %59 = vector.multi_reduction <maximumf>, %58, %cst_29 [1] : vector<8x128xf32> to vector<8xf32>
    %60 = vector.shape_cast %59 : vector<8xf32> to vector<8x1xf32>
    %61 = vector.broadcast %60 : vector<8x1xf32> to vector<8x128xf32>
    %62 = arith.subf %58, %61 : vector<8x128xf32>
    %63 = math.exp %62 : vector<8x128xf32>
    %cst_30 = arith.constant dense<0.000000e+00> : vector<8xf32>
    %64 = vector.multi_reduction <add>, %63, %cst_30 [1] : vector<8x128xf32> to vector<8xf32>
    %65 = vector.shape_cast %64 : vector<8xf32> to vector<8x1xf32>
    %66 = math.log %65 : vector<8x1xf32>
    %67 = arith.addf %66, %60 : vector<8x1xf32>
    %68 = vector.extract_strided_slice %4 {offsets = [0, 0, 0], sizes = [1, 8, 1], strides = [1, 1, 1]} : vector<8x8x1xf32> to vector<1x8x1xf32>
    %69 = vector.shape_cast %68 : vector<1x8x1xf32> to vector<8x1xf32>
    %70 = arith.subf %50, %67 : vector<8x1xf32>
    %71 = arith.mulf %69, %70 : vector<8x1xf32>
    %72 = vector.shape_cast %71 : vector<8x1xf32> to vector<1x8x1xf32>
    %cst_31 = arith.constant dense<0.000000e+00> : vector<1xf32>
    %73 = vector.multi_reduction <add>, %72, %cst_31 [1, 2] : vector<1x8x1xf32> to vector<1xf32>
    %74 = vector.shape_cast %73 : vector<1xf32> to vector<1x1x1xf32>
    %75 = vector.extract %74[0, 0, 0] : f32 from vector<1x1x1xf32>
    %76 = vector.broadcast %75 : f32 to vector<1x1xf32>
    %77 = vector.shape_cast %76 : vector<1x1xf32> to vector<1x1x1xf32>
    %c0_32 = arith.constant 0 : index
    %c0_33 = arith.constant 0 : index
    %c0_34 = arith.constant 0 : index
    %78 = vector.load %arg8[%c0_32, %c0_33, %c0_34] : memref<1x1x1xf32, #tpu.memory_space<vmem>>, vector<1x1x1xf32>
    tpu.vector_store %arg8[%c0_32, %c0_33, %c0_34], %77 {strides = array<i32>} : memref<1x1x1xf32, #tpu.memory_space<vmem>>, vector<1x1x1xf32>,
    %79 = vector.shape_cast %4 : vector<8x8x1xf32> to vector<1x8x8x1xf32>
    %cst_35 = arith.constant dense<0.000000e+00> : vector<1xf32>
    %80 = vector.multi_reduction <add>, %79, %cst_35 [1, 2, 3] : vector<1x8x8x1xf32> to vector<1xf32>
    %81 = vector.shape_cast %80 : vector<1xf32> to vector<1x1x1x1xf32>
    %82 = vector.extract %81[0, 0, 0, 0] : f32 from vector<1x1x1x1xf32>
    %83 = vector.broadcast %82 : f32 to vector<1x1x1xf32>
    %c0_36 = arith.constant 0 : index
    %c0_37 = arith.constant 0 : index
    %c0_38 = arith.constant 0 : index
    %84 = vector.load %arg9[%c0_36, %c0_37, %c0_38] : memref<1x1x1xf32, #tpu.memory_space<vmem>>, vector<1x1x1xf32>
    tpu.vector_store %arg9[%c0_36, %c0_37, %c0_38], %83 {strides = array<i32>} : memref<1x1x1xf32, #tpu.memory_space<vmem>>, vector<1x1x1xf32>,
    return
  }
  func.func @transform_0(%arg0: i32) -> (i32, i32, i32) {
    %c0_i32 = arith.constant 0 : i32
    %c0_i32_0 = arith.constant 0 : i32
    %c0_i32_1 = arith.constant 0 : i32
    return %c0_i32, %arg0, %c0_i32_0 : i32, i32, i32
  }
  func.func @transform_1(%arg0: i32) -> (i32, i32, i32) {
    %c0_i32 = arith.constant 0 : i32
    %c0_i32_0 = arith.constant 0 : i32
    %c0_i32_1 = arith.constant 0 : i32
    return %c0_i32, %arg0, %c0_i32_0 : i32, i32, i32
  }
  func.func @transform_2(%arg0: i32) -> (i32, i32, i32) {
    %c0_i32 = arith.constant 0 : i32
    %c0_i32_0 = arith.constant 0 : i32
    %c0_i32_1 = arith.constant 0 : i32
    return %c0_i32, %arg0, %c0_i32_0 : i32, i32, i32
  }
  func.func @transform_3(%arg0: i32) -> (i32, i32) {
    %c0_i32 = arith.constant 0 : i32
    %c0_i32_0 = arith.constant 0 : i32
    %c0_i32_1 = arith.constant 0 : i32
    return %c0_i32, %c0_i32_0 : i32, i32
  }
  func.func @transform_4(%arg0: i32) -> (i32, i32) {
    %c0_i32 = arith.constant 0 : i32
    %c0_i32_0 = arith.constant 0 : i32
    %c0_i32_1 = arith.constant 0 : i32
    return %c0_i32, %c0_i32_0 : i32, i32
  }
  func.func @transform_5(%arg0: i32) -> (i32, i32) {
    %c0_i32 = arith.constant 0 : i32
    %c0_i32_0 = arith.constant 0 : i32
    %c0_i32_1 = arith.constant 0 : i32
    return %c0_i32, %c0_i32_0 : i32, i32
  }
  func.func @transform_6(%arg0: i32) -> (i32, i32) {
    %c0_i32 = arith.constant 0 : i32
    %c0_i32_0 = arith.constant 0 : i32
    %c0_i32_1 = arith.constant 0 : i32
    return %c0_i32, %c0_i32_0 : i32, i32
  }
  func.func @transform_7(%arg0: i32) -> (i32, i32, i32) {
    %c0_i32 = arith.constant 0 : i32
    %c0_i32_0 = arith.constant 0 : i32
    %c0_i32_1 = arith.constant 0 : i32
    return %arg0, %c0_i32, %c0_i32_0 : i32, i32, i32
  }
  func.func @transform_8(%arg0: i32) -> (i32, i32, i32) {
    %c0_i32 = arith.constant 0 : i32
    %c0_i32_0 = arith.constant 0 : i32
    %c0_i32_1 = arith.constant 0 : i32
    return %arg0, %c0_i32, %c0_i32_0 : i32, i32, i32
  }
}

</mosaic_0001>

<llo_original>
// kernel: bertcrf_forward.6
$region0: #{bertcrf_forward.6}
  #allocation0 [shape = 'u32[]', space=smem, size = 0x4, offset = 0x4, fixed_abs, tag = 'smem constant byte address 0x4 - core index']
  #allocation1 [shape = 'u32[144,128]{1,0:T(1,128)}', space=vmem, size = 0x12000, scoped, tag = 'internal scratch']
  %s0 = inlined_call_operand.vmem [shape: f32[64,128], index: 0, kind: input, shape index: {}]
  %s1 = inlined_call_operand.vmem [shape: bf16[128,1024], index: 1, kind: input, shape index: {}]
  %s2 = inlined_call_operand.vmem [shape: f32[1,1024], index: 2, kind: input, shape index: {}]
  %s3 = inlined_call_operand.vmem [shape: f32[64,1024], index: 3, kind: output, shape index: {}]
  %s4 = sld [smem:[#allocation0]]
  $region22: #{bertcrf_forward.6} parent=0
    _
  %s6 = ssub.s32 1, %s4
  %s7 = scalar_select 0, %s6, %s4
  // Predicated region
  $region2: #{bertcrf_forward.6} parent=0 // pred_check
    _
  $region3: #{bertcrf_forward.6} parent=0 // pred_check_branch
    %9 = sbr.rel (0) target = $region5
  $region4: #{bertcrf_forward.6} parent=0 // pred_region
    _
  $region5: #{bertcrf_forward.6} parent=0 // pred_fallthru
    _
  // Predicated region
  $region6: #{bertcrf_forward.6} parent=0 // pred_check
    _
  $region7: #{bertcrf_forward.6} parent=0 // pred_check_branch
    %11 = sbr.rel (0) target = $region9
  $region8: #{bertcrf_forward.6} parent=0 // pred_region
    _
  $region9: #{bertcrf_forward.6} parent=0 // pred_fallthru
    _
  // Predicated region
  $region10: #{bertcrf_forward.6} parent=0 // pred_check
    _
  $region11: #{bertcrf_forward.6} parent=0 // pred_check_branch
    %13 = sbr.rel (0) target = $region13
  $region12: #{bertcrf_forward.6} parent=0 // pred_region
    _
  $region13: #{bertcrf_forward.6} parent=0 // pred_fallthru
    _
  %v15 = vld [vmem:[%s0] sm:$0xff]
  %v16 = vld [vmem:[%s0 + $0x8] sm:$0xff]
  %v17 = vld [vmem:[%s0 + $0x10] sm:$0xff]
  %v18 = vld [vmem:[%s0 + $0x18] sm:$0xff]
  %v19 = vld [vmem:[%s0 + $0x20] sm:$0xff]
  %v20 = vld [vmem:[%s0 + $0x28] sm:$0xff]
  %v21 = vld [vmem:[%s0 + $0x30] sm:$0xff]
  %v22 = vld [vmem:[%s0 + $0x38] sm:$0xff]
  %v23 = vpack.c.bf16 %v16, %v15
  %v24 = vpack.c.bf16 %v18, %v17
  %v25 = vpack.c.bf16 %v20, %v19
  %v26 = vpack.c.bf16 %v22, %v21
  %v27 = vld [vmem:[%s1] sm:$0xff]
  %v28 = vld [vmem:[%s1 + $0x8] sm:$0xff]
  %v29 = vld [vmem:[%s1 + $0x10] sm:$0xff]
  %v30 = vld [vmem:[%s1 + $0x18] sm:$0xff]
  %v31 = vld [vmem:[%s1 + $0x20] sm:$0xff]
  %v32 = vld [vmem:[%s1 + $0x28] sm:$0xff]
  %v33 = vld [vmem:[%s1 + $0x30] sm:$0xff]
  %v34 = vld [vmem:[%s1 + $0x38] sm:$0xff]
  %v35 = vld [vmem:[%s1 + $0x40] sm:$0xff]
  %v36 = vld [vmem:[%s1 + $0x48] sm:$0xff]
  %v37 = vld [vmem:[%s1 + $0x50] sm:$0xff]
  %v38 = vld [vmem:[%s1 + $0x58] sm:$0xff]
  %v39 = vld [vmem:[%s1 + $0x60] sm:$0xff]
  %v40 = vld [vmem:[%s1 + $0x68] sm:$0xff]
  %v41 = vld [vmem:[%s1 + $0x70] sm:$0xff]
  %v42 = vld [vmem:[%s1 + $0x78] sm:$0xff]
  %v43 = vld [vmem:[%s1 + $0x80] sm:$0xff]
  %v44 = vld [vmem:[%s1 + $0x88] sm:$0xff]
  %v45 = vld [vmem:[%s1 + $0x90] sm:$0xff]
  %v46 = vld [vmem:[%s1 + $0x98] sm:$0xff]
  %v47 = vld [vmem:[%s1 + $0xa0] sm:$0xff]
  %v48 = vld [vmem:[%s1 + $0xa8] sm:$0xff]
  %v49 = vld [vmem:[%s1 + $0xb0] sm:$0xff]
  %v50 = vld [vmem:[%s1 + $0xb8] sm:$0xff]
  %v51 = vld [vmem:[%s1 + $0xc0] sm:$0xff]
  %v52 = vld [vmem:[%s1 + $0xc8] sm:$0xff]
  %v53 = vld [vmem:[%s1 + $0xd0] sm:$0xff]
  %v54 = vld [vmem:[%s1 + $0xd8] sm:$0xff]
  %v55 = vld [vmem:[%s1 + $0xe0] sm:$0xff]
  %v56 = vld [vmem:[%s1 + $0xe8] sm:$0xff]
  %v57 = vld [vmem:[%s1 + $0xf0] sm:$0xff]
  %v58 = vld [vmem:[%s1 + $0xf8] sm:$0xff]
  %v59 = vld [vmem:[%s1 + $0x100] sm:$0xff]
  %v60 = vld [vmem:[%s1 + $0x108] sm:$0xff]
  %v61 = vld [vmem:[%s1 + $0x110] sm:$0xff]
  %v62 = vld [vmem:[%s1 + $0x118] sm:$0xff]
  %v63 = vld [vmem:[%s1 + $0x120] sm:$0xff]
  %v64 = vld [vmem:[%s1 + $0x128] sm:$0xff]
  %v65 = vld [vmem:[%s1 + $0x130] sm:$0xff]
  %v66 = vld [vmem:[%s1 + $0x138] sm:$0xff]
  %v67 = vld [vmem:[%s1 + $0x140] sm:$0xff]
  %v68 = vld [vmem:[%s1 + $0x148] sm:$0xff]
  %v69 = vld [vmem:[%s1 + $0x150] sm:$0xff]
  %v70 = vld [vmem:[%s1 + $0x158] sm:$0xff]
  %v71 = vld [vmem:[%s1 + $0x160] sm:$0xff]
  %v72 = vld [vmem:[%s1 + $0x168] sm:$0xff]
  %v73 = vld [vmem:[%s1 + $0x170] sm:$0xff]
  %v74 = vld [vmem:[%s1 + $0x178] sm:$0xff]
  %v75 = vld [vmem:[%s1 + $0x180] sm:$0xff]
  %v76 = vld [vmem:[%s1 + $0x188] sm:$0xff]
  %v77 = vld [vmem:[%s1 + $0x190] sm:$0xff]
  %v78 = vld [vmem:[%s1 + $0x198] sm:$0xff]
  %v79 = vld [vmem:[%s1 + $0x1a0] sm:$0xff]
  %v80 = vld [vmem:[%s1 + $0x1a8] sm:$0xff]
  %v81 = vld [vmem:[%s1 + $0x1b0] sm:$0xff]
  %v82 = vld [vmem:[%s1 + $0x1b8] sm:$0xff]
  %v83 = vld [vmem:[%s1 + $0x1c0] sm:$0xff]
  %v84 = vld [vmem:[%s1 + $0x1c8] sm:$0xff]
  %v85 = vld [vmem:[%s1 + $0x1d0] sm:$0xff]
  %v86 = vld [vmem:[%s1 + $0x1d8] sm:$0xff]
  %v87 = vld [vmem:[%s1 + $0x1e0] sm:$0xff]
  %v88 = vld [vmem:[%s1 + $0x1e8] sm:$0xff]
  %v89 = vld [vmem:[%s1 + $0x1f0] sm:$0xff]
  %v90 = vld [vmem:[%s1 + $0x1f8] sm:$0xff]
  %v91 = vld [vmem:[%s2] sm:$0xff]
  %v93 = vlaneseq
  %v94 = vshrl.u32 %v93, 7
  %v95 = vsub.s32 0, %v94
  %v96 = vrot.slane %v91, %v95
  %v97 = vlaneseq
  %v98 = vshrl.u32 %v97, 7
  %v99 = vsub.s32 1, %v98
  %v100 = vrot.slane %v91, %v99
  %v101 = vlaneseq
  %v102 = vshrl.u32 %v101, 7
  %v103 = vsub.s32 2, %v102
  %v104 = vrot.slane %v91, %v103
  %v105 = vlaneseq
  %v106 = vshrl.u32 %v105, 7
  %v107 = vsub.s32 3, %v106
  %v108 = vrot.slane %v91, %v107
  %v109 = vlaneseq
  %v110 = vshrl.u32 %v109, 7
  %v111 = vsub.s32 4, %v110
  %v112 = vrot.slane %v91, %v111
  %v113 = vlaneseq
  %v114 = vshrl.u32 %v113, 7
  %v115 = vsub.s32 5, %v114
  %v116 = vrot.slane %v91, %v115
  %v117 = vlaneseq
  %v118 = vshrl.u32 %v117, 7
  %v119 = vsub.s32 6, %v118
  %v120 = vrot.slane %v91, %v119
  %v121 = vlaneseq
  %v122 = vshrl.u32 %v121, 7
  %v123 = vsub.s32 7, %v122
  %v124 = vrot.slane %v91, %v123
  %v197 = vunpack.c.l.b16 %v27
  %v198 = vunpack.c.h.b16 %v27
  %v199 = vunpack.c.l.b16 %v28
  %v200 = vunpack.c.h.b16 %v28
  %v201 = vunpack.c.l.b16 %v29
  %v202 = vunpack.c.h.b16 %v29
  %v203 = vunpack.c.l.b16 %v30
  %v204 = vunpack.c.h.b16 %v30
  %v205 = vunpack.c.l.b16 %v31
  %v206 = vunpack.c.h.b16 %v31
  %v207 = vunpack.c.l.b16 %v32
  %v208 = vunpack.c.h.b16 %v32
  %v209 = vunpack.c.l.b16 %v33
  %v210 = vunpack.c.h.b16 %v33
  %v211 = vunpack.c.l.b16 %v34
  %v212 = vunpack.c.h.b16 %v34
  %v213 = vunpack.c.l.b16 %v35
  %v214 = vunpack.c.h.b16 %v35
  %v215 = vunpack.c.l.b16 %v36
  %v216 = vunpack.c.h.b16 %v36
  %v217 = vunpack.c.l.b16 %v37
  %v218 = vunpack.c.h.b16 %v37
  %v219 = vunpack.c.l.b16 %v38
  %v220 = vunpack.c.h.b16 %v38
  %v221 = vunpack.c.l.b16 %v39
  %v222 = vunpack.c.h.b16 %v39
  %v223 = vunpack.c.l.b16 %v40
  %v224 = vunpack.c.h.b16 %v40
  %v225 = vunpack.c.l.b16 %v41
  %v226 = vunpack.c.h.b16 %v41
  %v227 = vunpack.c.l.b16 %v42
  %v228 = vunpack.c.h.b16 %v42
  %v229 = vunpack.c.l.b16 %v43
  %v230 = vunpack.c.h.b16 %v43
  %v231 = vunpack.c.l.b16 %v44
  %v232 = vunpack.c.h.b16 %v44
  %v233 = vunpack.c.l.b16 %v45
  %v234 = vunpack.c.h.b16 %v45
  %v235 = vunpack.c.l.b16 %v46
  %v236 = vunpack.c.h.b16 %v46
  %v237 = vunpack.c.l.b16 %v47
  %v238 = vunpack.c.h.b16 %v47
  %v239 = vunpack.c.l.b16 %v48
  %v240 = vunpack.c.h.b16 %v48
  %v241 = vunpack.c.l.b16 %v49
  %v242 = vunpack.c.h.b16 %v49
  %v243 = vunpack.c.l.b16 %v50
  %v244 = vunpack.c.h.b16 %v50
  %v245 = vunpack.c.l.b16 %v51
  %v246 = vunpack.c.h.b16 %v51
  %v247 = vunpack.c.l.b16 %v52
  %v248 = vunpack.c.h.b16 %v52
  %v249 = vunpack.c.l.b16 %v53
  %v250 = vunpack.c.h.b16 %v53
  %v251 = vunpack.c.l.b16 %v54
  %v252 = vunpack.c.h.b16 %v54
  %v253 = vunpack.c.l.b16 %v55
  %v254 = vunpack.c.h.b16 %v55
  %v255 = vunpack.c.l.b16 %v56
  %v256 = vunpack.c.h.b16 %v56
  %v257 = vunpack.c.l.b16 %v57
  %v258 = vunpack.c.h.b16 %v57
  %v259 = vunpack.c.l.b16 %v58
  %v260 = vunpack.c.h.b16 %v58
  %v261 = vunpack.c.l.b16 %v59
  %v262 = vunpack.c.h.b16 %v59
  %v263 = vunpack.c.l.b16 %v60
  %v264 = vunpack.c.h.b16 %v60
  %v265 = vunpack.c.l.b16 %v61
  %v266 = vunpack.c.h.b16 %v61
  %v267 = vunpack.c.l.b16 %v62
  %v268 = vunpack.c.h.b16 %v62
  %v269 = vunpack.c.l.b16 %v63
  %v270 = vunpack.c.h.b16 %v63
  %v271 = vunpack.c.l.b16 %v64
  %v272 = vunpack.c.h.b16 %v64
  %v273 = vunpack.c.l.b16 %v65
  %v274 = vunpack.c.h.b16 %v65
  %v275 = vunpack.c.l.b16 %v66
  %v276 = vunpack.c.h.b16 %v66
  %v277 = vunpack.c.l.b16 %v67
  %v278 = vunpack.c.h.b16 %v67
  %v279 = vunpack.c.l.b16 %v68
  %v280 = vunpack.c.h.b16 %v68
  %v281 = vunpack.c.l.b16 %v69
  %v282 = vunpack.c.h.b16 %v69
  %v283 = vunpack.c.l.b16 %v70
  %v284 = vunpack.c.h.b16 %v70
  %v285 = vunpack.c.l.b16 %v71
  %v286 = vunpack.c.h.b16 %v71
  %v287 = vunpack.c.l.b16 %v72
  %v288 = vunpack.c.h.b16 %v72
  %v289 = vunpack.c.l.b16 %v73
  %v290 = vunpack.c.h.b16 %v73
  %v291 = vunpack.c.l.b16 %v74
  %v292 = vunpack.c.h.b16 %v74
  %v293 = vunpack.c.l.b16 %v75
  %v294 = vunpack.c.h.b16 %v75
  %v295 = vunpack.c.l.b16 %v76
  %v296 = vunpack.c.h.b16 %v76
  %v297 = vunpack.c.l.b16 %v77
  %v298 = vunpack.c.h.b16 %v77
  %v299 = vunpack.c.l.b16 %v78
  %v300 = vunpack.c.h.b16 %v78
  %v301 = vunpack.c.l.b16 %v79
  %v302 = vunpack.c.h.b16 %v79
  %v303 = vunpack.c.l.b16 %v80
  %v304 = vunpack.c.h.b16 %v80
  %v305 = vunpack.c.l.b16 %v81
  %v306 = vunpack.c.h.b16 %v81
  %v307 = vunpack.c.l.b16 %v82
  %v308 = vunpack.c.h.b16 %v82
  %v309 = vunpack.c.l.b16 %v83
  %v310 = vunpack.c.h.b16 %v83
  %v311 = vunpack.c.l.b16 %v84
  %v312 = vunpack.c.h.b16 %v84
  %v313 = vunpack.c.l.b16 %v85
  %v314 = vunpack.c.h.b16 %v85
  %v315 = vunpack.c.l.b16 %v86
  %v316 = vunpack.c.h.b16 %v86
  %v317 = vunpack.c.l.b16 %v87
  %v318 = vunpack.c.h.b16 %v87
  %v319 = vunpack.c.l.b16 %v88
  %v320 = vunpack.c.h.b16 %v88
  %v321 = vunpack.c.l.b16 %v89
  %v322 = vunpack.c.h.b16 %v89
  %v323 = vunpack.c.l.b16 %v90
  %v324 = vunpack.c.h.b16 %v90
  %v325 = vpack.c.b16 %v205, %v197
  %v326 = vpack.c.b16 %v206, %v198
  %v327 = vpack.c.b16 %v207, %v199
  %v328 = vpack.c.b16 %v208, %v200
  %v329 = vpack.c.b16 %v209, %v201
  %v330 = vpack.c.b16 %v210, %v202
  %v331 = vpack.c.b16 %v211, %v203
  %v332 = vpack.c.b16 %v212, %v204
  %v333 = vpack.c.b16 %v221, %v213
  %v334 = vpack.c.b16 %v222, %v214
  %v335 = vpack.c.b16 %v223, %v215
  %v336 = vpack.c.b16 %v224, %v216
  %v337 = vpack.c.b16 %v225, %v217
  %v338 = vpack.c.b16 %v226, %v218
  %v339 = vpack.c.b16 %v227, %v219
  %v340 = vpack.c.b16 %v228, %v220
  %v341 = vpack.c.b16 %v237, %v229
  %v342 = vpack.c.b16 %v238, %v230
  %v343 = vpack.c.b16 %v239, %v231
  %v344 = vpack.c.b16 %v240, %v232
  %v345 = vpack.c.b16 %v241, %v233
  %v346 = vpack.c.b16 %v242, %v234
  %v347 = vpack.c.b16 %v243, %v235
  %v348 = vpack.c.b16 %v244, %v236
  %v349 = vpack.c.b16 %v253, %v245
  %v350 = vpack.c.b16 %v254, %v246
  %v351 = vpack.c.b16 %v255, %v247
  %v352 = vpack.c.b16 %v256, %v248
  %v353 = vpack.c.b16 %v257, %v249
  %v354 = vpack.c.b16 %v258, %v250
  %v355 = vpack.c.b16 %v259, %v251
  %v356 = vpack.c.b16 %v260, %v252
  %v357 = vpack.c.b16 %v269, %v261
  %v358 = vpack.c.b16 %v270, %v262
  %v359 = vpack.c.b16 %v271, %v263
  %v360 = vpack.c.b16 %v272, %v264
  %v361 = vpack.c.b16 %v273, %v265
  %v362 = vpack.c.b16 %v274, %v266
  %v363 = vpack.c.b16 %v275, %v267
  %v364 = vpack.c.b16 %v276, %v268
  %v365 = vpack.c.b16 %v285, %v277
  %v366 = vpack.c.b16 %v286, %v278
  %v367 = vpack.c.b16 %v287, %v279
  %v368 = vpack.c.b16 %v288, %v280
  %v369 = vpack.c.b16 %v289, %v281
  %v370 = vpack.c.b16 %v290, %v282
  %v371 = vpack.c.b16 %v291, %v283
  %v372 = vpack.c.b16 %v292, %v284
  %v373 = vpack.c.b16 %v301, %v293
  %v374 = vpack.c.b16 %v302, %v294
  %v375 = vpack.c.b16 %v303, %v295
  %v376 = vpack.c.b16 %v304, %v296
  %v377 = vpack.c.b16 %v305, %v297
  %v378 = vpack.c.b16 %v306, %v298
  %v379 = vpack.c.b16 %v307, %v299
  %v380 = vpack.c.b16 %v308, %v300
  %v381 = vpack.c.b16 %v317, %v309
  %v382 = vpack.c.b16 %v318, %v310
  %v383 = vpack.c.b16 %v319, %v311
  %v384 = vpack.c.b16 %v320, %v312
  %v385 = vpack.c.b16 %v321, %v313
  %v386 = vpack.c.b16 %v322, %v314
  %v387 = vpack.c.b16 %v323, %v315
  %v388 = vpack.c.b16 %v324, %v316
  %453 = vmatprep.subr.bf16.mxu0 %v326
  %454 = vmatpush1.bf16.msra.mxu0 %v325
  %455 = vmatprep.subr.bf16.mxu0 %v334
  %456 = vmatpush1.bf16.msra.mxu0 %v333
  %457 = vmatprep.subr.bf16.mxu0 %v342
  %458 = vmatpush1.bf16.msra.mxu0 %v341
  %459 = vmatprep.subr.bf16.mxu0 %v350
  %460 = vmatpush1.bf16.msra.mxu0 %v349
  %461 = vmatprep.subr.bf16.mxu0 %v358
  %462 = vmatpush1.bf16.msra.mxu0 %v357
  %463 = vmatprep.subr.bf16.mxu0 %v366
  %464 = vmatpush1.bf16.msra.mxu0 %v365
  %465 = vmatprep.subr.bf16.mxu0 %v374
  %466 = vmatpush1.bf16.msra.mxu0 %v373
  %467 = vmatprep.subr.bf16.mxu0 %v382
  %468 = vmatpush1.bf16.msra.mxu0 %v381
  %469 = vmatprep.subr.bf16.mxu0 0
  %470 = vmatpush1.bf16.msra.mxu0 0
  %471 = vmatprep.subr.bf16.mxu0 0
  %472 = vmatpush1.bf16.msra.mxu0 0
  %473 = vmatprep.subr.bf16.mxu0 0
  %474 = vmatpush1.bf16.msra.mxu0 0
  %475 = vmatprep.subr.bf16.mxu0 0
  %476 = vmatpush1.bf16.msra.mxu0 0
  %477 = vmatprep.subr.bf16.mxu0 0
  %478 = vmatpush1.bf16.msra.mxu0 0
  %479 = vmatprep.subr.bf16.mxu0 0
  %480 = vmatpush1.bf16.msra.mxu0 0
  %481 = vmatprep.subr.bf16.mxu0 0
  %482 = vmatpush1.bf16.msra.mxu0 0
  %483 = vmatprep.subr.bf16.mxu0 0
  %484 = vmatpush1.bf16.msra.mxu0 0
  %485 = vmatprep.mubr.bf16.mxu0 0
  %486 = vmatmul.mubr.bf16.gmra.mrb[0].mxu0 %v23
  %v487 = vpop.f32.mrb[0].mxu0
  %v488 = vadd.f32 %v96, %v487
  %v489 = vpop.f32.mrb[0].mxu0
  %v490 = vadd.f32 %v100, %v489
  %v491 = vpop.f32.mrb[0].mxu0
  %v492 = vadd.f32 %v96, %v491
  %v493 = vpop.f32.mrb[0].mxu0
  %v494 = vadd.f32 %v100, %v493
  %495 = vmatprep.mubr.bf16.mxu0 0
  %496 = vmatmul.mubr.bf16.gmra.mrb[0].mxu0 %v24
  %v497 = vpop.f32.mrb[0].mxu0
  %v498 = vadd.f32 %v96, %v497
  %v499 = vpop.f32.mrb[0].mxu0
  %v500 = vadd.f32 %v100, %v499
  %v501 = vpop.f32.mrb[0].mxu0
  %v502 = vadd.f32 %v96, %v501
  %v503 = vpop.f32.mrb[0].mxu0
  %v504 = vadd.f32 %v100, %v503
  %505 = vmatprep.mubr.bf16.mxu0 0
  %506 = vmatmul.mubr.bf16.gmra.mrb[0].mxu0 %v25
  %v507 = vpop.f32.mrb[0].mxu0
  %v508 = vadd.f32 %v96, %v507
  %v509 = vpop.f32.mrb[0].mxu0
  %v510 = vadd.f32 %v100, %v509
  %v511 = vpop.f32.mrb[0].mxu0
  %v512 = vadd.f32 %v96, %v511
  %v513 = vpop.f32.mrb[0].mxu0
  %v514 = vadd.f32 %v100, %v513
  %515 = vmatprep.mubr.bf16.mxu0 0
  %516 = vmatmul.mubr.bf16.gmra.mrb[0].mxu0 %v26
  %v517 = vpop.f32.mrb[0].mxu0
  %v518 = vadd.f32 %v96, %v517
  %v519 = vpop.f32.mrb[0].mxu0
  %v520 = vadd.f32 %v100, %v519
  %v521 = vpop.f32.mrb[0].mxu0
  %v522 = vadd.f32 %v96, %v521
  %v523 = vpop.f32.mrb[0].mxu0
  %v524 = vadd.f32 %v100, %v523
  %525 = vdwg.mxu0
  %526 = vmatprep.subr.bf16.mxu0 %v328
  %527 = vmatpush1.bf16.msra.mxu0 %v327
  %528 = vmatprep.subr.bf16.mxu0 %v336
  %529 = vmatpush1.bf16.msra.mxu0 %v335
  %530 = vmatprep.subr.bf16.mxu0 %v344
  %531 = vmatpush1.bf16.msra.mxu0 %v343
  %532 = vmatprep.subr.bf16.mxu0 %v352
  %533 = vmatpush1.bf16.msra.mxu0 %v351
  %534 = vmatprep.subr.bf16.mxu0 %v360
  %535 = vmatpush1.bf16.msra.mxu0 %v359
  %536 = vmatprep.subr.bf16.mxu0 %v368
  %537 = vmatpush1.bf16.msra.mxu0 %v367
  %538 = vmatprep.subr.bf16.mxu0 %v376
  %539 = vmatpush1.bf16.msra.mxu0 %v375
  %540 = vmatprep.subr.bf16.mxu0 %v384
  %541 = vmatpush1.bf16.msra.mxu0 %v383
  %542 = vmatprep.subr.bf16.mxu0 0
  %543 = vmatpush1.bf16.msra.mxu0 0
  %544 = vmatprep.subr.bf16.mxu0 0
  %545 = vmatpush1.bf16.msra.mxu0 0
  %546 = vmatprep.subr.bf16.mxu0 0
  %547 = vmatpush1.bf16.msra.mxu0 0
  %548 = vmatprep.subr.bf16.mxu0 0
  %549 = vmatpush1.bf16.msra.mxu0 0
  %550 = vmatprep.subr.bf16.mxu0 0
  %551 = vmatpush1.bf16.msra.mxu0 0
  %552 = vmatprep.subr.bf16.mxu0 0
  %553 = vmatpush1.bf16.msra.mxu0 0
  %554 = vmatprep.subr.bf16.mxu0 0
  %555 = vmatpush1.bf16.msra.mxu0 0
  %556 = vmatprep.subr.bf16.mxu0 0
  %557 = vmatpush1.bf16.msra.mxu0 0
  %558 = vmatprep.mubr.bf16.mxu0 0
  %559 = vmatmul.mubr.bf16.gmra.mrb[0].mxu0 %v23
  %v560 = vpop.f32.mrb[0].mxu0
  %v561 = vadd.f32 %v104, %v560
  %v562 = vpop.f32.mrb[0].mxu0
  %v563 = vadd.f32 %v108, %v562
  %v564 = vpop.f32.mrb[0].mxu0
  %v565 = vadd.f32 %v104, %v564
  %v566 = vpop.f32.mrb[0].mxu0
  %v567 = vadd.f32 %v108, %v566
  %568 = vmatprep.mubr.bf16.mxu0 0
  %569 = vmatmul.mubr.bf16.gmra.mrb[0].mxu0 %v24
  %v570 = vpop.f32.mrb[0].mxu0
  %v571 = vadd.f32 %v104, %v570
  %v572 = vpop.f32.mrb[0].mxu0
  %v573 = vadd.f32 %v108, %v572
  %v574 = vpop.f32.mrb[0].mxu0
  %v575 = vadd.f32 %v104, %v574
  %v576 = vpop.f32.mrb[0].mxu0
  %v577 = vadd.f32 %v108, %v576
  %578 = vmatprep.mubr.bf16.mxu0 0
  %579 = vmatmul.mubr.bf16.gmra.mrb[0].mxu0 %v25
  %v580 = vpop.f32.mrb[0].mxu0
  %v581 = vadd.f32 %v104, %v580
  %v582 = vpop.f32.mrb[0].mxu0
  %v583 = vadd.f32 %v108, %v582
  %v584 = vpop.f32.mrb[0].mxu0
  %v585 = vadd.f32 %v104, %v584
  %v586 = vpop.f32.mrb[0].mxu0
  %v587 = vadd.f32 %v108, %v586
  %588 = vmatprep.mubr.bf16.mxu0 0
  %589 = vmatmul.mubr.bf16.gmra.mrb[0].mxu0 %v26
  %v590 = vpop.f32.mrb[0].mxu0
  %v591 = vadd.f32 %v104, %v590
  %v592 = vpop.f32.mrb[0].mxu0
  %v593 = vadd.f32 %v108, %v592
  %v594 = vpop.f32.mrb[0].mxu0
  %v595 = vadd.f32 %v104, %v594
  %v596 = vpop.f32.mrb[0].mxu0
  %v597 = vadd.f32 %v108, %v596
  %598 = vdwg.mxu0
  %599 = vmatprep.subr.bf16.mxu0 %v330
  %600 = vmatpush1.bf16.msra.mxu0 %v329
  %601 = vmatprep.subr.bf16.mxu0 %v338
  %602 = vmatpush1.bf16.msra.mxu0 %v337
  %603 = vmatprep.subr.bf16.mxu0 %v346
  %604 = vmatpush1.bf16.msra.mxu0 %v345
  %605 = vmatprep.subr.bf16.mxu0 %v354
  %606 = vmatpush1.bf16.msra.mxu0 %v353
  %607 = vmatprep.subr.bf16.mxu0 %v362
  %608 = vmatpush1.bf16.msra.mxu0 %v361
  %609 = vmatprep.subr.bf16.mxu0 %v370
  %610 = vmatpush1.bf16.msra.mxu0 %v369
  %611 = vmatprep.subr.bf16.mxu0 %v378
  %612 = vmatpush1.bf16.msra.mxu0 %v377
  %613 = vmatprep.subr.bf16.mxu0 %v386
  %614 = vmatpush1.bf16.msra.mxu0 %v385
  %615 = vmatprep.subr.bf16.mxu0 0
  %616 = vmatpush1.bf16.msra.mxu0 0
  %617 = vmatprep.subr.bf16.mxu0 0
  %618 = vmatpush1.bf16.msra.mxu0 0
  %619 = vmatprep.subr.bf16.mxu0 0
  %620 = vmatpush1.bf16.msra.mxu0 0
  %621 = vmatprep.subr.bf16.mxu0 0
  %622 = vmatpush1.bf16.msra.mxu0 0
  %623 = vmatprep.subr.bf16.mxu0 0
  %624 = vmatpush1.bf16.msra.mxu0 0
  %625 = vmatprep.subr.bf16.mxu0 0
  %626 = vmatpush1.bf16.msra.mxu0 0
  %627 = vmatprep.subr.bf16.mxu0 0
  %628 = vmatpush1.bf16.msra.mxu0 0
  %629 = vmatprep.subr.bf16.mxu0 0
  %630 = vmatpush1.bf16.msra.mxu0 0
  %631 = vmatprep.mubr.bf16.mxu0 0
  %632 = vmatmul.mubr.bf16.gmra.mrb[0].mxu0 %v23
  %v633 = vpop.f32.mrb[0].mxu0
  %v634 = vadd.f32 %v112, %v633
  %v635 = vpop.f32.mrb[0].mxu0
  %v636 = vadd.f32 %v116, %v635
  %v637 = vpop.f32.mrb[0].mxu0
  %v638 = vadd.f32 %v112, %v637
  %v639 = vpop.f32.mrb[0].mxu0
  %v640 = vadd.f32 %v116, %v639
  %641 = vmatprep.mubr.bf16.mxu0 0
  %642 = vmatmul.mubr.bf16.gmra.mrb[0].mxu0 %v24
  %v643 = vpop.f32.mrb[0].mxu0
  %v644 = vadd.f32 %v112, %v643
  %v645 = vpop.f32.mrb[0].mxu0
  %v646 = vadd.f32 %v116, %v645
  %v647 = vpop.f32.mrb[0].mxu0
  %v648 = vadd.f32 %v112, %v647
  %v649 = vpop.f32.mrb[0].mxu0
  %v650 = vadd.f32 %v116, %v649
  %651 = vmatprep.mubr.bf16.mxu0 0
  %652 = vmatmul.mubr.bf16.gmra.mrb[0].mxu0 %v25
  %v653 = vpop.f32.mrb[0].mxu0
  %v654 = vadd.f32 %v112, %v653
  %v655 = vpop.f32.mrb[0].mxu0
  %v656 = vadd.f32 %v116, %v655
  %v657 = vpop.f32.mrb[0].mxu0
  %v658 = vadd.f32 %v112, %v657
  %v659 = vpop.f32.mrb[0].mxu0
  %v660 = vadd.f32 %v116, %v659
  %661 = vmatprep.mubr.bf16.mxu0 0
  %662 = vmatmul.mubr.bf16.gmra.mrb[0].mxu0 %v26
  %v663 = vpop.f32.mrb[0].mxu0
  %v664 = vadd.f32 %v112, %v663
  %v665 = vpop.f32.mrb[0].mxu0
  %v666 = vadd.f32 %v116, %v665
  %v667 = vpop.f32.mrb[0].mxu0
  %v668 = vadd.f32 %v112, %v667
  %v669 = vpop.f32.mrb[0].mxu0
  %v670 = vadd.f32 %v116, %v669
  %671 = vdwg.mxu0
  %672 = vmatprep.subr.bf16.mxu0 %v332
  %673 = vmatpush1.bf16.msra.mxu0 %v331
  %674 = vmatprep.subr.bf16.mxu0 %v340
  %675 = vmatpush1.bf16.msra.mxu0 %v339
  %676 = vmatprep.subr.bf16.mxu0 %v348
  %677 = vmatpush1.bf16.msra.mxu0 %v347
  %678 = vmatprep.subr.bf16.mxu0 %v356
  %679 = vmatpush1.bf16.msra.mxu0 %v355
  %680 = vmatprep.subr.bf16.mxu0 %v364
  %681 = vmatpush1.bf16.msra.mxu0 %v363
  %682 = vmatprep.subr.bf16.mxu0 %v372
  %683 = vmatpush1.bf16.msra.mxu0 %v371
  %684 = vmatprep.subr.bf16.mxu0 %v380
  %685 = vmatpush1.bf16.msra.mxu0 %v379
  %686 = vmatprep.subr.bf16.mxu0 %v388
  %687 = vmatpush1.bf16.msra.mxu0 %v387
  %688 = vmatprep.subr.bf16.mxu0 0
  %689 = vmatpush1.bf16.msra.mxu0 0
  %690 = vmatprep.subr.bf16.mxu0 0
  %691 = vmatpush1.bf16.msra.mxu0 0
  %692 = vmatprep.subr.bf16.mxu0 0
  %693 = vmatpush1.bf16.msra.mxu0 0
  %694 = vmatprep.subr.bf16.mxu0 0
  %695 = vmatpush1.bf16.msra.mxu0 0
  %696 = vmatprep.subr.bf16.mxu0 0
  %697 = vmatpush1.bf16.msra.mxu0 0
  %698 = vmatprep.subr.bf16.mxu0 0
  %699 = vmatpush1.bf16.msra.mxu0 0
  %700 = vmatprep.subr.bf16.mxu0 0
  %701 = vmatpush1.bf16.msra.mxu0 0
  %702 = vmatprep.subr.bf16.mxu0 0
  %703 = vmatpush1.bf16.msra.mxu0 0
  %704 = vmatprep.mubr.bf16.mxu0 0
  %705 = vmatmul.mubr.bf16.gmra.mrb[0].mxu0 %v23
  %v706 = vpop.f32.mrb[0].mxu0
  %v707 = vadd.f32 %v120, %v706
  %v708 = vpop.f32.mrb[0].mxu0
  %v709 = vadd.f32 %v124, %v708
  %v710 = vpop.f32.mrb[0].mxu0
  %v711 = vadd.f32 %v120, %v710
  %v712 = vpop.f32.mrb[0].mxu0
  %v713 = vadd.f32 %v124, %v712
  %714 = vmatprep.mubr.bf16.mxu0 0
  %715 = vmatmul.mubr.bf16.gmra.mrb[0].mxu0 %v24
  %v716 = vpop.f32.mrb[0].mxu0
  %v717 = vadd.f32 %v120, %v716
  %v718 = vpop.f32.mrb[0].mxu0
  %v719 = vadd.f32 %v124, %v718
  %v720 = vpop.f32.mrb[0].mxu0
  %v721 = vadd.f32 %v120, %v720
  %v722 = vpop.f32.mrb[0].mxu0
  %v723 = vadd.f32 %v124, %v722
  %724 = vmatprep.mubr.bf16.mxu0 0
  %725 = vmatmul.mubr.bf16.gmra.mrb[0].mxu0 %v25
  %v726 = vpop.f32.mrb[0].mxu0
  %v727 = vadd.f32 %v120, %v726
  %v728 = vpop.f32.mrb[0].mxu0
  %v729 = vadd.f32 %v124, %v728
  %v730 = vpop.f32.mrb[0].mxu0
  %v731 = vadd.f32 %v120, %v730
  %v732 = vpop.f32.mrb[0].mxu0
  %v733 = vadd.f32 %v124, %v732
  %734 = vmatprep.mubr.bf16.mxu0 0
  %735 = vmatmul.mubr.bf16.gmra.mrb[0].mxu0 %v26
  %v736 = vpop.f32.mrb[0].mxu0
  %v737 = vadd.f32 %v120, %v736
  %v738 = vpop.f32.mrb[0].mxu0
  %v739 = vadd.f32 %v124, %v738
  %v740 = vpop.f32.mrb[0].mxu0
  %v741 = vadd.f32 %v120, %v740
  %v742 = vpop.f32.mrb[0].mxu0
  %v743 = vadd.f32 %v124, %v742
  %744 = vdwg.mxu0
  %745 = vst [vmem:[%s3] sm:$0xff] %v488
  %746 = vst [vmem:[%s3 + $0x8] sm:$0xff] %v490
  %747 = vst [vmem:[%s3 + $0x10] sm:$0xff] %v561
  %748 = vst [vmem:[%s3 + $0x18] sm:$0xff] %v563
  %749 = vst [vmem:[%s3 + $0x20] sm:$0xff] %v634
  %750 = vst [vmem:[%s3 + $0x28] sm:$0xff] %v636
  %751 = vst [vmem:[%s3 + $0x30] sm:$0xff] %v707
  %752 = vst [vmem:[%s3 + $0x38] sm:$0xff] %v709
  %753 = vst [vmem:[%s3 + $0x40] sm:$0xff] %v492
  %754 = vst [vmem:[%s3 + $0x48] sm:$0xff] %v494
  %755 = vst [vmem:[%s3 + $0x50] sm:$0xff] %v565
  %756 = vst [vmem:[%s3 + $0x58] sm:$0xff] %v567
  %757 = vst [vmem:[%s3 + $0x60] sm:$0xff] %v638
  %758 = vst [vmem:[%s3 + $0x68] sm:$0xff] %v640
  %759 = vst [vmem:[%s3 + $0x70] sm:$0xff] %v711
  %760 = vst [vmem:[%s3 + $0x78] sm:$0xff] %v713
  %761 = vst [vmem:[%s3 + $0x80] sm:$0xff] %v498
  %762 = vst [vmem:[%s3 + $0x88] sm:$0xff] %v500
  %763 = vst [vmem:[%s3 + $0x90] sm:$0xff] %v571
  %764 = vst [vmem:[%s3 + $0x98] sm:$0xff] %v573
  %765 = vst [vmem:[%s3 + $0xa0] sm:$0xff] %v644
  %766 = vst [vmem:[%s3 + $0xa8] sm:$0xff] %v646
  %767 = vst [vmem:[%s3 + $0xb0] sm:$0xff] %v717
  %768 = vst [vmem:[%s3 + $0xb8] sm:$0xff] %v719
  %769 = vst [vmem:[%s3 + $0xc0] sm:$0xff] %v502
  %770 = vst [vmem:[%s3 + $0xc8] sm:$0xff] %v504
  %771 = vst [vmem:[%s3 + $0xd0] sm:$0xff] %v575
  %772 = vst [vmem:[%s3 + $0xd8] sm:$0xff] %v577
  %773 = vst [vmem:[%s3 + $0xe0] sm:$0xff] %v648
  %774 = vst [vmem:[%s3 + $0xe8] sm:$0xff] %v650
  %775 = vst [vmem:[%s3 + $0xf0] sm:$0xff] %v721
  %776 = vst [vmem:[%s3 + $0xf8] sm:$0xff] %v723
  %777 = vst [vmem:[%s3 + $0x100] sm:$0xff] %v508
  %778 = vst [vmem:[%s3 + $0x108] sm:$0xff] %v510
  %779 = vst [vmem:[%s3 + $0x110] sm:$0xff] %v581
  %780 = vst [vmem:[%s3 + $0x118] sm:$0xff] %v583
  %781 = vst [vmem:[%s3 + $0x120] sm:$0xff] %v654
  %782 = vst [vmem:[%s3 + $0x128] sm:$0xff] %v656
  %783 = vst [vmem:[%s3 + $0x130] sm:$0xff] %v727
  %784 = vst [vmem:[%s3 + $0x138] sm:$0xff] %v729
  %785 = vst [vmem:[%s3 + $0x140] sm:$0xff] %v512
  %786 = vst [vmem:[%s3 + $0x148] sm:$0xff] %v514
  %787 = vst [vmem:[%s3 + $0x150] sm:$0xff] %v585
  %788 = vst [vmem:[%s3 + $0x158] sm:$0xff] %v587
  %789 = vst [vmem:[%s3 + $0x160] sm:$0xff] %v658
  %790 = vst [vmem:[%s3 + $0x168] sm:$0xff] %v660
  %791 = vst [vmem:[%s3 + $0x170] sm:$0xff] %v731
  %792 = vst [vmem:[%s3 + $0x178] sm:$0xff] %v733
  %793 = vst [vmem:[%s3 + $0x180] sm:$0xff] %v518
  %794 = vst [vmem:[%s3 + $0x188] sm:$0xff] %v520
  %795 = vst [vmem:[%s3 + $0x190] sm:$0xff] %v591
  %796 = vst [vmem:[%s3 + $0x198] sm:$0xff] %v593
  %797 = vst [vmem:[%s3 + $0x1a0] sm:$0xff] %v664
  %798 = vst [vmem:[%s3 + $0x1a8] sm:$0xff] %v666
  %799 = vst [vmem:[%s3 + $0x1b0] sm:$0xff] %v737
  %800 = vst [vmem:[%s3 + $0x1b8] sm:$0xff] %v739
  %801 = vst [vmem:[%s3 + $0x1c0] sm:$0xff] %v522
  %802 = vst [vmem:[%s3 + $0x1c8] sm:$0xff] %v524
  %803 = vst [vmem:[%s3 + $0x1d0] sm:$0xff] %v595
  %804 = vst [vmem:[%s3 + $0x1d8] sm:$0xff] %v597
  %805 = vst [vmem:[%s3 + $0x1e0] sm:$0xff] %v668
  %806 = vst [vmem:[%s3 + $0x1e8] sm:$0xff] %v670
  %807 = vst [vmem:[%s3 + $0x1f0] sm:$0xff] %v741
  %808 = vst [vmem:[%s3 + $0x1f8] sm:$0xff] %v743
  // Predicated region
  $region14: #{bertcrf_forward.6} parent=0 // pred_check
    _
  $region15: #{bertcrf_forward.6} parent=0 // pred_check_branch
    %810 = sbr.rel (0) target = $region17
  $region16: #{bertcrf_forward.6} parent=0 // pred_region
    _
  $region17: #{bertcrf_forward.6} parent=0 // pred_fallthru
    _
  // Predicated region
  $region18: #{bertcrf_forward.6} parent=0 // pred_check
    _
  $region19: #{bertcrf_forward.6} parent=0 // pred_check_branch
    %812 = sbr.rel (0) target = $region21
  $region20: #{bertcrf_forward.6} parent=0 // pred_region
    _
  $region21: #{bertcrf_forward.6} parent=0 // pred_fallthru
    _

// kernel: bertcrf_forward.5
$region0: #{bertcrf_forward.5}
  #allocation0 [shape = 'u32[]', space=smem, size = 0x4, offset = 0x4, fixed_abs, tag = 'smem constant byte address 0x4 - core index']
  #allocation1 [shape = 'u32[144,128]{1,0:T(1,128)}', space=vmem, size = 0x12000, scoped, tag = 'internal scratch']
  %s0 = inlined_call_operand.vmem [shape: f32[64,128], index: 0, kind: input, shape index: {}]
  %s1 = inlined_call_operand.vmem [shape: bf16[128,128], index: 1, kind: input, shape index: {}]
  %s2 = inlined_call_operand.vmem [shape: f32[1,128], index: 2, kind: input, shape index: {}]
  %s3 = inlined_call_operand.vmem [shape: f32[64,128], index: 3, kind: output, shape index: {}]
  %s4 = sld [smem:[#allocation0]]
  $region22: #{bertcrf_forward.5} parent=0
    _
  %s6 = ssub.s32 1, %s4
  %s7 = scalar_select 0, %s6, %s4
  // Predicated region
  $region2: #{bertcrf_forward.5} parent=0 // pred_check
    _
  $region3: #{bertcrf_forward.5} parent=0 // pred_check_branch
    %9 = sbr.rel (0) target = $region5
  $region4: #{bertcrf_forward.5} parent=0 // pred_region
    _
  $region5: #{bertcrf_forward.5} parent=0 // pred_fallthru
    _
  // Predicated region
  $region6: #{bertcrf_forward.5} parent=0 // pred_check
    _
  $region7: #{bertcrf_forward.5} parent=0 // pred_check_branch
    %11 = sbr.rel (0) target = $region9
  $region8: #{bertcrf_forward.5} parent=0 // pred_region
    _
  $region9: #{bertcrf_forward.5} parent=0 // pred_fallthru
    _
  // Predicated region
  $region10: #{bertcrf_forward.5} parent=0 // pred_check
    _
  $region11: #{bertcrf_forward.5} parent=0 // pred_check_branch
    %13 = sbr.rel (0) target = $region13
  $region12: #{bertcrf_forward.5} parent=0 // pred_region
    _
  $region13: #{bertcrf_forward.5} parent=0 // pred_fallthru
    _
  %v15 = vld [vmem:[%s0] sm:$0xff]
  %v16 = vld [vmem:[%s0 + $0x8] sm:$0xff]
  %v17 = vld [vmem:[%s0 + $0x10] sm:$0xff]
  %v18 = vld [vmem:[%s0 + $0x18] sm:$0xff]
  %v19 = vld [vmem:[%s0 + $0x20] sm:$0xff]
  %v20 = vld [vmem:[%s0 + $0x28] sm:$0xff]
  %v21 = vld [vmem:[%s0 + $0x30] sm:$0xff]
  %v22 = vld [vmem:[%s0 + $0x38] sm:$0xff]
  %v23 = vpack.c.bf16 %v16, %v15
  %v24 = vpack.c.bf16 %v18, %v17
  %v25 = vpack.c.bf16 %v20, %v19
  %v26 = vpack.c.bf16 %v22, %v21
  %v27 = vld [vmem:[%s1] sm:$0xf]
  %v28 = vld [vmem:[%s1 + $0x4] sm:$0xf]
  %v29 = vld [vmem:[%s1 + $0x8] sm:$0xf]
  %v30 = vld [vmem:[%s1 + $0xc] sm:$0xf]
  %v31 = vld [vmem:[%s1 + $0x10] sm:$0xf]
  %v32 = vld [vmem:[%s1 + $0x14] sm:$0xf]
  %v33 = vld [vmem:[%s1 + $0x18] sm:$0xf]
  %v34 = vld [vmem:[%s1 + $0x1c] sm:$0xf]
  %v35 = vld [vmem:[%s1 + $0x20] sm:$0xf]
  %v36 = vld [vmem:[%s1 + $0x24] sm:$0xf]
  %v37 = vld [vmem:[%s1 + $0x28] sm:$0xf]
  %v38 = vld [vmem:[%s1 + $0x2c] sm:$0xf]
  %v39 = vld [vmem:[%s1 + $0x30] sm:$0xf]
  %v40 = vld [vmem:[%s1 + $0x34] sm:$0xf]
  %v41 = vld [vmem:[%s1 + $0x38] sm:$0xf]
  %v42 = vld [vmem:[%s1 + $0x3c] sm:$0xf]
  %v43 = vld [vmem:[%s2] sm:$0x1]
  %v45 = vlaneseq
  %v46 = vshrl.u32 %v45, 7
  %v47 = vsub.s32 0, %v46
  %v48 = vrot.slane %v43, %v47
  %v66 = vunpack.c.l.b16 %v27
  %v67 = vunpack.c.l.b16 %v28
  %v68 = vunpack.c.l.b16 %v29
  %v69 = vunpack.c.l.b16 %v30
  %v70 = vunpack.c.l.b16 %v31
  %v71 = vunpack.c.l.b16 %v32
  %v72 = vunpack.c.l.b16 %v33
  %v73 = vunpack.c.l.b16 %v34
  %v74 = vunpack.c.l.b16 %v35
  %v75 = vunpack.c.l.b16 %v36
  %v76 = vunpack.c.l.b16 %v37
  %v77 = vunpack.c.l.b16 %v38
  %v78 = vunpack.c.l.b16 %v39
  %v79 = vunpack.c.l.b16 %v40
  %v80 = vunpack.c.l.b16 %v41
  %v81 = vunpack.c.l.b16 %v42
  %v82 = vpack.c.b16 %v67, %v66
  %v83 = vpack.c.b16 %v69, %v68
  %v84 = vpack.c.b16 %v71, %v70
  %v85 = vpack.c.b16 %v73, %v72
  %v86 = vpack.c.b16 %v75, %v74
  %v87 = vpack.c.b16 %v77, %v76
  %v88 = vpack.c.b16 %v79, %v78
  %v89 = vpack.c.b16 %v81, %v80
  %98 = vmatprep.subr.bf16.mxu0 0
  %99 = vmatpush1.bf16.msra.mxu0 %v82
  %100 = vmatprep.subr.bf16.mxu0 0
  %101 = vmatpush1.bf16.msra.mxu0 %v83
  %102 = vmatprep.subr.bf16.mxu0 0
  %103 = vmatpush1.bf16.msra.mxu0 %v84
  %104 = vmatprep.subr.bf16.mxu0 0
  %105 = vmatpush1.bf16.msra.mxu0 %v85
  %106 = vmatprep.subr.bf16.mxu0 0
  %107 = vmatpush1.bf16.msra.mxu0 %v86
  %108 = vmatprep.subr.bf16.mxu0 0
  %109 = vmatpush1.bf16.msra.mxu0 %v87
  %110 = vmatprep.subr.bf16.mxu0 0
  %111 = vmatpush1.bf16.msra.mxu0 %v88
  %112 = vmatprep.subr.bf16.mxu0 0
  %113 = vmatpush1.bf16.msra.mxu0 %v89
  %114 = vmatprep.subr.bf16.mxu0 0
  %115 = vmatpush1.bf16.msra.mxu0 0
  %116 = vmatprep.subr.bf16.mxu0 0
  %117 = vmatpush1.bf16.msra.mxu0 0
  %118 = vmatprep.subr.bf16.mxu0 0
  %119 = vmatpush1.bf16.msra.mxu0 0
  %120 = vmatprep.subr.bf16.mxu0 0
  %121 = vmatpush1.bf16.msra.mxu0 0
  %122 = vmatprep.subr.bf16.mxu0 0
  %123 = vmatpush1.bf16.msra.mxu0 0
  %124 = vmatprep.subr.bf16.mxu0 0
  %125 = vmatpush1.bf16.msra.mxu0 0
  %126 = vmatprep.subr.bf16.mxu0 0
  %127 = vmatpush1.bf16.msra.mxu0 0
  %128 = vmatprep.subr.bf16.mxu0 0
  %129 = vmatpush1.bf16.msra.mxu0 0
  %130 = vmatprep.mubr.bf16.mxu0 0
  %131 = vmatmul.mubr.bf16.gmra.mrb[0].mxu0 %v23
  %v132 = vpop.f32.mrb[0].mxu0
  %v133 = vadd.f32 %v48, %v132
  %v134 = vpop.f32.mrb[0].mxu0
  %v135 = vpop.f32.mrb[0].mxu0
  %v136 = vadd.f32 %v48, %v135
  %v137 = vpop.f32.mrb[0].mxu0
  %138 = vmatprep.mubr.bf16.mxu0 0
  %139 = vmatmul.mubr.bf16.gmra.mrb[0].mxu0 %v24
  %v140 = vpop.f32.mrb[0].mxu0
  %v141 = vadd.f32 %v48, %v140
  %v142 = vpop.f32.mrb[0].mxu0
  %v143 = vpop.f32.mrb[0].mxu0
  %v144 = vadd.f32 %v48, %v143
  %v145 = vpop.f32.mrb[0].mxu0
  %146 = vmatprep.mubr.bf16.mxu0 0
  %147 = vmatmul.mubr.bf16.gmra.mrb[0].mxu0 %v25
  %v148 = vpop.f32.mrb[0].mxu0
  %v149 = vadd.f32 %v48, %v148
  %v150 = vpop.f32.mrb[0].mxu0
  %v151 = vpop.f32.mrb[0].mxu0
  %v152 = vadd.f32 %v48, %v151
  %v153 = vpop.f32.mrb[0].mxu0
  %154 = vmatprep.mubr.bf16.mxu0 0
  %155 = vmatmul.mubr.bf16.gmra.mrb[0].mxu0 %v26
  %v156 = vpop.f32.mrb[0].mxu0
  %v157 = vadd.f32 %v48, %v156
  %v158 = vpop.f32.mrb[0].mxu0
  %v159 = vpop.f32.mrb[0].mxu0
  %v160 = vadd.f32 %v48, %v159
  %v161 = vpop.f32.mrb[0].mxu0
  %162 = vdwg.mxu0
  %v163 = vtanh.pop %v133
  %v164 = vtanh.pop %v136
  %v165 = vtanh.pop %v141
  %v166 = vtanh.pop %v144
  %v167 = vtanh.pop %v149
  %v168 = vtanh.pop %v152
  %v169 = vtanh.pop %v157
  %v170 = vtanh.pop %v160
  %171 = vst [vmem:[%s3] sm:$0xff] %v163
  %172 = vst [vmem:[%s3 + $0x8] sm:$0xff] %v164
  %173 = vst [vmem:[%s3 + $0x10] sm:$0xff] %v165
  %174 = vst [vmem:[%s3 + $0x18] sm:$0xff] %v166
  %175 = vst [vmem:[%s3 + $0x20] sm:$0xff] %v167
  %176 = vst [vmem:[%s3 + $0x28] sm:$0xff] %v168
  %177 = vst [vmem:[%s3 + $0x30] sm:$0xff] %v169
  %178 = vst [vmem:[%s3 + $0x38] sm:$0xff] %v170
  // Predicated region
  $region14: #{bertcrf_forward.5} parent=0 // pred_check
    _
  $region15: #{bertcrf_forward.5} parent=0 // pred_check_branch
    %180 = sbr.rel (0) target = $region17
  $region16: #{bertcrf_forward.5} parent=0 // pred_region
    _
  $region17: #{bertcrf_forward.5} parent=0 // pred_fallthru
    _
  // Predicated region
  $region18: #{bertcrf_forward.5} parent=0 // pred_check
    _
  $region19: #{bertcrf_forward.5} parent=0 // pred_check_branch
    %182 = sbr.rel (0) target = $region21
  $region20: #{bertcrf_forward.5} parent=0 // pred_region
    _
  $region21: #{bertcrf_forward.5} parent=0 // pred_fallthru
    _

// kernel: bertcrf_forward.8
$region0: #{bertcrf_forward.8}
  #allocation0 [shape = 'u32[]', space=smem, size = 0x4, offset = 0x4, fixed_abs, tag = 'smem constant byte address 0x4 - core index']
  #allocation1 [shape = 'u32[144,128]{1,0:T(1,128)}', space=vmem, size = 0x12000, scoped, tag = 'internal scratch']
  %s0 = inlined_call_operand.vmem [shape: f32[64,128], index: 0, kind: input, shape index: {}]
  %s1 = inlined_call_operand.vmem [shape: f32[64,128], index: 1, kind: input, shape index: {}]
  %s2 = inlined_call_operand.vmem [shape: bf16[2,128,128], index: 2, kind: input, shape index: {}]
  %s3 = inlined_call_operand.vmem [shape: f32[1,128], index: 3, kind: input, shape index: {}]
  %s4 = inlined_call_operand.vmem [shape: f32[64,128], index: 4, kind: output, shape index: {}]
  %s5 = sld [smem:[#allocation0]]
  $region26: #{bertcrf_forward.8} parent=0
    _
  %s7 = ssub.s32 1, %s5
  %s8 = scalar_select 0, %s7, %s5
  // Predicated region
  $region2: #{bertcrf_forward.8} parent=0 // pred_check
    _
  $region3: #{bertcrf_forward.8} parent=0 // pred_check_branch
    %10 = sbr.rel (0) target = $region5
  $region4: #{bertcrf_forward.8} parent=0 // pred_region
    _
  $region5: #{bertcrf_forward.8} parent=0 // pred_fallthru
    _
  // Predicated region
  $region6: #{bertcrf_forward.8} parent=0 // pred_check
    _
  $region7: #{bertcrf_forward.8} parent=0 // pred_check_branch
    %12 = sbr.rel (0) target = $region9
  $region8: #{bertcrf_forward.8} parent=0 // pred_region
    _
  $region9: #{bertcrf_forward.8} parent=0 // pred_fallthru
    _
  // Predicated region
  $region10: #{bertcrf_forward.8} parent=0 // pred_check
    _
  $region11: #{bertcrf_forward.8} parent=0 // pred_check_branch
    %14 = sbr.rel (0) target = $region13
  $region12: #{bertcrf_forward.8} parent=0 // pred_region
    _
  $region13: #{bertcrf_forward.8} parent=0 // pred_fallthru
    _
  // Predicated region
  $region14: #{bertcrf_forward.8} parent=0 // pred_check
    _
  $region15: #{bertcrf_forward.8} parent=0 // pred_check_branch
    %16 = sbr.rel (0) target = $region17
  $region16: #{bertcrf_forward.8} parent=0 // pred_region
    _
  $region17: #{bertcrf_forward.8} parent=0 // pred_fallthru
    _
  %v18 = vld [vmem:[%s0] sm:$0xff]
  %v19 = vld [vmem:[%s0 + $0x8] sm:$0xff]
  %v20 = vld [vmem:[%s0 + $0x10] sm:$0xff]
  %v21 = vld [vmem:[%s0 + $0x18] sm:$0xff]
  %v22 = vld [vmem:[%s0 + $0x20] sm:$0xff]
  %v23 = vld [vmem:[%s0 + $0x28] sm:$0xff]
  %v24 = vld [vmem:[%s0 + $0x30] sm:$0xff]
  %v25 = vld [vmem:[%s0 + $0x38] sm:$0xff]
  %v26 = vpack.c.bf16 %v19, %v18
  %v27 = vpack.c.bf16 %v21, %v20
  %v28 = vpack.c.bf16 %v23, %v22
  %v29 = vpack.c.bf16 %v25, %v24
  %v30 = vld [vmem:[%s2] sm:$0xf]
  %v31 = vld [vmem:[%s2 + $0x4] sm:$0xf]
  %v32 = vld [vmem:[%s2 + $0x8] sm:$0xf]
  %v33 = vld [vmem:[%s2 + $0xc] sm:$0xf]
  %v34 = vld [vmem:[%s2 + $0x10] sm:$0xf]
  %v35 = vld [vmem:[%s2 + $0x14] sm:$0xf]
  %v36 = vld [vmem:[%s2 + $0x18] sm:$0xf]
  %v37 = vld [vmem:[%s2 + $0x1c] sm:$0xf]
  %v38 = vld [vmem:[%s2 + $0x20] sm:$0xf]
  %v39 = vld [vmem:[%s2 + $0x24] sm:$0xf]
  %v40 = vld [vmem:[%s2 + $0x28] sm:$0xf]
  %v41 = vld [vmem:[%s2 + $0x2c] sm:$0xf]
  %v42 = vld [vmem:[%s2 + $0x30] sm:$0xf]
  %v43 = vld [vmem:[%s2 + $0x34] sm:$0xf]
  %v44 = vld [vmem:[%s2 + $0x38] sm:$0xf]
  %v45 = vld [vmem:[%s2 + $0x3c] sm:$0xf]
  %v46 = vld [vmem:[%s1] sm:$0xff]
  %v47 = vld [vmem:[%s1 + $0x8] sm:$0xff]
  %v48 = vld [vmem:[%s1 + $0x10] sm:$0xff]
  %v49 = vld [vmem:[%s1 + $0x18] sm:$0xff]
  %v50 = vld [vmem:[%s1 + $0x20] sm:$0xff]
  %v51 = vld [vmem:[%s1 + $0x28] sm:$0xff]
  %v52 = vld [vmem:[%s1 + $0x30] sm:$0xff]
  %v53 = vld [vmem:[%s1 + $0x38] sm:$0xff]
  %v54 = vpack.c.bf16 %v47, %v46
  %v55 = vpack.c.bf16 %v49, %v48
  %v56 = vpack.c.bf16 %v51, %v50
  %v57 = vpack.c.bf16 %v53, %v52
  %s58 = scalar_lea.vmem %s2, 64
  %v59 = vld [vmem:[%s58] sm:$0xf]
  %v60 = vld [vmem:[%s58 + $0x4] sm:$0xf]
  %v61 = vld [vmem:[%s58 + $0x8] sm:$0xf]
  %v62 = vld [vmem:[%s58 + $0xc] sm:$0xf]
  %v63 = vld [vmem:[%s58 + $0x10] sm:$0xf]
  %v64 = vld [vmem:[%s58 + $0x14] sm:$0xf]
  %v65 = vld [vmem:[%s58 + $0x18] sm:$0xf]
  %v66 = vld [vmem:[%s58 + $0x1c] sm:$0xf]
  %v67 = vld [vmem:[%s58 + $0x20] sm:$0xf]
  %v68 = vld [vmem:[%s58 + $0x24] sm:$0xf]
  %v69 = vld [vmem:[%s58 + $0x28] sm:$0xf]
  %v70 = vld [vmem:[%s58 + $0x2c] sm:$0xf]
  %v71 = vld [vmem:[%s58 + $0x30] sm:$0xf]
  %v72 = vld [vmem:[%s58 + $0x34] sm:$0xf]
  %v73 = vld [vmem:[%s58 + $0x38] sm:$0xf]
  %v74 = vld [vmem:[%s58 + $0x3c] sm:$0xf]
  %v91 = vunpack.c.l.b16 %v59
  %v92 = vunpack.c.l.b16 %v60
  %v93 = vunpack.c.l.b16 %v61
  %v94 = vunpack.c.l.b16 %v62
  %v95 = vunpack.c.l.b16 %v63
  %v96 = vunpack.c.l.b16 %v64
  %v97 = vunpack.c.l.b16 %v65
  %v98 = vunpack.c.l.b16 %v66
  %v99 = vunpack.c.l.b16 %v67
  %v100 = vunpack.c.l.b16 %v68
  %v101 = vunpack.c.l.b16 %v69
  %v102 = vunpack.c.l.b16 %v70
  %v103 = vunpack.c.l.b16 %v71
  %v104 = vunpack.c.l.b16 %v72
  %v105 = vunpack.c.l.b16 %v73
  %v106 = vunpack.c.l.b16 %v74
  %v107 = vpack.c.b16 %v92, %v91
  %v108 = vpack.c.b16 %v94, %v93
  %v109 = vpack.c.b16 %v96, %v95
  %v110 = vpack.c.b16 %v98, %v97
  %v111 = vpack.c.b16 %v100, %v99
  %v112 = vpack.c.b16 %v102, %v101
  %v113 = vpack.c.b16 %v104, %v103
  %v114 = vpack.c.b16 %v106, %v105
  %123 = vmatprep.subr.bf16.mxu0 0
  %124 = vmatpush1.bf16.msra.mxu0 %v107
  %125 = vmatprep.subr.bf16.mxu0 0
  %126 = vmatpush1.bf16.msra.mxu0 %v108
  %127 = vmatprep.subr.bf16.mxu0 0
  %128 = vmatpush1.bf16.msra.mxu0 %v109
  %129 = vmatprep.subr.bf16.mxu0 0
  %130 = vmatpush1.bf16.msra.mxu0 %v110
  %131 = vmatprep.subr.bf16.mxu0 0
  %132 = vmatpush1.bf16.msra.mxu0 %v111
  %133 = vmatprep.subr.bf16.mxu0 0
  %134 = vmatpush1.bf16.msra.mxu0 %v112
  %135 = vmatprep.subr.bf16.mxu0 0
  %136 = vmatpush1.bf16.msra.mxu0 %v113
  %137 = vmatprep.subr.bf16.mxu0 0
  %138 = vmatpush1.bf16.msra.mxu0 %v114
  %139 = vmatprep.subr.bf16.mxu0 0
  %140 = vmatpush1.bf16.msra.mxu0 0
  %141 = vmatprep.subr.bf16.mxu0 0
  %142 = vmatpush1.bf16.msra.mxu0 0
  %143 = vmatprep.subr.bf16.mxu0 0
  %144 = vmatpush1.bf16.msra.mxu0 0
  %145 = vmatprep.subr.bf16.mxu0 0
  %146 = vmatpush1.bf16.msra.mxu0 0
  %147 = vmatprep.subr.bf16.mxu0 0
  %148 = vmatpush1.bf16.msra.mxu0 0
  %149 = vmatprep.subr.bf16.mxu0 0
  %150 = vmatpush1.bf16.msra.mxu0 0
  %151 = vmatprep.subr.bf16.mxu0 0
  %152 = vmatpush1.bf16.msra.mxu0 0
  %153 = vmatprep.subr.bf16.mxu0 0
  %154 = vmatpush1.bf16.msra.mxu0 0
  %155 = vmatprep.mubr.bf16.mxu0 0
  %156 = vmatmul.mubr.bf16.gmra.mrb[0].mxu0 %v54
  %v157 = vpop.f32.mrb[0].mxu0
  %v158 = vadd.f32 0.0, %v157
  %v159 = vpop.f32.mrb[0].mxu0
  %v160 = vpop.f32.mrb[0].mxu0
  %v161 = vadd.f32 0.0, %v160
  %v162 = vpop.f32.mrb[0].mxu0
  %163 = vmatprep.mubr.bf16.mxu0 0
  %164 = vmatmul.mubr.bf16.gmra.mrb[0].mxu0 %v55
  %v165 = vpop.f32.mrb[0].mxu0
  %v166 = vadd.f32 0.0, %v165
  %v167 = vpop.f32.mrb[0].mxu0
  %v168 = vpop.f32.mrb[0].mxu0
  %v169 = vadd.f32 0.0, %v168
  %v170 = vpop.f32.mrb[0].mxu0
  %171 = vmatprep.mubr.bf16.mxu0 0
  %172 = vmatmul.mubr.bf16.gmra.mrb[0].mxu0 %v56
  %v173 = vpop.f32.mrb[0].mxu0
  %v174 = vadd.f32 0.0, %v173
  %v175 = vpop.f32.mrb[0].mxu0
  %v176 = vpop.f32.mrb[0].mxu0
  %v177 = vadd.f32 0.0, %v176
  %v178 = vpop.f32.mrb[0].mxu0
  %179 = vmatprep.mubr.bf16.mxu0 0
  %180 = vmatmul.mubr.bf16.gmra.mrb[0].mxu0 %v57
  %v181 = vpop.f32.mrb[0].mxu0
  %v182 = vadd.f32 0.0, %v181
  %v183 = vpop.f32.mrb[0].mxu0
  %v184 = vpop.f32.mrb[0].mxu0
  %v185 = vadd.f32 0.0, %v184
  %v186 = vpop.f32.mrb[0].mxu0
  %187 = vdwg.mxu0
  %v204 = vunpack.c.l.b16 %v30
  %v205 = vunpack.c.l.b16 %v31
  %v206 = vunpack.c.l.b16 %v32
  %v207 = vunpack.c.l.b16 %v33
  %v208 = vunpack.c.l.b16 %v34
  %v209 = vunpack.c.l.b16 %v35
  %v210 = vunpack.c.l.b16 %v36
  %v211 = vunpack.c.l.b16 %v37
  %v212 = vunpack.c.l.b16 %v38
  %v213 = vunpack.c.l.b16 %v39
  %v214 = vunpack.c.l.b16 %v40
  %v215 = vunpack.c.l.b16 %v41
  %v216 = vunpack.c.l.b16 %v42
  %v217 = vunpack.c.l.b16 %v43
  %v218 = vunpack.c.l.b16 %v44
  %v219 = vunpack.c.l.b16 %v45
  %v220 = vpack.c.b16 %v205, %v204
  %v221 = vpack.c.b16 %v207, %v206
  %v222 = vpack.c.b16 %v209, %v208
  %v223 = vpack.c.b16 %v211, %v210
  %v224 = vpack.c.b16 %v213, %v212
  %v225 = vpack.c.b16 %v215, %v214
  %v226 = vpack.c.b16 %v217, %v216
  %v227 = vpack.c.b16 %v219, %v218
  %236 = vmatprep.subr.bf16.mxu0 0
  %237 = vmatpush1.bf16.msra.mxu0 %v220
  %238 = vmatprep.subr.bf16.mxu0 0
  %239 = vmatpush1.bf16.msra.mxu0 %v221
  %240 = vmatprep.subr.bf16.mxu0 0
  %241 = vmatpush1.bf16.msra.mxu0 %v222
  %242 = vmatprep.subr.bf16.mxu0 0
  %243 = vmatpush1.bf16.msra.mxu0 %v223
  %244 = vmatprep.subr.bf16.mxu0 0
  %245 = vmatpush1.bf16.msra.mxu0 %v224
  %246 = vmatprep.subr.bf16.mxu0 0
  %247 = vmatpush1.bf16.msra.mxu0 %v225
  %248 = vmatprep.subr.bf16.mxu0 0
  %249 = vmatpush1.bf16.msra.mxu0 %v226
  %250 = vmatprep.subr.bf16.mxu0 0
  %251 = vmatpush1.bf16.msra.mxu0 %v227
  %252 = vmatprep.subr.bf16.mxu0 0
  %253 = vmatpush1.bf16.msra.mxu0 0
  %254 = vmatprep.subr.bf16.mxu0 0
  %255 = vmatpush1.bf16.msra.mxu0 0
  %256 = vmatprep.subr.bf16.mxu0 0
  %257 = vmatpush1.bf16.msra.mxu0 0
  %258 = vmatprep.subr.bf16.mxu0 0
  %259 = vmatpush1.bf16.msra.mxu0 0
  %260 = vmatprep.subr.bf16.mxu0 0
  %261 = vmatpush1.bf16.msra.mxu0 0
  %262 = vmatprep.subr.bf16.mxu0 0
  %263 = vmatpush1.bf16.msra.mxu0 0
  %264 = vmatprep.subr.bf16.mxu0 0
  %265 = vmatpush1.bf16.msra.mxu0 0
  %266 = vmatprep.subr.bf16.mxu0 0
  %267 = vmatpush1.bf16.msra.mxu0 0
  %268 = vmatprep.mubr.bf16.mxu0 0
  %269 = vmatmul.mubr.bf16.gmra.mrb[0].mxu0 %v26
  %v270 = vpop.f32.mrb[0].mxu0
  %v271 = vadd.f32 %v158, %v270
  %v272 = vpop.f32.mrb[0].mxu0
  %v273 = vpop.f32.mrb[0].mxu0
  %v274 = vadd.f32 %v161, %v273
  %v275 = vpop.f32.mrb[0].mxu0
  %276 = vmatprep.mubr.bf16.mxu0 0
  %277 = vmatmul.mubr.bf16.gmra.mrb[0].mxu0 %v27
  %v278 = vpop.f32.mrb[0].mxu0
  %v279 = vadd.f32 %v166, %v278
  %v280 = vpop.f32.mrb[0].mxu0
  %v281 = vpop.f32.mrb[0].mxu0
  %v282 = vadd.f32 %v169, %v281
  %v283 = vpop.f32.mrb[0].mxu0
  %284 = vmatprep.mubr.bf16.mxu0 0
  %285 = vmatmul.mubr.bf16.gmra.mrb[0].mxu0 %v28
  %v286 = vpop.f32.mrb[0].mxu0
  %v287 = vadd.f32 %v174, %v286
  %v288 = vpop.f32.mrb[0].mxu0
  %v289 = vpop.f32.mrb[0].mxu0
  %v290 = vadd.f32 %v177, %v289
  %v291 = vpop.f32.mrb[0].mxu0
  %292 = vmatprep.mubr.bf16.mxu0 0
  %293 = vmatmul.mubr.bf16.gmra.mrb[0].mxu0 %v29
  %v294 = vpop.f32.mrb[0].mxu0
  %v295 = vadd.f32 %v182, %v294
  %v296 = vpop.f32.mrb[0].mxu0
  %v297 = vpop.f32.mrb[0].mxu0
  %v298 = vadd.f32 %v185, %v297
  %v299 = vpop.f32.mrb[0].mxu0
  %300 = vdwg.mxu0
  %v301 = vld [vmem:[%s3] sm:$0x1]
  %v303 = vlaneseq
  %v304 = vshrl.u32 %v303, 7
  %v305 = vsub.s32 0, %v304
  %v306 = vrot.slane %v301, %v305
  %v308 = vadd.f32 %v271, %v306
  %v309 = vadd.f32 %v274, %v306
  %v310 = vadd.f32 %v279, %v306
  %v311 = vadd.f32 %v282, %v306
  %v312 = vadd.f32 %v287, %v306
  %v313 = vadd.f32 %v290, %v306
  %v314 = vadd.f32 %v295, %v306
  %v315 = vadd.f32 %v298, %v306
  %316 = vst [vmem:[%s4] sm:$0xff] %v308
  %317 = vst [vmem:[%s4 + $0x8] sm:$0xff] %v309
  %318 = vst [vmem:[%s4 + $0x10] sm:$0xff] %v310
  %319 = vst [vmem:[%s4 + $0x18] sm:$0xff] %v311
  %320 = vst [vmem:[%s4 + $0x20] sm:$0xff] %v312
  %321 = vst [vmem:[%s4 + $0x28] sm:$0xff] %v313
  %322 = vst [vmem:[%s4 + $0x30] sm:$0xff] %v314
  %323 = vst [vmem:[%s4 + $0x38] sm:$0xff] %v315
  // Predicated region
  $region18: #{bertcrf_forward.8} parent=0 // pred_check
    _
  $region19: #{bertcrf_forward.8} parent=0 // pred_check_branch
    %325 = sbr.rel (0) target = $region21
  $region20: #{bertcrf_forward.8} parent=0 // pred_region
    _
  $region21: #{bertcrf_forward.8} parent=0 // pred_fallthru
    _
  // Predicated region
  $region22: #{bertcrf_forward.8} parent=0 // pred_check
    _
  $region23: #{bertcrf_forward.8} parent=0 // pred_check_branch
    %327 = sbr.rel (0) target = $region25
  $region24: #{bertcrf_forward.8} parent=0 // pred_region
    _
  $region25: #{bertcrf_forward.8} parent=0 // pred_fallthru
    _

// kernel: bertcrf_forward.7
$region0: #{bertcrf_forward.7}
  #allocation0 [shape = 'u32[]', space=smem, size = 0x4, offset = 0x4, fixed_abs, tag = 'smem constant byte address 0x4 - core index']
  #allocation1 [shape = 'u32[144,128]{1,0:T(1,128)}', space=vmem, size = 0x12000, scoped, tag = 'internal scratch']
  %s0 = inlined_call_operand.vmem [shape: f32[8,8,1024], index: 0, kind: input, shape index: {}]
  %s1 = inlined_call_operand.vmem [shape: bf16[2,128,512], index: 1, kind: input, shape index: {}]
  %s2 = inlined_call_operand.vmem [shape: f32[8,8,128], index: 2, kind: output, shape index: {0}]
  %s3 = inlined_call_operand.vmem [shape: f32[8,8,128], index: 3, kind: output, shape index: {1}]
  %4 = xla_tuple %s2, %s3
  %s5 = sld [smem:[#allocation0]]
  $region33: #{bertcrf_forward.7} parent=0
    _
  %s7 = ssub.s32 1, %s5
  %s8 = scalar_select 0, %s7, %s5
  // Predicated region
  $region2: #{bertcrf_forward.7} parent=0 // pred_check
    _
  $region3: #{bertcrf_forward.7} parent=0 // pred_check_branch
    %10 = sbr.rel (0) target = $region5
  $region4: #{bertcrf_forward.7} parent=0 // pred_region
    _
  $region5: #{bertcrf_forward.7} parent=0 // pred_fallthru
    _
  // Predicated region
  $region6: #{bertcrf_forward.7} parent=0 // pred_check
    _
  $region7: #{bertcrf_forward.7} parent=0 // pred_check_branch
    %12 = sbr.rel (0) target = $region9
  $region8: #{bertcrf_forward.7} parent=0 // pred_region
    _
  $region9: #{bertcrf_forward.7} parent=0 // pred_fallthru
    _
  loop: start=0, step=1, limit=8
  $region10: #{bertcrf_forward.7} parent=0 // loop_pre_header
    _
  $region11: #{bertcrf_forward.7} parent=0 // loop_header
    %s15 = sphi 0, %s19
    %p16 = scmp.ge.s32.totalorder %s15, 8
    %v20 = vphi 0.0, %v341
    %v21 = vphi 0.0, %v339
    %v22 = vphi 0.0, %v645
    %v23 = vphi 0.0, %v643
  $region12: #{bertcrf_forward.7} parent=0 // loop_header_branch
    %18 = sbr.rel (%p16) target = $region16
  $region13: #{bertcrf_forward.7} parent=0 // loop_body
    %s24 = ssub.s32 7, %s15
    %s25 = smul.u32 %s15, 8
    %s26 = smul.addr %s25, 8
    %s27 = scalar_lea.vmem %s0, %s26
    %v28 = vld [vmem:[%s27] sm:$0xff]
    %v29 = vld [vmem:[%s27 + $0x8] sm:$0xff]
    %v30 = vld [vmem:[%s27 + $0x10] sm:$0xff]
    %v31 = vld [vmem:[%s27 + $0x18] sm:$0xff]
    %s32 = smul.u32 %s24, 8
    %s33 = smul.addr %s32, 8
    %s34 = scalar_lea.vmem %s0, %s33
    %v35 = vld [vmem:[%s34 + $0x20] sm:$0xff]
    %v36 = vld [vmem:[%s34 + $0x28] sm:$0xff]
    %v37 = vld [vmem:[%s34 + $0x30] sm:$0xff]
    %v38 = vld [vmem:[%s34 + $0x38] sm:$0xff]
    %v39 = vld [vmem:[%s1] sm:$0xff]
    %v40 = vld [vmem:[%s1 + $0x8] sm:$0xff]
    %v41 = vld [vmem:[%s1 + $0x10] sm:$0xff]
    %v42 = vld [vmem:[%s1 + $0x18] sm:$0xff]
    %v43 = vld [vmem:[%s1 + $0x20] sm:$0xff]
    %v44 = vld [vmem:[%s1 + $0x28] sm:$0xff]
    %v45 = vld [vmem:[%s1 + $0x30] sm:$0xff]
    %v46 = vld [vmem:[%s1 + $0x38] sm:$0xff]
    %v47 = vld [vmem:[%s1 + $0x40] sm:$0xff]
    %v48 = vld [vmem:[%s1 + $0x48] sm:$0xff]
    %v49 = vld [vmem:[%s1 + $0x50] sm:$0xff]
    %v50 = vld [vmem:[%s1 + $0x58] sm:$0xff]
    %v51 = vld [vmem:[%s1 + $0x60] sm:$0xff]
    %v52 = vld [vmem:[%s1 + $0x68] sm:$0xff]
    %v53 = vld [vmem:[%s1 + $0x70] sm:$0xff]
    %v54 = vld [vmem:[%s1 + $0x78] sm:$0xff]
    %v55 = vld [vmem:[%s1 + $0x80] sm:$0xff]
    %v56 = vld [vmem:[%s1 + $0x88] sm:$0xff]
    %v57 = vld [vmem:[%s1 + $0x90] sm:$0xff]
    %v58 = vld [vmem:[%s1 + $0x98] sm:$0xff]
    %v59 = vld [vmem:[%s1 + $0xa0] sm:$0xff]
    %v60 = vld [vmem:[%s1 + $0xa8] sm:$0xff]
    %v61 = vld [vmem:[%s1 + $0xb0] sm:$0xff]
    %v62 = vld [vmem:[%s1 + $0xb8] sm:$0xff]
    %v63 = vld [vmem:[%s1 + $0xc0] sm:$0xff]
    %v64 = vld [vmem:[%s1 + $0xc8] sm:$0xff]
    %v65 = vld [vmem:[%s1 + $0xd0] sm:$0xff]
    %v66 = vld [vmem:[%s1 + $0xd8] sm:$0xff]
    %v67 = vld [vmem:[%s1 + $0xe0] sm:$0xff]
    %v68 = vld [vmem:[%s1 + $0xe8] sm:$0xff]
    %v69 = vld [vmem:[%s1 + $0xf0] sm:$0xff]
    %v70 = vld [vmem:[%s1 + $0xf8] sm:$0xff]
    %v71 = vpack.c.bf16 %v20, %v20
    %v104 = vunpack.c.l.b16 %v39
    %v105 = vunpack.c.h.b16 %v39
    %v106 = vunpack.c.l.b16 %v40
    %v107 = vunpack.c.h.b16 %v40
    %v108 = vunpack.c.l.b16 %v41
    %v109 = vunpack.c.h.b16 %v41
    %v110 = vunpack.c.l.b16 %v42
    %v111 = vunpack.c.h.b16 %v42
    %v112 = vunpack.c.l.b16 %v43
    %v113 = vunpack.c.h.b16 %v43
    %v114 = vunpack.c.l.b16 %v44
    %v115 = vunpack.c.h.b16 %v44
    %v116 = vunpack.c.l.b16 %v45
    %v117 = vunpack.c.h.b16 %v45
    %v118 = vunpack.c.l.b16 %v46
    %v119 = vunpack.c.h.b16 %v46
    %v120 = vunpack.c.l.b16 %v47
    %v121 = vunpack.c.h.b16 %v47
    %v122 = vunpack.c.l.b16 %v48
    %v123 = vunpack.c.h.b16 %v48
    %v124 = vunpack.c.l.b16 %v49
    %v125 = vunpack.c.h.b16 %v49
    %v126 = vunpack.c.l.b16 %v50
    %v127 = vunpack.c.h.b16 %v50
    %v128 = vunpack.c.l.b16 %v51
    %v129 = vunpack.c.h.b16 %v51
    %v130 = vunpack.c.l.b16 %v52
    %v131 = vunpack.c.h.b16 %v52
    %v132 = vunpack.c.l.b16 %v53
    %v133 = vunpack.c.h.b16 %v53
    %v134 = vunpack.c.l.b16 %v54
    %v135 = vunpack.c.h.b16 %v54
    %v136 = vunpack.c.l.b16 %v55
    %v137 = vunpack.c.h.b16 %v55
    %v138 = vunpack.c.l.b16 %v56
    %v139 = vunpack.c.h.b16 %v56
    %v140 = vunpack.c.l.b16 %v57
    %v141 = vunpack.c.h.b16 %v57
    %v142 = vunpack.c.l.b16 %v58
    %v143 = vunpack.c.h.b16 %v58
    %v144 = vunpack.c.l.b16 %v59
    %v145 = vunpack.c.h.b16 %v59
    %v146 = vunpack.c.l.b16 %v60
    %v147 = vunpack.c.h.b16 %v60
    %v148 = vunpack.c.l.b16 %v61
    %v149 = vunpack.c.h.b16 %v61
    %v150 = vunpack.c.l.b16 %v62
    %v151 = vunpack.c.h.b16 %v62
    %v152 = vunpack.c.l.b16 %v63
    %v153 = vunpack.c.h.b16 %v63
    %v154 = vunpack.c.l.b16 %v64
    %v155 = vunpack.c.h.b16 %v64
    %v156 = vunpack.c.l.b16 %v65
    %v157 = vunpack.c.h.b16 %v65
    %v158 = vunpack.c.l.b16 %v66
    %v159 = vunpack.c.h.b16 %v66
    %v160 = vunpack.c.l.b16 %v67
    %v161 = vunpack.c.h.b16 %v67
    %v162 = vunpack.c.l.b16 %v68
    %v163 = vunpack.c.h.b16 %v68
    %v164 = vunpack.c.l.b16 %v69
    %v165 = vunpack.c.h.b16 %v69
    %v166 = vunpack.c.l.b16 %v70
    %v167 = vunpack.c.h.b16 %v70
    %v168 = vpack.c.b16 %v108, %v104
    %v169 = vpack.c.b16 %v109, %v105
    %v170 = vpack.c.b16 %v110, %v106
    %v171 = vpack.c.b16 %v111, %v107
    %v172 = vpack.c.b16 %v116, %v112
    %v173 = vpack.c.b16 %v117, %v113
    %v174 = vpack.c.b16 %v118, %v114
    %v175 = vpack.c.b16 %v119, %v115
    %v176 = vpack.c.b16 %v124, %v120
    %v177 = vpack.c.b16 %v125, %v121
    %v178 = vpack.c.b16 %v126, %v122
    %v179 = vpack.c.b16 %v127, %v123
    %v180 = vpack.c.b16 %v132, %v128
    %v181 = vpack.c.b16 %v133, %v129
    %v182 = vpack.c.b16 %v134, %v130
    %v183 = vpack.c.b16 %v135, %v131
    %v184 = vpack.c.b16 %v140, %v136
    %v185 = vpack.c.b16 %v141, %v137
    %v186 = vpack.c.b16 %v142, %v138
    %v187 = vpack.c.b16 %v143, %v139
    %v188 = vpack.c.b16 %v148, %v144
    %v189 = vpack.c.b16 %v149, %v145
    %v190 = vpack.c.b16 %v150, %v146
    %v191 = vpack.c.b16 %v151, %v147
    %v192 = vpack.c.b16 %v156, %v152
    %v193 = vpack.c.b16 %v157, %v153
    %v194 = vpack.c.b16 %v158, %v154
    %v195 = vpack.c.b16 %v159, %v155
    %v196 = vpack.c.b16 %v164, %v160
    %v197 = vpack.c.b16 %v165, %v161
    %v198 = vpack.c.b16 %v166, %v162
    %v199 = vpack.c.b16 %v167, %v163
    %232 = vmatprep.subr.bf16.mxu0 %v169
    %233 = vmatpush1.bf16.msra.mxu0 %v168
    %234 = vmatprep.subr.bf16.mxu0 %v173
    %235 = vmatpush1.bf16.msra.mxu0 %v172
    %236 = vmatprep.subr.bf16.mxu0 %v177
    %237 = vmatpush1.bf16.msra.mxu0 %v176
    %238 = vmatprep.subr.bf16.mxu0 %v181
    %239 = vmatpush1.bf16.msra.mxu0 %v180
    %240 = vmatprep.subr.bf16.mxu0 %v185
    %241 = vmatpush1.bf16.msra.mxu0 %v184
    %242 = vmatprep.subr.bf16.mxu0 %v189
    %243 = vmatpush1.bf16.msra.mxu0 %v188
    %244 = vmatprep.subr.bf16.mxu0 %v193
    %245 = vmatpush1.bf16.msra.mxu0 %v192
    %246 = vmatprep.subr.bf16.mxu0 %v197
    %247 = vmatpush1.bf16.msra.mxu0 %v196
    %248 = vmatprep.subr.bf16.mxu0 0
    %249 = vmatpush1.bf16.msra.mxu0 0
    %250 = vmatprep.subr.bf16.mxu0 0
    %251 = vmatpush1.bf16.msra.mxu0 0
    %252 = vmatprep.subr.bf16.mxu0 0
    %253 = vmatpush1.bf16.msra.mxu0 0
    %254 = vmatprep.subr.bf16.mxu0 0
    %255 = vmatpush1.bf16.msra.mxu0 0
    %256 = vmatprep.subr.bf16.mxu0 0
    %257 = vmatpush1.bf16.msra.mxu0 0
    %258 = vmatprep.subr.bf16.mxu0 0
    %259 = vmatpush1.bf16.msra.mxu0 0
    %260 = vmatprep.subr.bf16.mxu0 0
    %261 = vmatpush1.bf16.msra.mxu0 0
    %262 = vmatprep.subr.bf16.mxu0 0
    %263 = vmatpush1.bf16.msra.mxu0 0
    %264 = vmatprep.mubr.bf16.mxu0 0
    %265 = vmatmul.mubr.bf16.gmra.mrb[0].mxu0 %v71
    %v266 = vpop.f32.mrb[0].mxu0
    %v267 = vadd.f32 0.0, %v266
    %v268 = vpop.f32.mrb[0].mxu0
    %v269 = vadd.f32 0.0, %v268
    %v270 = vpop.f32.mrb[0].mxu0
    %v271 = vpop.f32.mrb[0].mxu0
    %272 = vdwg.mxu0
    %273 = vmatprep.subr.bf16.mxu0 %v171
    %274 = vmatpush1.bf16.msra.mxu0 %v170
    %275 = vmatprep.subr.bf16.mxu0 %v175
    %276 = vmatpush1.bf16.msra.mxu0 %v174
    %277 = vmatprep.subr.bf16.mxu0 %v179
    %278 = vmatpush1.bf16.msra.mxu0 %v178
    %279 = vmatprep.subr.bf16.mxu0 %v183
    %280 = vmatpush1.bf16.msra.mxu0 %v182
    %281 = vmatprep.subr.bf16.mxu0 %v187
    %282 = vmatpush1.bf16.msra.mxu0 %v186
    %283 = vmatprep.subr.bf16.mxu0 %v191
    %284 = vmatpush1.bf16.msra.mxu0 %v190
    %285 = vmatprep.subr.bf16.mxu0 %v195
    %286 = vmatpush1.bf16.msra.mxu0 %v194
    %287 = vmatprep.subr.bf16.mxu0 %v199
    %288 = vmatpush1.bf16.msra.mxu0 %v198
    %289 = vmatprep.subr.bf16.mxu0 0
    %290 = vmatpush1.bf16.msra.mxu0 0
    %291 = vmatprep.subr.bf16.mxu0 0
    %292 = vmatpush1.bf16.msra.mxu0 0
    %293 = vmatprep.subr.bf16.mxu0 0
    %294 = vmatpush1.bf16.msra.mxu0 0
    %295 = vmatprep.subr.bf16.mxu0 0
    %296 = vmatpush1.bf16.msra.mxu0 0
    %297 = vmatprep.subr.bf16.mxu0 0
    %298 = vmatpush1.bf16.msra.mxu0 0
    %299 = vmatprep.subr.bf16.mxu0 0
    %300 = vmatpush1.bf16.msra.mxu0 0
    %301 = vmatprep.subr.bf16.mxu0 0
    %302 = vmatpush1.bf16.msra.mxu0 0
    %303 = vmatprep.subr.bf16.mxu0 0
    %304 = vmatpush1.bf16.msra.mxu0 0
    %305 = vmatprep.mubr.bf16.mxu0 0
    %306 = vmatmul.mubr.bf16.gmra.mrb[0].mxu0 %v71
    %v307 = vpop.f32.mrb[0].mxu0
    %v308 = vadd.f32 0.0, %v307
    %v309 = vpop.f32.mrb[0].mxu0
    %v310 = vadd.f32 0.0, %v309
    %v311 = vpop.f32.mrb[0].mxu0
    %v312 = vpop.f32.mrb[0].mxu0
    %313 = vdwg.mxu0
    %v314 = vadd.f32 %v28, %v267
    %v315 = vadd.f32 %v29, %v269
    %v316 = vadd.f32 %v30, %v308
    %v317 = vadd.f32 %v31, %v310
    %v318 = vxor.u32 %v314, 2147483648
    %v319 = vmul.f32 %v318, 1.442695
    %v320 = vpow.pop %v319
    %v321 = vadd.f32 %v320, 1.0
    %v322 = vrcp.pop %v321
    %v323 = vmul.f32 1.0, %v322
    %v324 = vxor.u32 %v315, 2147483648
    %v325 = vmul.f32 %v324, 1.442695
    %v326 = vpow.pop %v325
    %v327 = vadd.f32 %v326, 1.0
    %v328 = vrcp.pop %v327
    %v329 = vmul.f32 1.0, %v328
    %v330 = vtanh.pop %v316
    %v331 = vxor.u32 %v317, 2147483648
    %v332 = vmul.f32 %v331, 1.442695
    %v333 = vpow.pop %v332
    %v334 = vadd.f32 %v333, 1.0
    %v335 = vrcp.pop %v334
    %v336 = vmul.f32 1.0, %v335
    %v337 = vmul.f32 %v329, %v21
    %v338 = vmul.f32 %v323, %v330
    %v339 = vadd.f32 %v337, %v338
    %v340 = vtanh.pop %v339
    %v341 = vmul.f32 %v336, %v340
    %s342 = scalar_lea.vmem %s1, 256
    %v343 = vld [vmem:[%s342] sm:$0xff]
    %v344 = vld [vmem:[%s342 + $0x8] sm:$0xff]
    %v345 = vld [vmem:[%s342 + $0x10] sm:$0xff]
    %v346 = vld [vmem:[%s342 + $0x18] sm:$0xff]
    %v347 = vld [vmem:[%s342 + $0x20] sm:$0xff]
    %v348 = vld [vmem:[%s342 + $0x28] sm:$0xff]
    %v349 = vld [vmem:[%s342 + $0x30] sm:$0xff]
    %v350 = vld [vmem:[%s342 + $0x38] sm:$0xff]
    %v351 = vld [vmem:[%s342 + $0x40] sm:$0xff]
    %v352 = vld [vmem:[%s342 + $0x48] sm:$0xff]
    %v353 = vld [vmem:[%s342 + $0x50] sm:$0xff]
    %v354 = vld [vmem:[%s342 + $0x58] sm:$0xff]
    %v355 = vld [vmem:[%s342 + $0x60] sm:$0xff]
    %v356 = vld [vmem:[%s342 + $0x68] sm:$0xff]
    %v357 = vld [vmem:[%s342 + $0x70] sm:$0xff]
    %v358 = vld [vmem:[%s342 + $0x78] sm:$0xff]
    %v359 = vld [vmem:[%s342 + $0x80] sm:$0xff]
    %v360 = vld [vmem:[%s342 + $0x88] sm:$0xff]
    %v361 = vld [vmem:[%s342 + $0x90] sm:$0xff]
    %v362 = vld [vmem:[%s342 + $0x98] sm:$0xff]
    %v363 = vld [vmem:[%s342 + $0xa0] sm:$0xff]
    %v364 = vld [vmem:[%s342 + $0xa8] sm:$0xff]
    %v365 = vld [vmem:[%s342 + $0xb0] sm:$0xff]
    %v366 = vld [vmem:[%s342 + $0xb8] sm:$0xff]
    %v367 = vld [vmem:[%s342 + $0xc0] sm:$0xff]
    %v368 = vld [vmem:[%s342 + $0xc8] sm:$0xff]
    %v369 = vld [vmem:[%s342 + $0xd0] sm:$0xff]
    %v370 = vld [vmem:[%s342 + $0xd8] sm:$0xff]
    %v371 = vld [vmem:[%s342 + $0xe0] sm:$0xff]
    %v372 = vld [vmem:[%s342 + $0xe8] sm:$0xff]
    %v373 = vld [vmem:[%s342 + $0xf0] sm:$0xff]
    %v374 = vld [vmem:[%s342 + $0xf8] sm:$0xff]
    %v375 = vpack.c.bf16 %v22, %v22
    %v408 = vunpack.c.l.b16 %v343
    %v409 = vunpack.c.h.b16 %v343
    %v410 = vunpack.c.l.b16 %v344
    %v411 = vunpack.c.h.b16 %v344
    %v412 = vunpack.c.l.b16 %v345
    %v413 = vunpack.c.h.b16 %v345
    %v414 = vunpack.c.l.b16 %v346
    %v415 = vunpack.c.h.b16 %v346
    %v416 = vunpack.c.l.b16 %v347
    %v417 = vunpack.c.h.b16 %v347
    %v418 = vunpack.c.l.b16 %v348
    %v419 = vunpack.c.h.b16 %v348
    %v420 = vunpack.c.l.b16 %v349
    %v421 = vunpack.c.h.b16 %v349
    %v422 = vunpack.c.l.b16 %v350
    %v423 = vunpack.c.h.b16 %v350
    %v424 = vunpack.c.l.b16 %v351
    %v425 = vunpack.c.h.b16 %v351
    %v426 = vunpack.c.l.b16 %v352
    %v427 = vunpack.c.h.b16 %v352
    %v428 = vunpack.c.l.b16 %v353
    %v429 = vunpack.c.h.b16 %v353
    %v430 = vunpack.c.l.b16 %v354
    %v431 = vunpack.c.h.b16 %v354
    %v432 = vunpack.c.l.b16 %v355
    %v433 = vunpack.c.h.b16 %v355
    %v434 = vunpack.c.l.b16 %v356
    %v435 = vunpack.c.h.b16 %v356
    %v436 = vunpack.c.l.b16 %v357
    %v437 = vunpack.c.h.b16 %v357
    %v438 = vunpack.c.l.b16 %v358
    %v439 = vunpack.c.h.b16 %v358
    %v440 = vunpack.c.l.b16 %v359
    %v441 = vunpack.c.h.b16 %v359
    %v442 = vunpack.c.l.b16 %v360
    %v443 = vunpack.c.h.b16 %v360
    %v444 = vunpack.c.l.b16 %v361
    %v445 = vunpack.c.h.b16 %v361
    %v446 = vunpack.c.l.b16 %v362
    %v447 = vunpack.c.h.b16 %v362
    %v448 = vunpack.c.l.b16 %v363
    %v449 = vunpack.c.h.b16 %v363
    %v450 = vunpack.c.l.b16 %v364
    %v451 = vunpack.c.h.b16 %v364
    %v452 = vunpack.c.l.b16 %v365
    %v453 = vunpack.c.h.b16 %v365
    %v454 = vunpack.c.l.b16 %v366
    %v455 = vunpack.c.h.b16 %v366
    %v456 = vunpack.c.l.b16 %v367
    %v457 = vunpack.c.h.b16 %v367
    %v458 = vunpack.c.l.b16 %v368
    %v459 = vunpack.c.h.b16 %v368
    %v460 = vunpack.c.l.b16 %v369
    %v461 = vunpack.c.h.b16 %v369
    %v462 = vunpack.c.l.b16 %v370
    %v463 = vunpack.c.h.b16 %v370
    %v464 = vunpack.c.l.b16 %v371
    %v465 = vunpack.c.h.b16 %v371
    %v466 = vunpack.c.l.b16 %v372
    %v467 = vunpack.c.h.b16 %v372
    %v468 = vunpack.c.l.b16 %v373
    %v469 = vunpack.c.h.b16 %v373
    %v470 = vunpack.c.l.b16 %v374
    %v471 = vunpack.c.h.b16 %v374
    %v472 = vpack.c.b16 %v412, %v408
    %v473 = vpack.c.b16 %v413, %v409
    %v474 = vpack.c.b16 %v414, %v410
    %v475 = vpack.c.b16 %v415, %v411
    %v476 = vpack.c.b16 %v420, %v416
    %v477 = vpack.c.b16 %v421, %v417
    %v478 = vpack.c.b16 %v422, %v418
    %v479 = vpack.c.b16 %v423, %v419
    %v480 = vpack.c.b16 %v428, %v424
    %v481 = vpack.c.b16 %v429, %v425
    %v482 = vpack.c.b16 %v430, %v426
    %v483 = vpack.c.b16 %v431, %v427
    %v484 = vpack.c.b16 %v436, %v432
    %v485 = vpack.c.b16 %v437, %v433
    %v486 = vpack.c.b16 %v438, %v434
    %v487 = vpack.c.b16 %v439, %v435
    %v488 = vpack.c.b16 %v444, %v440
    %v489 = vpack.c.b16 %v445, %v441
    %v490 = vpack.c.b16 %v446, %v442
    %v491 = vpack.c.b16 %v447, %v443
    %v492 = vpack.c.b16 %v452, %v448
    %v493 = vpack.c.b16 %v453, %v449
    %v494 = vpack.c.b16 %v454, %v450
    %v495 = vpack.c.b16 %v455, %v451
    %v496 = vpack.c.b16 %v460, %v456
    %v497 = vpack.c.b16 %v461, %v457
    %v498 = vpack.c.b16 %v462, %v458
    %v499 = vpack.c.b16 %v463, %v459
    %v500 = vpack.c.b16 %v468, %v464
    %v501 = vpack.c.b16 %v469, %v465
    %v502 = vpack.c.b16 %v470, %v466
    %v503 = vpack.c.b16 %v471, %v467
    %536 = vmatprep.subr.bf16.mxu0 %v473
    %537 = vmatpush1.bf16.msra.mxu0 %v472
    %538 = vmatprep.subr.bf16.mxu0 %v477
    %539 = vmatpush1.bf16.msra.mxu0 %v476
    %540 = vmatprep.subr.bf16.mxu0 %v481
    %541 = vmatpush1.bf16.msra.mxu0 %v480
    %542 = vmatprep.subr.bf16.mxu0 %v485
    %543 = vmatpush1.bf16.msra.mxu0 %v484
    %544 = vmatprep.subr.bf16.mxu0 %v489
    %545 = vmatpush1.bf16.msra.mxu0 %v488
    %546 = vmatprep.subr.bf16.mxu0 %v493
    %547 = vmatpush1.bf16.msra.mxu0 %v492
    %548 = vmatprep.subr.bf16.mxu0 %v497
    %549 = vmatpush1.bf16.msra.mxu0 %v496
    %550 = vmatprep.subr.bf16.mxu0 %v501
    %551 = vmatpush1.bf16.msra.mxu0 %v500
    %552 = vmatprep.subr.bf16.mxu0 0
    %553 = vmatpush1.bf16.msra.mxu0 0
    %554 = vmatprep.subr.bf16.mxu0 0
    %555 = vmatpush1.bf16.msra.mxu0 0
    %556 = vmatprep.subr.bf16.mxu0 0
    %557 = vmatpush1.bf16.msra.mxu0 0
    %558 = vmatprep.subr.bf16.mxu0 0
    %559 = vmatpush1.bf16.msra.mxu0 0
    %560 = vmatprep.subr.bf16.mxu0 0
    %561 = vmatpush1.bf16.msra.mxu0 0
    %562 = vmatprep.subr.bf16.mxu0 0
    %563 = vmatpush1.bf16.msra.mxu0 0
    %564 = vmatprep.subr.bf16.mxu0 0
    %565 = vmatpush1.bf16.msra.mxu0 0
    %566 = vmatprep.subr.bf16.mxu0 0
    %567 = vmatpush1.bf16.msra.mxu0 0
    %568 = vmatprep.mubr.bf16.mxu0 0
    %569 = vmatmul.mubr.bf16.gmra.mrb[0].mxu0 %v375
    %v570 = vpop.f32.mrb[0].mxu0
    %v571 = vadd.f32 0.0, %v570
    %v572 = vpop.f32.mrb[0].mxu0
    %v573 = vadd.f32 0.0, %v572
    %v574 = vpop.f32.mrb[0].mxu0
    %v575 = vpop.f32.mrb[0].mxu0
    %576 = vdwg.mxu0
    %577 = vmatprep.subr.bf16.mxu0 %v475
    %578 = vmatpush1.bf16.msra.mxu0 %v474
    %579 = vmatprep.subr.bf16.mxu0 %v479
    %580 = vmatpush1.bf16.msra.mxu0 %v478
    %581 = vmatprep.subr.bf16.mxu0 %v483
    %582 = vmatpush1.bf16.msra.mxu0 %v482
    %583 = vmatprep.subr.bf16.mxu0 %v487
    %584 = vmatpush1.bf16.msra.mxu0 %v486
    %585 = vmatprep.subr.bf16.mxu0 %v491
    %586 = vmatpush1.bf16.msra.mxu0 %v490
    %587 = vmatprep.subr.bf16.mxu0 %v495
    %588 = vmatpush1.bf16.msra.mxu0 %v494
    %589 = vmatprep.subr.bf16.mxu0 %v499
    %590 = vmatpush1.bf16.msra.mxu0 %v498
    %591 = vmatprep.subr.bf16.mxu0 %v503
    %592 = vmatpush1.bf16.msra.mxu0 %v502
    %593 = vmatprep.subr.bf16.mxu0 0
    %594 = vmatpush1.bf16.msra.mxu0 0
    %595 = vmatprep.subr.bf16.mxu0 0
    %596 = vmatpush1.bf16.msra.mxu0 0
    %597 = vmatprep.subr.bf16.mxu0 0
    %598 = vmatpush1.bf16.msra.mxu0 0
    %599 = vmatprep.subr.bf16.mxu0 0
    %600 = vmatpush1.bf16.msra.mxu0 0
    %601 = vmatprep.subr.bf16.mxu0 0
    %602 = vmatpush1.bf16.msra.mxu0 0
    %603 = vmatprep.subr.bf16.mxu0 0
    %604 = vmatpush1.bf16.msra.mxu0 0
    %605 = vmatprep.subr.bf16.mxu0 0
    %606 = vmatpush1.bf16.msra.mxu0 0
    %607 = vmatprep.subr.bf16.mxu0 0
    %608 = vmatpush1.bf16.msra.mxu0 0
    %609 = vmatprep.mubr.bf16.mxu0 0
    %610 = vmatmul.mubr.bf16.gmra.mrb[0].mxu0 %v375
    %v611 = vpop.f32.mrb[0].mxu0
    %v612 = vadd.f32 0.0, %v611
    %v613 = vpop.f32.mrb[0].mxu0
    %v614 = vadd.f32 0.0, %v613
    %v615 = vpop.f32.mrb[0].mxu0
    %v616 = vpop.f32.mrb[0].mxu0
    %617 = vdwg.mxu0
    %v618 = vadd.f32 %v35, %v571
    %v619 = vadd.f32 %v36, %v573
    %v620 = vadd.f32 %v37, %v612
    %v621 = vadd.f32 %v38, %v614
    %v622 = vxor.u32 %v618, 2147483648
    %v623 = vmul.f32 %v622, 1.442695
    %v624 = vpow.pop %v623
    %v625 = vadd.f32 %v624, 1.0
    %v626 = vrcp.pop %v625
    %v627 = vmul.f32 1.0, %v626
    %v628 = vxor.u32 %v619, 2147483648
    %v629 = vmul.f32 %v628, 1.442695
    %v630 = vpow.pop %v629
    %v631 = vadd.f32 %v630, 1.0
    %v632 = vrcp.pop %v631
    %v633 = vmul.f32 1.0, %v632
    %v634 = vtanh.pop %v620
    %v635 = vxor.u32 %v621, 2147483648
    %v636 = vmul.f32 %v635, 1.442695
    %v637 = vpow.pop %v636
    %v638 = vadd.f32 %v637, 1.0
    %v639 = vrcp.pop %v638
    %v640 = vmul.f32 1.0, %v639
    %v641 = vmul.f32 %v633, %v23
    %v642 = vmul.f32 %v627, %v634
    %v643 = vadd.f32 %v641, %v642
    %v644 = vtanh.pop %v643
    %v645 = vmul.f32 %v640, %v644
    %s646 = scalar_lea.vmem %s2, %s25
    %647 = vst [vmem:[%s646] sm:$0xff] %v341
    %s648 = scalar_lea.vmem %s3, %s32
    %649 = vst [vmem:[%s648] sm:$0xff] %v645
  $region14: #{bertcrf_forward.7} parent=0 // loop_footer
    %s19 = sadd.s32 1, %s15
  $region15: #{bertcrf_forward.7} parent=0 // loop_footer_branch
    %14 = sbr.rel target = $region11
  $region16: #{bertcrf_forward.7} parent=0 // loop_exit
    _
  // Predicated region
  $region17: #{bertcrf_forward.7} parent=0 // pred_check
    _
  $region18: #{bertcrf_forward.7} parent=0 // pred_check_branch
    %651 = sbr.rel (0) target = $region20
  $region19: #{bertcrf_forward.7} parent=0 // pred_region
    _
  $region20: #{bertcrf_forward.7} parent=0 // pred_fallthru
    _
  // Predicated region
  $region21: #{bertcrf_forward.7} parent=0 // pred_check
    _
  $region22: #{bertcrf_forward.7} parent=0 // pred_check_branch
    %653 = sbr.rel (0) target = $region24
  $region23: #{bertcrf_forward.7} parent=0 // pred_region
    _
  $region24: #{bertcrf_forward.7} parent=0 // pred_fallthru
    _
  // Predicated region
  $region25: #{bertcrf_forward.7} parent=0 // pred_check
    _
  $region26: #{bertcrf_forward.7} parent=0 // pred_check_branch
    %655 = sbr.rel (0) target = $region28
  $region27: #{bertcrf_forward.7} parent=0 // pred_region
    _
  $region28: #{bertcrf_forward.7} parent=0 // pred_fallthru
    _
  // Predicated region
  $region29: #{bertcrf_forward.7} parent=0 // pred_check
    _
  $region30: #{bertcrf_forward.7} parent=0 // pred_check_branch
    %657 = sbr.rel (0) target = $region32
  $region31: #{bertcrf_forward.7} parent=0 // pred_region
    _
  $region32: #{bertcrf_forward.7} parent=0 // pred_fallthru
    _

// kernel: bertcrf_forward.9
$region0: #{bertcrf_forward.9}
  #allocation0 [shape = 'u32[]', space=smem, size = 0x4, offset = 0x4, fixed_abs, tag = 'smem constant byte address 0x4 - core index']
  #allocation1 [shape = 'u32[144,128]{1,0:T(1,128)}', space=vmem, size = 0x12000, scoped, tag = 'internal scratch']
  %s0 = inlined_call_operand.vmem [shape: f32[8,8,128], index: 0, kind: input, shape index: {}]
  %s1 = inlined_call_operand.vmem [shape: s32[8,8,1], index: 1, kind: input, shape index: {}]
  %s2 = inlined_call_operand.vmem [shape: f32[8,8,1], index: 2, kind: input, shape index: {}]
  %s3 = inlined_call_operand.vmem [shape: f32[128,128], index: 3, kind: input, shape index: {}]
  %s4 = inlined_call_operand.vmem [shape: f32[128,128], index: 4, kind: input, shape index: {}]
  %s5 = inlined_call_operand.vmem [shape: f32[1,128], index: 5, kind: input, shape index: {}]
  %s6 = inlined_call_operand.vmem [shape: f32[1,128], index: 6, kind: input, shape index: {}]
  %s7 = inlined_call_operand.hbm [shape: f32[1,1,1], index: 7, kind: output, shape index: {0}]
  %s8 = inlined_call_operand.hbm [shape: f32[1,1,1], index: 8, kind: output, shape index: {1}]
  %9 = xla_tuple %s7, %s8
  %s10 = sld [smem:[#allocation0]]
  $region53: #{bertcrf_forward.9} parent=0
    _
  %s12 = ssub.s32 1, %s10
  %s13 = scalar_select 0, %s12, %s10
  $region1: #{bertcrf_forward.9} parent=0
    #allocation2 [shape = 'u8[512]{0}', space=vmem, size = 0x400, scoped, tag = 'output window, operand 0, single buffered']
    #allocation3 [shape = 's32[1]{0}', space=sflag, size = 0x4, scoped, tag = 'scoped memory for bertcrf_forward.9']
    #allocation4 [shape = 'u8[512]{0}', space=vmem, size = 0x400, scoped, tag = 'output window, operand 1, single buffered']
    #allocation5 [shape = 's32[1]{0}', space=sflag, size = 0x4, scoped, tag = 'scoped memory for bertcrf_forward.9']
    %14 = vsyncpa [#allocation3], 0
    %15 = vsyncpa [#allocation5], 0
    // Predicated region
    $region2: #{bertcrf_forward.9} parent=1 // pred_check
      _
    $region3: #{bertcrf_forward.9} parent=1 // pred_check_branch
      %17 = sbr.rel (0) target = $region5
    $region4: #{bertcrf_forward.9} parent=1 // pred_region
      _
    $region5: #{bertcrf_forward.9} parent=1 // pred_fallthru
      _
    // Predicated region
    $region6: #{bertcrf_forward.9} parent=1 // pred_check
      _
    $region7: #{bertcrf_forward.9} parent=1 // pred_check_branch
      %19 = sbr.rel (0) target = $region9
    $region8: #{bertcrf_forward.9} parent=1 // pred_region
      _
    $region9: #{bertcrf_forward.9} parent=1 // pred_fallthru
      _
    // Predicated region
    $region10: #{bertcrf_forward.9} parent=1 // pred_check
      _
    $region11: #{bertcrf_forward.9} parent=1 // pred_check_branch
      %21 = sbr.rel (0) target = $region13
    $region12: #{bertcrf_forward.9} parent=1 // pred_region
      _
    $region13: #{bertcrf_forward.9} parent=1 // pred_fallthru
      _
    // Predicated region
    $region14: #{bertcrf_forward.9} parent=1 // pred_check
      _
    $region15: #{bertcrf_forward.9} parent=1 // pred_check_branch
      %23 = sbr.rel (0) target = $region17
    $region16: #{bertcrf_forward.9} parent=1 // pred_region
      _
    $region17: #{bertcrf_forward.9} parent=1 // pred_fallthru
      _
    // Predicated region
    $region18: #{bertcrf_forward.9} parent=1 // pred_check
      _
    $region19: #{bertcrf_forward.9} parent=1 // pred_check_branch
      %25 = sbr.rel (0) target = $region21
    $region20: #{bertcrf_forward.9} parent=1 // pred_region
      _
    $region21: #{bertcrf_forward.9} parent=1 // pred_fallthru
      _
    // Predicated region
    $region22: #{bertcrf_forward.9} parent=1 // pred_check
      _
    $region23: #{bertcrf_forward.9} parent=1 // pred_check_branch
      %27 = sbr.rel (0) target = $region25
    $region24: #{bertcrf_forward.9} parent=1 // pred_region
      _
    $region25: #{bertcrf_forward.9} parent=1 // pred_fallthru
      _
    // Predicated region
    $region26: #{bertcrf_forward.9} parent=1 // pred_check
      _
    $region27: #{bertcrf_forward.9} parent=1 // pred_check_branch
      %29 = sbr.rel (0) target = $region29
    $region28: #{bertcrf_forward.9} parent=1 // pred_region
      _
    $region29: #{bertcrf_forward.9} parent=1 // pred_fallthru
      _
    %v30 = vld [vmem:[%s3] sm:$0xff]
    %v31 = vld [vmem:[%s3 + $0x8] sm:$0xff]
    %v32 = vld [vmem:[%s3 + $0x10] sm:$0xff]
    %v33 = vld [vmem:[%s3 + $0x18] sm:$0xff]
    %v34 = vld [vmem:[%s3 + $0x20] sm:$0xff]
    %v35 = vld [vmem:[%s3 + $0x28] sm:$0xff]
    %v36 = vld [vmem:[%s3 + $0x30] sm:$0xff]
    %v37 = vld [vmem:[%s3 + $0x38] sm:$0xff]
    %v38 = vld [vmem:[%s3 + $0x40] sm:$0xff]
    %v39 = vld [vmem:[%s3 + $0x48] sm:$0xff]
    %v40 = vld [vmem:[%s3 + $0x50] sm:$0xff]
    %v41 = vld [vmem:[%s3 + $0x58] sm:$0xff]
    %v42 = vld [vmem:[%s3 + $0x60] sm:$0xff]
    %v43 = vld [vmem:[%s3 + $0x68] sm:$0xff]
    %v44 = vld [vmem:[%s3 + $0x70] sm:$0xff]
    %v45 = vld [vmem:[%s3 + $0x78] sm:$0xff]
    %v46 = vld [vmem:[%s4] sm:$0xff]
    %v47 = vld [vmem:[%s4 + $0x8] sm:$0xff]
    %v48 = vld [vmem:[%s4 + $0x10] sm:$0xff]
    %v49 = vld [vmem:[%s4 + $0x18] sm:$0xff]
    %v50 = vld [vmem:[%s4 + $0x20] sm:$0xff]
    %v51 = vld [vmem:[%s4 + $0x28] sm:$0xff]
    %v52 = vld [vmem:[%s4 + $0x30] sm:$0xff]
    %v53 = vld [vmem:[%s4 + $0x38] sm:$0xff]
    %v54 = vld [vmem:[%s4 + $0x40] sm:$0xff]
    %v55 = vld [vmem:[%s4 + $0x48] sm:$0xff]
    %v56 = vld [vmem:[%s4 + $0x50] sm:$0xff]
    %v57 = vld [vmem:[%s4 + $0x58] sm:$0xff]
    %v58 = vld [vmem:[%s4 + $0x60] sm:$0xff]
    %v59 = vld [vmem:[%s4 + $0x68] sm:$0xff]
    %v60 = vld [vmem:[%s4 + $0x70] sm:$0xff]
    %v61 = vld [vmem:[%s4 + $0x78] sm:$0xff]
    %v62 = vld [vmem:[%s5] sm:$0x1]
    %v63 = vld [vmem:[%s6] sm:$0x1]
    %v64 = vld [vmem:[%s2] sm:$0xff]
    %v65 = vld [vmem:[%s2 + $0x8] sm:$0xff]
    %v66 = vld [vmem:[%s2 + $0x10] sm:$0xff]
    %v67 = vld [vmem:[%s2 + $0x18] sm:$0xff]
    %v68 = vld [vmem:[%s2 + $0x20] sm:$0xff]
    %v69 = vld [vmem:[%s2 + $0x28] sm:$0xff]
    %v70 = vld [vmem:[%s2 + $0x30] sm:$0xff]
    %v71 = vld [vmem:[%s2 + $0x38] sm:$0xff]
    %v72 = vlaneseq
    %v73 = vand.u32 %v72, 127
    %v74 = vld [vmem:[%s1] sm:$0xff]
    %v75 = vld [vmem:[%s1 + $0x8] sm:$0xff]
    %v76 = vld [vmem:[%s1 + $0x10] sm:$0xff]
    %v77 = vld [vmem:[%s1 + $0x18] sm:$0xff]
    %v78 = vld [vmem:[%s1 + $0x20] sm:$0xff]
    %v79 = vld [vmem:[%s1 + $0x28] sm:$0xff]
    %v80 = vld [vmem:[%s1 + $0x30] sm:$0xff]
    %v81 = vld [vmem:[%s1 + $0x38] sm:$0xff]
    %82 = vset.pattern.permute.xlu0 0
    %83 = vperm.xlu0 %82, %v74
    %v84 = vpop.permute.xlu0 %83
    %85 = vset.pattern.permute.xlu0 0
    %86 = vperm.xlu0 %85, %v75
    %v87 = vpop.permute.xlu0 %86
    %88 = vset.pattern.permute.xlu0 0
    %89 = vperm.xlu0 %88, %v76
    %v90 = vpop.permute.xlu0 %89
    %91 = vset.pattern.permute.xlu0 0
    %92 = vperm.xlu0 %91, %v77
    %v93 = vpop.permute.xlu0 %92
    %94 = vset.pattern.permute.xlu0 0
    %95 = vperm.xlu0 %94, %v78
    %v96 = vpop.permute.xlu0 %95
    %97 = vset.pattern.permute.xlu0 0
    %98 = vperm.xlu0 %97, %v79
    %v99 = vpop.permute.xlu0 %98
    %100 = vset.pattern.permute.xlu0 0
    %101 = vperm.xlu0 %100, %v80
    %v102 = vpop.permute.xlu0 %101
    %103 = vset.pattern.permute.xlu0 0
    %104 = vperm.xlu0 %103, %v81
    %v105 = vpop.permute.xlu0 %104
    %vm106 = vcmp.eq.s32.totalorder %v73, %v84
    %vm107 = vcmp.eq.s32.totalorder %v73, %v87
    %vm108 = vcmp.eq.s32.totalorder %v73, %v90
    %vm109 = vcmp.eq.s32.totalorder %v73, %v93
    %vm110 = vcmp.eq.s32.totalorder %v73, %v96
    %vm111 = vcmp.eq.s32.totalorder %v73, %v99
    %vm112 = vcmp.eq.s32.totalorder %v73, %v102
    %vm113 = vcmp.eq.s32.totalorder %v73, %v105
    %v114 = vsel %vm106, 1, 0
    %v115 = vsel %vm107, 1, 0
    %v116 = vsel %vm108, 1, 0
    %v117 = vsel %vm109, 1, 0
    %v118 = vsel %vm110, 1, 0
    %v119 = vsel %vm111, 1, 0
    %v120 = vsel %vm112, 1, 0
    %v121 = vsel %vm113, 1, 0
    %v122 = vcvt.s32.f32 %v114
    %v123 = vcvt.s32.f32 %v115
    %v124 = vcvt.s32.f32 %v116
    %v125 = vcvt.s32.f32 %v117
    %v126 = vcvt.s32.f32 %v118
    %v127 = vcvt.s32.f32 %v119
    %v128 = vcvt.s32.f32 %v120
    %v129 = vcvt.s32.f32 %v121
    %v130 = vld [vmem:[%s0] sm:$0xff]
    %v131 = vld [vmem:[%s0 + $0x8] sm:$0xff]
    %v132 = vld [vmem:[%s0 + $0x10] sm:$0xff]
    %v133 = vld [vmem:[%s0 + $0x18] sm:$0xff]
    %v134 = vld [vmem:[%s0 + $0x20] sm:$0xff]
    %v135 = vld [vmem:[%s0 + $0x28] sm:$0xff]
    %v136 = vld [vmem:[%s0 + $0x30] sm:$0xff]
    %v137 = vld [vmem:[%s0 + $0x38] sm:$0xff]
    %v138 = vmul.f32 %v130, %v122
    %v139 = vmul.f32 %v131, %v123
    %v140 = vmul.f32 %v132, %v124
    %v141 = vmul.f32 %v133, %v125
    %v142 = vmul.f32 %v134, %v126
    %v143 = vmul.f32 %v135, %v127
    %v144 = vmul.f32 %v136, %v128
    %v145 = vmul.f32 %v137, %v129
    %146 = vadd.xlane.f32.xlu0 %v138
    %v147 = vpop.xlane.xlu0 %146
    %148 = vadd.xlane.f32.xlu0 %v139
    %v149 = vpop.xlane.xlu0 %148
    %150 = vadd.xlane.f32.xlu0 %v140
    %v151 = vpop.xlane.xlu0 %150
    %152 = vadd.xlane.f32.xlu0 %v141
    %v153 = vpop.xlane.xlu0 %152
    %154 = vadd.xlane.f32.xlu0 %v142
    %v155 = vpop.xlane.xlu0 %154
    %156 = vadd.xlane.f32.xlu0 %v143
    %v157 = vpop.xlane.xlu0 %156
    %158 = vadd.xlane.f32.xlu0 %v144
    %v159 = vpop.xlane.xlu0 %158
    %160 = vadd.xlane.f32.xlu0 %v145
    %v161 = vpop.xlane.xlu0 %160
    %v162 = vmul.f32 %v147, %v64
    %v163 = vmul.f32 %v149, %v65
    %v164 = vmul.f32 %v151, %v66
    %v165 = vmul.f32 %v153, %v67
    %v166 = vmul.f32 %v155, %v68
    %v167 = vmul.f32 %v157, %v69
    %v168 = vmul.f32 %v159, %v70
    %v169 = vmul.f32 %v161, %v71
    %vm170 = vcmask 7168
    %v171 = vsel %vm170, %v162, 0.0
    %v172 = vsel %vm170, %v163, 0.0
    %v173 = vadd.f32 %v171, %v172
    %v174 = vsel %vm170, %v164, 0.0
    %v175 = vadd.f32 %v173, %v174
    %v176 = vsel %vm170, %v165, 0.0
    %v177 = vadd.f32 %v175, %v176
    %v178 = vsel %vm170, %v166, 0.0
    %v179 = vadd.f32 %v177, %v178
    %v180 = vsel %vm170, %v167, 0.0
    %v181 = vadd.f32 %v179, %v180
    %v182 = vsel %vm170, %v168, 0.0
    %v183 = vadd.f32 %v181, %v182
    %v184 = vsel %vm170, %v169, 0.0
    %v185 = vadd.f32 %v183, %v184
    %186 = vmatprep.subr.mxu0 0.0
    %187 = vmatpush1.msra.mxu0 %v30
    %188 = vmatprep.subr.mxu0 0.0
    %189 = vmatpush1.msra.mxu0 %v31
    %190 = vmatprep.subr.mxu0 0.0
    %191 = vmatpush1.msra.mxu0 %v32
    %192 = vmatprep.subr.mxu0 0.0
    %193 = vmatpush1.msra.mxu0 %v33
    %194 = vmatprep.subr.mxu0 0.0
    %195 = vmatpush1.msra.mxu0 %v34
    %196 = vmatprep.subr.mxu0 0.0
    %197 = vmatpush1.msra.mxu0 %v35
    %198 = vmatprep.subr.mxu0 0.0
    %199 = vmatpush1.msra.mxu0 %v36
    %200 = vmatprep.subr.mxu0 0.0
    %201 = vmatpush1.msra.mxu0 %v37
    %202 = vmatprep.subr.mxu0 0.0
    %203 = vmatpush1.msra.mxu0 %v38
    %204 = vmatprep.subr.mxu0 0.0
    %205 = vmatpush1.msra.mxu0 %v39
    %206 = vmatprep.subr.mxu0 0.0
    %207 = vmatpush1.msra.mxu0 %v40
    %208 = vmatprep.subr.mxu0 0.0
    %209 = vmatpush1.msra.mxu0 %v41
    %210 = vmatprep.subr.mxu0 0.0
    %211 = vmatpush1.msra.mxu0 %v42
    %212 = vmatprep.subr.mxu0 0.0
    %213 = vmatpush1.msra.mxu0 %v43
    %214 = vmatprep.subr.mxu0 0.0
    %215 = vmatpush1.msra.mxu0 %v44
    %216 = vmatprep.subr.mxu0 0.0
    %217 = vmatpush1.msra.mxu0 %v45
    %218 = vmatprep.subr.mxu0 0.0
    %219 = vmatpush1.msra.mxu0 0.0
    %220 = vmatprep.subr.mxu0 0.0
    %221 = vmatpush1.msra.mxu0 0.0
    %222 = vmatprep.subr.mxu0 0.0
    %223 = vmatpush1.msra.mxu0 0.0
    %224 = vmatprep.subr.mxu0 0.0
    %225 = vmatpush1.msra.mxu0 0.0
    %226 = vmatprep.subr.mxu0 0.0
    %227 = vmatpush1.msra.mxu0 0.0
    %228 = vmatprep.subr.mxu0 0.0
    %229 = vmatpush1.msra.mxu0 0.0
    %230 = vmatprep.subr.mxu0 0.0
    %231 = vmatpush1.msra.mxu0 0.0
    %232 = vmatprep.subr.mxu0 0.0
    %233 = vmatpush1.msra.mxu0 0.0
    %234 = vmatprep.subr.mxu0 0.0
    %235 = vmatpush1.msra.mxu0 0.0
    %236 = vmatprep.subr.mxu0 0.0
    %237 = vmatpush1.msra.mxu0 0.0
    %238 = vmatprep.subr.mxu0 0.0
    %239 = vmatpush1.msra.mxu0 0.0
    %240 = vmatprep.subr.mxu0 0.0
    %241 = vmatpush1.msra.mxu0 0.0
    %242 = vmatprep.subr.mxu0 0.0
    %243 = vmatpush1.msra.mxu0 0.0
    %244 = vmatprep.subr.mxu0 0.0
    %245 = vmatpush1.msra.mxu0 0.0
    %246 = vmatprep.subr.mxu0 0.0
    %247 = vmatpush1.msra.mxu0 0.0
    %248 = vmatprep.subr.mxu0 0.0
    %249 = vmatpush1.msra.mxu0 0.0
    %250 = vmatprep.mubr.f32.mxu0 0.0
    %251 = vmatmul.mubr.f32.gmra.mrb[0].mxu0 %v122
    %v252 = vpop.f32.mrb[0].mxu0
    %v253 = vadd.f32 0.0, %v252
    %v254 = vpop.f32.mrb[0].mxu0
    %255 = vmatprep.mubr.f32.mxu0 0.0
    %256 = vmatmul.mubr.f32.gmra.mrb[0].mxu0 %v123
    %v257 = vpop.f32.mrb[0].mxu0
    %v258 = vadd.f32 0.0, %v257
    %v259 = vpop.f32.mrb[0].mxu0
    %260 = vmatprep.mubr.f32.mxu0 0.0
    %261 = vmatmul.mubr.f32.gmra.mrb[0].mxu0 %v124
    %v262 = vpop.f32.mrb[0].mxu0
    %v263 = vadd.f32 0.0, %v262
    %v264 = vpop.f32.mrb[0].mxu0
    %265 = vmatprep.mubr.f32.mxu0 0.0
    %266 = vmatmul.mubr.f32.gmra.mrb[0].mxu0 %v125
    %v267 = vpop.f32.mrb[0].mxu0
    %v268 = vadd.f32 0.0, %v267
    %v269 = vpop.f32.mrb[0].mxu0
    %270 = vmatprep.mubr.f32.mxu0 0.0
    %271 = vmatmul.mubr.f32.gmra.mrb[0].mxu0 %v126
    %v272 = vpop.f32.mrb[0].mxu0
    %v273 = vadd.f32 0.0, %v272
    %v274 = vpop.f32.mrb[0].mxu0
    %275 = vmatprep.mubr.f32.mxu0 0.0
    %276 = vmatmul.mubr.f32.gmra.mrb[0].mxu0 %v127
    %v277 = vpop.f32.mrb[0].mxu0
    %v278 = vadd.f32 0.0, %v277
    %v279 = vpop.f32.mrb[0].mxu0
    %280 = vmatprep.mubr.f32.mxu0 0.0
    %281 = vmatmul.mubr.f32.gmra.mrb[0].mxu0 %v128
    %v282 = vpop.f32.mrb[0].mxu0
    %v283 = vadd.f32 0.0, %v282
    %v284 = vpop.f32.mrb[0].mxu0
    %285 = vdwg.mxu0
    %v286 = vmul.f32 %v253, %v123
    %v287 = vmul.f32 %v258, %v124
    %v288 = vmul.f32 %v263, %v125
    %v289 = vmul.f32 %v268, %v126
    %v290 = vmul.f32 %v273, %v127
    %v291 = vmul.f32 %v278, %v128
    %v292 = vmul.f32 %v283, %v129
    %293 = vadd.xlane.f32.xlu0 %v286
    %v294 = vpop.xlane.xlu0 %293
    %295 = vadd.xlane.f32.xlu0 %v287
    %v296 = vpop.xlane.xlu0 %295
    %297 = vadd.xlane.f32.xlu0 %v288
    %v298 = vpop.xlane.xlu0 %297
    %299 = vadd.xlane.f32.xlu0 %v289
    %v300 = vpop.xlane.xlu0 %299
    %301 = vadd.xlane.f32.xlu0 %v290
    %v302 = vpop.xlane.xlu0 %301
    %303 = vadd.xlane.f32.xlu0 %v291
    %v304 = vpop.xlane.xlu0 %303
    %305 = vadd.xlane.f32.xlu0 %v292
    %v306 = vpop.xlane.xlu0 %305
    %v307 = vmul.f32 %v294, %v65
    %v308 = vmul.f32 %v296, %v66
    %v309 = vmul.f32 %v298, %v67
    %v310 = vmul.f32 %v300, %v68
    %v311 = vmul.f32 %v302, %v69
    %v312 = vmul.f32 %v304, %v70
    %v313 = vmul.f32 %v306, %v71
    %v314 = vsel %vm170, %v307, 0.0
    %v315 = vsel %vm170, %v308, 0.0
    %v316 = vadd.f32 %v314, %v315
    %v317 = vsel %vm170, %v309, 0.0
    %v318 = vadd.f32 %v316, %v317
    %v319 = vsel %vm170, %v310, 0.0
    %v320 = vadd.f32 %v318, %v319
    %v321 = vsel %vm170, %v311, 0.0
    %v322 = vadd.f32 %v320, %v321
    %v323 = vsel %vm170, %v312, 0.0
    %v324 = vadd.f32 %v322, %v323
    %v325 = vsel %vm170, %v313, 0.0
    %v326 = vadd.f32 %v324, %v325
    %v328 = vlaneseq
    %v329 = vshrl.u32 %v328, 7
    %v330 = vsub.s32 0, %v329
    %v331 = vrot.slane %v62, %v330
    %v333 = vmul.f32 %v331, %v122
    %334 = vadd.xlane.f32.xlu0 %v333
    %v335 = vpop.xlane.xlu0 %334
    %337 = vset.pattern.permute.xlu0 0
    %338 = vperm.xlu0 %337, %v64
    %v339 = vpop.permute.xlu0 %338
    %342 = vset.pattern.permute.xlu0 0
    %343 = vperm.xlu0 %342, %v65
    %v344 = vpop.permute.xlu0 %343
    %347 = vset.pattern.permute.xlu0 0
    %348 = vperm.xlu0 %347, %v66
    %v349 = vpop.permute.xlu0 %348
    %352 = vset.pattern.permute.xlu0 0
    %353 = vperm.xlu0 %352, %v67
    %v354 = vpop.permute.xlu0 %353
    %357 = vset.pattern.permute.xlu0 0
    %358 = vperm.xlu0 %357, %v68
    %v359 = vpop.permute.xlu0 %358
    %362 = vset.pattern.permute.xlu0 0
    %363 = vperm.xlu0 %362, %v69
    %v364 = vpop.permute.xlu0 %363
    %367 = vset.pattern.permute.xlu0 0
    %368 = vperm.xlu0 %367, %v70
    %v369 = vpop.permute.xlu0 %368
    %372 = vset.pattern.permute.xlu0 0
    %373 = vperm.xlu0 %372, %v71
    %v374 = vpop.permute.xlu0 %373
    %v376 = vmul.f32 %v339, %v122
    %v377 = vmul.f32 %v344, %v123
    %v378 = vmul.f32 %v349, %v124
    %v379 = vmul.f32 %v354, %v125
    %v380 = vmul.f32 %v359, %v126
    %v381 = vmul.f32 %v364, %v127
    %v382 = vmul.f32 %v369, %v128
    %v383 = vmul.f32 %v374, %v129
    %v384 = vadd.f32 %v376, %v377
    %v385 = vadd.f32 %v384, %v378
    %v386 = vadd.f32 %v385, %v379
    %v387 = vadd.f32 %v386, %v380
    %v388 = vadd.f32 %v387, %v381
    %v389 = vadd.f32 %v388, %v382
    %v390 = vadd.f32 %v389, %v383
    %v391 = vmul.f32 %v344, %v122
    %v392 = vmul.f32 %v349, %v123
    %v393 = vmul.f32 %v354, %v124
    %v394 = vmul.f32 %v359, %v125
    %v395 = vmul.f32 %v364, %v126
    %v396 = vmul.f32 %v369, %v127
    %v397 = vmul.f32 %v374, %v128
    %v398 = vadd.f32 %v391, %v392
    %v399 = vadd.f32 %v398, %v393
    %v400 = vadd.f32 %v399, %v394
    %v401 = vadd.f32 %v400, %v395
    %v402 = vadd.f32 %v401, %v396
    %v403 = vadd.f32 %v402, %v397
    %v404 = vsub.f32 %v390, %v403
    %v406 = vlaneseq
    %v407 = vshrl.u32 %v406, 7
    %v408 = vsub.s32 0, %v407
    %v409 = vrot.slane %v63, %v408
    %v411 = vmul.f32 %v404, %v409
    %412 = vadd.xlane.f32.xlu0 %v411
    %v413 = vpop.xlane.xlu0 %412
    %v414 = vadd.f32 %v335, %v185
    %v415 = vadd.f32 %v414, %v326
    %v416 = vadd.f32 %v415, %v413
    %v417 = vld [vmem:[%s0] sm:$0xff]
    %v418 = vadd.f32 %v331, %v417
    loop: start=1, step=1, limit=8
    $region30: #{bertcrf_forward.9} parent=1 // loop_pre_header
      _
    $region31: #{bertcrf_forward.9} parent=1 // loop_header
      %s420 = sphi 1, %s424
      %p421 = scmp.ge.s32.totalorder %s420, 8
      %v425 = vphi %v418, %v517
    $region32: #{bertcrf_forward.9} parent=1 // loop_header_branch
      %423 = sbr.rel (%p421) target = $region36
    $region33: #{bertcrf_forward.9} parent=1 // loop_body
      %426 = vmax.xlane.f32.xlu0 %v425
      %v427 = vpop.xlane.xlu0 %426
      %v428 = vsub.f32 %v425, %v427
      %v429 = vmul.f32 %v428, 1.442695
      %v430 = vpow.pop %v429
      %431 = vmatprep.subr.mxu0 0.0
      %432 = vmatpush1.msra.mxu0 %v46
      %433 = vmatprep.subr.mxu0 0.0
      %434 = vmatpush1.msra.mxu0 %v47
      %435 = vmatprep.subr.mxu0 0.0
      %436 = vmatpush1.msra.mxu0 %v48
      %437 = vmatprep.subr.mxu0 0.0
      %438 = vmatpush1.msra.mxu0 %v49
      %439 = vmatprep.subr.mxu0 0.0
      %440 = vmatpush1.msra.mxu0 %v50
      %441 = vmatprep.subr.mxu0 0.0
      %442 = vmatpush1.msra.mxu0 %v51
      %443 = vmatprep.subr.mxu0 0.0
      %444 = vmatpush1.msra.mxu0 %v52
      %445 = vmatprep.subr.mxu0 0.0
      %446 = vmatpush1.msra.mxu0 %v53
      %447 = vmatprep.subr.mxu0 0.0
      %448 = vmatpush1.msra.mxu0 %v54
      %449 = vmatprep.subr.mxu0 0.0
      %450 = vmatpush1.msra.mxu0 %v55
      %451 = vmatprep.subr.mxu0 0.0
      %452 = vmatpush1.msra.mxu0 %v56
      %453 = vmatprep.subr.mxu0 0.0
      %454 = vmatpush1.msra.mxu0 %v57
      %455 = vmatprep.subr.mxu0 0.0
      %456 = vmatpush1.msra.mxu0 %v58
      %457 = vmatprep.subr.mxu0 0.0
      %458 = vmatpush1.msra.mxu0 %v59
      %459 = vmatprep.subr.mxu0 0.0
      %460 = vmatpush1.msra.mxu0 %v60
      %461 = vmatprep.subr.mxu0 0.0
      %462 = vmatpush1.msra.mxu0 %v61
      %463 = vmatprep.subr.mxu0 0.0
      %464 = vmatpush1.msra.mxu0 0.0
      %465 = vmatprep.subr.mxu0 0.0
      %466 = vmatpush1.msra.mxu0 0.0
      %467 = vmatprep.subr.mxu0 0.0
      %468 = vmatpush1.msra.mxu0 0.0
      %469 = vmatprep.subr.mxu0 0.0
      %470 = vmatpush1.msra.mxu0 0.0
      %471 = vmatprep.subr.mxu0 0.0
      %472 = vmatpush1.msra.mxu0 0.0
      %473 = vmatprep.subr.mxu0 0.0
      %474 = vmatpush1.msra.mxu0 0.0
      %475 = vmatprep.subr.mxu0 0.0
      %476 = vmatpush1.msra.mxu0 0.0
      %477 = vmatprep.subr.mxu0 0.0
      %478 = vmatpush1.msra.mxu0 0.0
      %479 = vmatprep.subr.mxu0 0.0
      %480 = vmatpush1.msra.mxu0 0.0
      %481 = vmatprep.subr.mxu0 0.0
      %482 = vmatpush1.msra.mxu0 0.0
      %483 = vmatprep.subr.mxu0 0.0
      %484 = vmatpush1.msra.mxu0 0.0
      %485 = vmatprep.subr.mxu0 0.0
      %486 = vmatpush1.msra.mxu0 0.0
      %487 = vmatprep.subr.mxu0 0.0
      %488 = vmatpush1.msra.mxu0 0.0
      %489 = vmatprep.subr.mxu0 0.0
      %490 = vmatpush1.msra.mxu0 0.0
      %491 = vmatprep.subr.mxu0 0.0
      %492 = vmatpush1.msra.mxu0 0.0
      %493 = vmatprep.subr.mxu0 0.0
      %494 = vmatpush1.msra.mxu0 0.0
      %495 = vmatprep.mubr.f32.mxu0 0.0
      %496 = vmatmul.mubr.f32.gmra.mrb[0].mxu0 %v430
      %v497 = vpop.f32.mrb[0].mxu0
      %v498 = vadd.f32 0.0, %v497
      %v499 = vpop.f32.mrb[0].mxu0
      %500 = vdwg.mxu0
      %s501 = smul.u32 %s420, 8
      %s502 = scalar_lea.vmem %s0, %s501
      %v503 = vld [vmem:[%s502] sm:$0xff]
      %v504 = vadd.f32 %v503, %v427
      %v505 = vlog2.pop %v498
      %v506 = vmul.f32 %v505, 0.6931472
      %v507 = vadd.f32 %v504, %v506
      %v508 = vmax.f32 %v507, -1e+09
      %s509 = scalar_lea.vmem %s2, %s501
      %v510 = vld [vmem:[%s509] sm:$0xff]
      %vm511 = vcmp.gt.f32.partialorder %v510, 0.0
      %v512 = vsel %vm511, 1, 0
      %513 = vset.pattern.permute.xlu0 0
      %514 = vperm.xlu0 %513, %v512
      %v515 = vpop.permute.xlu0 %514
      %vm516 = vcmp.eq.s32.totalorder %v515, 1
      %v517 = vsel %vm516, %v508, %v425
    $region34: #{bertcrf_forward.9} parent=1 // loop_footer
      %s424 = sadd.s32 1, %s420
    $region35: #{bertcrf_forward.9} parent=1 // loop_footer_branch
      %419 = sbr.rel target = $region31
    $region36: #{bertcrf_forward.9} parent=1 // loop_exit
      _
    %v518 = vadd.f32 %v425, %v409
    %519 = vmax.xlane.f32.xlu0 %v518
    %v520 = vpop.xlane.xlu0 %519
    %v521 = vsub.f32 %v518, %v520
    %v522 = vmul.f32 %v521, 1.442695
    %v523 = vpow.pop %v522
    %524 = vadd.xlane.f32.xlu0 %v523
    %v525 = vpop.xlane.xlu0 %524
    %v526 = vlog2.pop %v525
    %v527 = vmul.f32 %v526, 0.6931472
    %v528 = vadd.f32 %v527, %v520
    %v529 = vsub.f32 %v416, %v528
    %v530 = vmul.f32 %v64, %v529
    %v531 = vsel %vm170, %v530, 0.0
    %532 = vadd.xlane.f32.xlu0 %v531
    %v533 = vpop.xlane.xlu0 %532
    %v534 = vrot.slane %v533, 4
    %v535 = vadd.f32 %v533, %v534
    %v536 = vrot.slane %v535, 2
    %v537 = vadd.f32 %v535, %v536
    %v538 = vrot.slane %v537, 1
    %v539 = vadd.f32 %v537, %v538
    %s540 = vtos %v539
    %v541 = vstv %s540
    %vm542 = vcmask 0
    %543 = vst.msk [vmem:[#allocation2] sm:$0x1] %vm542, %v541
    %v544 = vsel %vm170, %v64, 0.0
    %v545 = vsel %vm170, %v65, 0.0
    %v546 = vadd.f32 %v544, %v545
    %v547 = vsel %vm170, %v66, 0.0
    %v548 = vadd.f32 %v546, %v547
    %v549 = vsel %vm170, %v67, 0.0
    %v550 = vadd.f32 %v548, %v549
    %v551 = vsel %vm170, %v68, 0.0
    %v552 = vadd.f32 %v550, %v551
    %v553 = vsel %vm170, %v69, 0.0
    %v554 = vadd.f32 %v552, %v553
    %v555 = vsel %vm170, %v70, 0.0
    %v556 = vadd.f32 %v554, %v555
    %v557 = vsel %vm170, %v71, 0.0
    %v558 = vadd.f32 %v556, %v557
    %559 = vadd.xlane.f32.xlu0 %v558
    %v560 = vpop.xlane.xlu0 %559
    %v561 = vrot.slane %v560, 4
    %v562 = vadd.f32 %v560, %v561
    %v563 = vrot.slane %v562, 2
    %v564 = vadd.f32 %v562, %v563
    %v565 = vrot.slane %v564, 1
    %v566 = vadd.f32 %v564, %v565
    %s567 = vtos %v566
    %v568 = vstv %s567
    %569 = vst.msk [vmem:[#allocation4] sm:$0x1] %vm542, %v568
    // Predicated region
    $region37: #{bertcrf_forward.9} parent=1 // pred_check
      _
    $region38: #{bertcrf_forward.9} parent=1 // pred_check_branch
      %571 = sbr.rel (0) target = $region40
    $region39: #{bertcrf_forward.9} parent=1 // pred_region
      %s573 = ssub.s32 16, 16
      %574 = vsyncadd [#allocation3], %s573
      %s576 = sshll.u32 [#allocation2], 4
      %s577 = int_to_ptr.vmem [resolvable:$true] %s576
      %579 = dma.vmem_to_hbm [thread:$0]  %s577, 16, %s7, [#allocation3]
    $region40: #{bertcrf_forward.9} parent=1 // pred_fallthru
      _
    // Predicated region
    $region41: #{bertcrf_forward.9} parent=1 // pred_check
      _
    $region42: #{bertcrf_forward.9} parent=1 // pred_check_branch
      %581 = sbr.rel (0) target = $region44
    $region43: #{bertcrf_forward.9} parent=1 // pred_region
      %s583 = ssub.s32 16, 16
      %584 = vsyncadd [#allocation5], %s583
      %s586 = sshll.u32 [#allocation4], 4
      %s587 = int_to_ptr.vmem [resolvable:$true] %s586
      %589 = dma.vmem_to_hbm [thread:$0]  %s587, 16, %s8, [#allocation5]
    $region44: #{bertcrf_forward.9} parent=1 // pred_fallthru
      _
    // Predicated region
    $region45: #{bertcrf_forward.9} parent=1 // pred_check
      _
    $region46: #{bertcrf_forward.9} parent=1 // pred_check_branch
      %591 = sbr.rel (0) target = $region48
    $region47: #{bertcrf_forward.9} parent=1 // pred_region
      %592 = dma.done [#allocation3], 16
    $region48: #{bertcrf_forward.9} parent=1 // pred_fallthru
      _
    // Predicated region
    $region49: #{bertcrf_forward.9} parent=1 // pred_check
      _
    $region50: #{bertcrf_forward.9} parent=1 // pred_check_branch
      %594 = sbr.rel (0) target = $region52
    $region51: #{bertcrf_forward.9} parent=1 // pred_region
      %595 = dma.done [#allocation5], 16
    $region52: #{bertcrf_forward.9} parent=1 // pred_fallthru
      _
    %596 = vsyncpa [#allocation3], 1
    %597 = vsyncpa [#allocation5], 1

</llo_original>
